<compile_context>
chip_gen: v6e
topology: v6e:2x2x1
jax: 0.10.0
libtpu: 0.0.40
codegen_flags: <defaults>
</compile_context>

<pallas_src>
import functools
import math

import jax
import jax.numpy as jnp
from jax.experimental import pallas as pl
from jax.experimental.pallas import tpu as pltpu

_LANE = 128


def _round_up(x, m):
    return ((x + m - 1) // m) * m


def _layer_dims(eeg_features_dim_padded, image_size, latent_dim):
    return [
        (eeg_features_dim_padded, 512),
        (512, 256),
        (256, latent_dim),
        (latent_dim, 256),
        (256, 512),
        (512, 1024),
        (1024, image_size * image_size),
    ]


def _bias_slices(dims):
    """(offset, size) pairs into the concatenated bias vector."""
    slices, off = [], 0
    for _, fan_out in dims:
        slices.append((off, fan_out))
        off += fan_out
    return tuple(slices), off


def eeg_gan_kernel(
    x_ref,
    w1_ref, w2_ref, w3_ref, w4_ref, w5_ref, w6_ref, w7_ref,   # bf16 weights (in, out)
    b_ref,                                                     # (1, sum(out)) f32 biases
    out_ref,
    *,
    bias_slices,
):
    """Fused 7-layer MLP chain for one batch tile; all operands resident in VMEM.

    bf16 matmul operands, f32 MXU accumulation + bias add, bf16 LeakyReLU
    (max-form), f32 tanh on the two tanh layers.
    """

    def dense(h_bf16, w_ref, layer):
        off, n = bias_slices[layer]
        b = b_ref[:, off:off + n]                              # lane-aligned static slice
        return jnp.dot(h_bf16, w_ref[...],
                       preferred_element_type=jnp.float32) + b

    def lrelu_bf16(z_f32):
        z = z_f32.astype(jnp.bfloat16)
        return jnp.maximum(z, 0.2 * z)                         # 2 VPU ops, slope 0.2

    x = x_ref[...].astype(jnp.bfloat16)

    # --- eeg_to_latent --- (Dropout(0.3) is identity at inference)
    h = lrelu_bf16(dense(x, w1_ref, 0))
    h = lrelu_bf16(dense(h, w2_ref, 1))
    latent = jnp.tanh(dense(h, w3_ref, 2))                     # f32

    # --- generator ---
    g = lrelu_bf16(dense(latent.astype(jnp.bfloat16), w4_ref, 3))
    g = lrelu_bf16(dense(g, w5_ref, 4))
    g = lrelu_bf16(dense(g, w6_ref, 5))
    g = jnp.tanh(dense(g, w7_ref, 6))                          # f32

    out_ref[...] = g.astype(out_ref.dtype)


def init_params(key, eeg_features_dim, image_size=32, latent_dim=128):
    """PyTorch-Linear-like init (uniform +/- 1/sqrt(fan_in)).

    Returns (weights, bias_cat):
      weights: 7 bf16 arrays stored as (in_features, out_features); w1's fan_in
               is zero-padded up to a multiple of 128 (lane alignment).
      bias_cat: single (1, sum(out_features)) float32 array of concatenated biases.
    """
    assert latent_dim % _LANE == 0, "latent_dim must be a multiple of 128"
    assert (image_size * image_size) % _LANE == 0
    f_pad = max(_LANE, _round_up(eeg_features_dim, _LANE))
    dims = _layer_dims(f_pad, image_size, latent_dim)
    true_fan_ins = [eeg_features_dim] + [d[0] for d in dims[1:]]

    weights, biases = [], []
    for (fan_in_padded, fan_out), fan_in in zip(dims, true_fan_ins):
        key, kw, kb = jax.random.split(key, 3)
        bound = 1.0 / math.sqrt(fan_in)
        w = jax.random.uniform(kw, (fan_in, fan_out), jnp.float32, -bound, bound)
        if fan_in_padded != fan_in:
            w = jnp.pad(w, ((0, fan_in_padded - fan_in), (0, 0)))  # zero rows: no effect
        b = jax.random.uniform(kb, (1, fan_out), jnp.float32, -bound, bound)
        weights.append(w.astype(jnp.bfloat16))
        biases.append(b)
    bias_cat = jnp.concatenate(biases, axis=1)
    return weights, bias_cat


def _choose_block_batch(batch):
    # Small batches: single full tile (no MXU row-padding across steps, no
    # duplicated weight DMA across v7x's 2 TCs).  Large batches: 256-row tiles.
    if batch <= 256:
        return batch
    return 256


def eeg_to_image_gan_forward(eeg_features, weights, bias_cat, image_size=32,
                             latent_dim=128, block_batch=None,
                             out_dtype=jnp.float32):
    """Runs the fused Pallas kernel and reshapes to NCHW (B, 1, H, W)."""
    B, F = eeg_features.shape
    out_dim = image_size * image_size
    f_pad = weights[0].shape[0]
    assert f_pad % _LANE == 0 and f_pad >= F
    assert latent_dim % _LANE == 0, "latent_dim must be a multiple of 128"
    assert out_dim % _LANE == 0

    dims = _layer_dims(f_pad, image_size, latent_dim)
    bias_slices, total_bias = _bias_slices(dims)
    assert bias_cat.shape == (1, total_bias)
    assert all(off % _LANE == 0 and n % _LANE == 0 for off, n in bias_slices), \
        "bias slices must be lane-aligned"

    if block_batch is None:
        block_batch = _choose_block_batch(B)

    # Pad feature dim to the padded weight fan_in and batch up to a tile multiple.
    x = eeg_features
    if f_pad != F:
        x = jnp.pad(x, ((0, 0), (0, f_pad - F)))
    b_pad = _round_up(B, block_batch)
    if b_pad != B:
        x = jnp.pad(x, ((0, b_pad - B), (0, 0)))

    grid = (b_pad // block_batch,)

    # x / out are tiled over the batch; weights & biases use a constant block
    # index and a single pipeline buffer (Buffered(1)) so they are DMA'd once
    # and stay resident across batch tiles with no double-buffer waste.
    in_specs = [pl.BlockSpec((block_batch, f_pad), lambda i: (i, 0))]
    for w in weights:
        in_specs.append(
            pl.BlockSpec(w.shape, lambda i: (0, 0), pipeline_mode=pl.Buffered(1)))
    in_specs.append(
        pl.BlockSpec(bias_cat.shape, lambda i: (0, 0), pipeline_mode=pl.Buffered(1)))
    out_spec = pl.BlockSpec((block_batch, out_dim), lambda i: (i, 0))

    kernel = functools.partial(eeg_gan_kernel, bias_slices=bias_slices)

    flat = pl.pallas_call(
        kernel,
        out_shape=jax.ShapeDtypeStruct((b_pad, out_dim), out_dtype),
        grid_spec=pl.GridSpec(grid=grid, in_specs=in_specs, out_specs=out_spec),
        compiler_params=pltpu.CompilerParams(
            dimension_semantics=("parallel",),      # batch tiles are independent
            vmem_limit_bytes=48 * 1024 * 1024,      # fits v7x physical 64 MiB
        ),
    )(x, *weights, bias_cat)

    if b_pad != B:
        flat = flat[:B]
    # Glue: NCHW reshape (same as .view(-1, 1, H, W) in PyTorch).
    return flat.reshape(-1, 1, image_size, image_size)


def _reference_forward(x, weights, bias_cat, image_size, latent_dim):
    """Pure-JAX reference with identical numerics (bf16 operands, f32 acc)."""
    F = x.shape[1]
    f_pad = weights[0].shape[0]
    if f_pad != F:
        x = jnp.pad(x, ((0, 0), (0, f_pad - F)))
    dims = _layer_dims(f_pad, image_size, latent_dim)
    bias_slices, _ = _bias_slices(dims)

    def dense(h_bf16, layer):
        off, n = bias_slices[layer]
        return jnp.dot(h_bf16, weights[layer],
                       preferred_element_type=jnp.float32) + bias_cat[:, off:off + n]

    def lrelu(z):
        z = z.astype(jnp.bfloat16)
        return jnp.maximum(z, 0.2 * z)

    h = lrelu(dense(x.astype(jnp.bfloat16), 0))
    h = lrelu(dense(h, 1))
    latent = jnp.tanh(dense(h, 2))
    g = lrelu(dense(latent.astype(jnp.bfloat16), 3))
    g = lrelu(dense(g, 4))
    g = lrelu(dense(g, 5))
    g = jnp.tanh(dense(g, 6))
    return g.reshape(-1, 1, image_size, image_size)


if __name__ == "__main__":
    key = jax.random.PRNGKey(0)
    k_x, k_p = jax.random.split(key)

    # Small, TPU-friendly shapes; B=16 -> a single full-batch tile (grid=(1,)).
    B = 16
    EEG_FEATURES_DIM = 64
    IMAGE_SIZE = 32
    LATENT_DIM = 128

    eeg_features = jax.random.normal(k_x, (B, EEG_FEATURES_DIM), jnp.float32)
    weights, bias_cat = init_params(k_p, EEG_FEATURES_DIM, IMAGE_SIZE, LATENT_DIM)

    out = eeg_to_image_gan_forward(
        eeg_features, weights, bias_cat,
        image_size=IMAGE_SIZE, latent_dim=LATENT_DIM,
    )
    out = jax.block_until_ready(out)

    assert out.shape == (B, 1, IMAGE_SIZE, IMAGE_SIZE), out.shape
    assert out.dtype == jnp.float32
    # Final layer is Tanh, so values must lie in [-1, 1].
    assert bool(jnp.all(jnp.abs(out) <= 1.0 + 1e-6))

    # Numerical check against a pure-JAX reference with identical bf16 weights.
    ref = _reference_forward(eeg_features, weights, bias_cat, IMAGE_SIZE, LATENT_DIM)
    ref = jax.block_until_ready(ref)
    assert bool(jnp.allclose(out, ref, atol=2e-2, rtol=2e-2)), \
        float(jnp.max(jnp.abs(out - ref)))

    print("KERNEL_OK")
</pallas_src>

<mosaic_0001>
module attributes {stable_mosaic.version = 11 : i64} {
  func.func @eeg_gan_kernel(%arg0: i32, %arg1: memref<16x128xf32, #tpu.memory_space<vmem>>, %arg2: memref<128x512xbf16, #tpu.memory_space<vmem>>, %arg3: memref<512x256xbf16, #tpu.memory_space<vmem>>, %arg4: memref<256x128xbf16, #tpu.memory_space<vmem>>, %arg5: memref<128x256xbf16, #tpu.memory_space<vmem>>, %arg6: memref<256x512xbf16, #tpu.memory_space<vmem>>, %arg7: memref<512x1024xbf16, #tpu.memory_space<vmem>>, %arg8: memref<1024x1024xbf16, #tpu.memory_space<vmem>>, %arg9: memref<1x3712xf32, #tpu.memory_space<vmem>>, %arg10: memref<16x1024xf32, #tpu.memory_space<vmem>>) attributes {dimension_semantics = [#tpu.dimension_semantics<parallel>], iteration_bounds = array<i64: 1>, scalar_prefetch = 0 : i64, scratch_operands = 0 : i64, tpu.core_type = #tpu.core_type<tc>, window_params = [{transform_indices = @transform_0, window_bounds = array<i64: 16, 128>}, {pipeline_mode = #tpu.pipeline_mode<synchronous>, transform_indices = @transform_1, window_bounds = array<i64: 128, 512>}, {pipeline_mode = #tpu.pipeline_mode<synchronous>, transform_indices = @transform_2, window_bounds = array<i64: 512, 256>}, {pipeline_mode = #tpu.pipeline_mode<synchronous>, transform_indices = @transform_3, window_bounds = array<i64: 256, 128>}, {pipeline_mode = #tpu.pipeline_mode<synchronous>, transform_indices = @transform_4, window_bounds = array<i64: 128, 256>}, {pipeline_mode = #tpu.pipeline_mode<synchronous>, transform_indices = @transform_5, window_bounds = array<i64: 256, 512>}, {pipeline_mode = #tpu.pipeline_mode<synchronous>, transform_indices = @transform_6, window_bounds = array<i64: 512, 1024>}, {pipeline_mode = #tpu.pipeline_mode<synchronous>, transform_indices = @transform_7, window_bounds = array<i64: 1024, 1024>}, {pipeline_mode = #tpu.pipeline_mode<synchronous>, transform_indices = @transform_8, window_bounds = array<i64: 1, 3712>}, {transform_indices = @transform_9, window_bounds = array<i64: 16, 1024>}]} {
    %c0 = arith.constant 0 : index
    %c0_0 = arith.constant 0 : index
    %0 = vector.load %arg1[%c0, %c0_0] : memref<16x128xf32, #tpu.memory_space<vmem>>, vector<16x128xf32>
    %1 = arith.truncf %0 : vector<16x128xf32> to vector<16x128xbf16>
    %c0_1 = arith.constant 0 : index
    %c0_2 = arith.constant 0 : index
    %2 = vector.load %arg9[%c0_1, %c0_2] : memref<1x3712xf32, #tpu.memory_space<vmem>>, vector<1x512xf32>
    %c0_3 = arith.constant 0 : index
    %c0_4 = arith.constant 0 : index
    %3 = vector.load %arg2[%c0_3, %c0_4] : memref<128x512xbf16, #tpu.memory_space<vmem>>, vector<128x512xbf16>
    %cst = arith.constant dense<0.000000e+00> : vector<16x512xf32>
    %4 = tpu.matmul %1, %3, %cst {dimension_numbers = #tpu.dot_dimension_numbers<[1], [0], [0], [1], [0, 0, 1, 1], [], []>} : vector<16x128xbf16>, vector<128x512xbf16>, vector<16x512xf32> -> vector<16x512xf32>
    %5 = vector.broadcast %2 : vector<1x512xf32> to vector<16x512xf32>
    %6 = arith.addf %4, %5 : vector<16x512xf32>
    %7 = arith.truncf %6 : vector<16x512xf32> to vector<16x512xbf16>
    %cst_5 = arith.constant 2.001950e-01 : bf16
    %8 = vector.broadcast %cst_5 : bf16 to vector<16x512xbf16>
    %9 = arith.mulf %8, %7 : vector<16x512xbf16>
    %10 = arith.maximumf %7, %9 : vector<16x512xbf16>
    %c0_6 = arith.constant 0 : index
    %c512 = arith.constant 512 : index
    %11 = vector.load %arg9[%c0_6, %c512] : memref<1x3712xf32, #tpu.memory_space<vmem>>, vector<1x256xf32>
    %c0_7 = arith.constant 0 : index
    %c0_8 = arith.constant 0 : index
    %12 = vector.load %arg3[%c0_7, %c0_8] : memref<512x256xbf16, #tpu.memory_space<vmem>>, vector<512x256xbf16>
    %cst_9 = arith.constant dense<0.000000e+00> : vector<16x256xf32>
    %13 = tpu.matmul %10, %12, %cst_9 {dimension_numbers = #tpu.dot_dimension_numbers<[1], [0], [0], [1], [0, 0, 1, 1], [], []>} : vector<16x512xbf16>, vector<512x256xbf16>, vector<16x256xf32> -> vector<16x256xf32>
    %14 = vector.broadcast %11 : vector<1x256xf32> to vector<16x256xf32>
    %15 = arith.addf %13, %14 : vector<16x256xf32>
    %16 = arith.truncf %15 : vector<16x256xf32> to vector<16x256xbf16>
    %cst_10 = arith.constant 2.001950e-01 : bf16
    %17 = vector.broadcast %cst_10 : bf16 to vector<16x256xbf16>
    %18 = arith.mulf %17, %16 : vector<16x256xbf16>
    %19 = arith.maximumf %16, %18 : vector<16x256xbf16>
    %c0_11 = arith.constant 0 : index
    %c768 = arith.constant 768 : index
    %20 = vector.load %arg9[%c0_11, %c768] : memref<1x3712xf32, #tpu.memory_space<vmem>>, vector<1x128xf32>
    %c0_12 = arith.constant 0 : index
    %c0_13 = arith.constant 0 : index
    %21 = vector.load %arg4[%c0_12, %c0_13] : memref<256x128xbf16, #tpu.memory_space<vmem>>, vector<256x128xbf16>
    %cst_14 = arith.constant dense<0.000000e+00> : vector<16x128xf32>
    %22 = tpu.matmul %19, %21, %cst_14 {dimension_numbers = #tpu.dot_dimension_numbers<[1], [0], [0], [1], [0, 0, 1, 1], [], []>} : vector<16x256xbf16>, vector<256x128xbf16>, vector<16x128xf32> -> vector<16x128xf32>
    %23 = vector.broadcast %20 : vector<1x128xf32> to vector<16x128xf32>
    %24 = arith.addf %22, %23 : vector<16x128xf32>
    %25 = math.tanh %24 : vector<16x128xf32>
    %26 = arith.truncf %25 : vector<16x128xf32> to vector<16x128xbf16>
    %c0_15 = arith.constant 0 : index
    %c896 = arith.constant 896 : index
    %27 = vector.load %arg9[%c0_15, %c896] : memref<1x3712xf32, #tpu.memory_space<vmem>>, vector<1x256xf32>
    %c0_16 = arith.constant 0 : index
    %c0_17 = arith.constant 0 : index
    %28 = vector.load %arg5[%c0_16, %c0_17] : memref<128x256xbf16, #tpu.memory_space<vmem>>, vector<128x256xbf16>
    %cst_18 = arith.constant dense<0.000000e+00> : vector<16x256xf32>
    %29 = tpu.matmul %26, %28, %cst_18 {dimension_numbers = #tpu.dot_dimension_numbers<[1], [0], [0], [1], [0, 0, 1, 1], [], []>} : vector<16x128xbf16>, vector<128x256xbf16>, vector<16x256xf32> -> vector<16x256xf32>
    %30 = vector.broadcast %27 : vector<1x256xf32> to vector<16x256xf32>
    %31 = arith.addf %29, %30 : vector<16x256xf32>
    %32 = arith.truncf %31 : vector<16x256xf32> to vector<16x256xbf16>
    %cst_19 = arith.constant 2.001950e-01 : bf16
    %33 = vector.broadcast %cst_19 : bf16 to vector<16x256xbf16>
    %34 = arith.mulf %33, %32 : vector<16x256xbf16>
    %35 = arith.maximumf %32, %34 : vector<16x256xbf16>
    %c0_20 = arith.constant 0 : index
    %c1152 = arith.constant 1152 : index
    %36 = vector.load %arg9[%c0_20, %c1152] : memref<1x3712xf32, #tpu.memory_space<vmem>>, vector<1x512xf32>
    %c0_21 = arith.constant 0 : index
    %c0_22 = arith.constant 0 : index
    %37 = vector.load %arg6[%c0_21, %c0_22] : memref<256x512xbf16, #tpu.memory_space<vmem>>, vector<256x512xbf16>
    %cst_23 = arith.constant dense<0.000000e+00> : vector<16x512xf32>
    %38 = tpu.matmul %35, %37, %cst_23 {dimension_numbers = #tpu.dot_dimension_numbers<[1], [0], [0], [1], [0, 0, 1, 1], [], []>} : vector<16x256xbf16>, vector<256x512xbf16>, vector<16x512xf32> -> vector<16x512xf32>
    %39 = vector.broadcast %36 : vector<1x512xf32> to vector<16x512xf32>
    %40 = arith.addf %38, %39 : vector<16x512xf32>
    %41 = arith.truncf %40 : vector<16x512xf32> to vector<16x512xbf16>
    %cst_24 = arith.constant 2.001950e-01 : bf16
    %42 = vector.broadcast %cst_24 : bf16 to vector<16x512xbf16>
    %43 = arith.mulf %42, %41 : vector<16x512xbf16>
    %44 = arith.maximumf %41, %43 : vector<16x512xbf16>
    %c0_25 = arith.constant 0 : index
    %c1664 = arith.constant 1664 : index
    %45 = vector.load %arg9[%c0_25, %c1664] : memref<1x3712xf32, #tpu.memory_space<vmem>>, vector<1x1024xf32>
    %c0_26 = arith.constant 0 : index
    %c0_27 = arith.constant 0 : index
    %46 = vector.load %arg7[%c0_26, %c0_27] : memref<512x1024xbf16, #tpu.memory_space<vmem>>, vector<512x1024xbf16>
    %cst_28 = arith.constant dense<0.000000e+00> : vector<16x1024xf32>
    %47 = tpu.matmul %44, %46, %cst_28 {dimension_numbers = #tpu.dot_dimension_numbers<[1], [0], [0], [1], [0, 0, 1, 1], [], []>} : vector<16x512xbf16>, vector<512x1024xbf16>, vector<16x1024xf32> -> vector<16x1024xf32>
    %48 = vector.broadcast %45 : vector<1x1024xf32> to vector<16x1024xf32>
    %49 = arith.addf %47, %48 : vector<16x1024xf32>
    %50 = arith.truncf %49 : vector<16x1024xf32> to vector<16x1024xbf16>
    %cst_29 = arith.constant 2.001950e-01 : bf16
    %51 = vector.broadcast %cst_29 : bf16 to vector<16x1024xbf16>
    %52 = arith.mulf %51, %50 : vector<16x1024xbf16>
    %53 = arith.maximumf %50, %52 : vector<16x1024xbf16>
    %c0_30 = arith.constant 0 : index
    %c2688 = arith.constant 2688 : index
    %54 = vector.load %arg9[%c0_30, %c2688] : memref<1x3712xf32, #tpu.memory_space<vmem>>, vector<1x1024xf32>
    %c0_31 = arith.constant 0 : index
    %c0_32 = arith.constant 0 : index
    %55 = vector.load %arg8[%c0_31, %c0_32] : memref<1024x1024xbf16, #tpu.memory_space<vmem>>, vector<1024x1024xbf16>
    %cst_33 = arith.constant dense<0.000000e+00> : vector<16x1024xf32>
    %56 = tpu.matmul %53, %55, %cst_33 {dimension_numbers = #tpu.dot_dimension_numbers<[1], [0], [0], [1], [0, 0, 1, 1], [], []>} : vector<16x1024xbf16>, vector<1024x1024xbf16>, vector<16x1024xf32> -> vector<16x1024xf32>
    %57 = vector.broadcast %54 : vector<1x1024xf32> to vector<16x1024xf32>
    %58 = arith.addf %56, %57 : vector<16x1024xf32>
    %59 = math.tanh %58 : vector<16x1024xf32>
    %c0_34 = arith.constant 0 : index
    %c0_35 = arith.constant 0 : index
    %60 = vector.load %arg10[%c0_34, %c0_35] : memref<16x1024xf32, #tpu.memory_space<vmem>>, vector<16x1024xf32>
    tpu.vector_store %arg10[%c0_34, %c0_35], %59 {strides = array<i32>} : memref<16x1024xf32, #tpu.memory_space<vmem>>, vector<16x1024xf32>,
    return
  }
  func.func @transform_0(%arg0: i32) -> (i32, i32) {
    %c0_i32 = arith.constant 0 : i32
    %c0_i32_0 = arith.constant 0 : i32
    return %arg0, %c0_i32 : i32, i32
  }
  func.func @transform_1(%arg0: i32) -> (i32, i32) {
    %c0_i32 = arith.constant 0 : i32
    %c0_i32_0 = arith.constant 0 : i32
    %c0_i32_1 = arith.constant 0 : i32
    return %c0_i32, %c0_i32_0 : i32, i32
  }
  func.func @transform_2(%arg0: i32) -> (i32, i32) {
    %c0_i32 = arith.constant 0 : i32
    %c0_i32_0 = arith.constant 0 : i32
    %c0_i32_1 = arith.constant 0 : i32
    return %c0_i32, %c0_i32_0 : i32, i32
  }
  func.func @transform_3(%arg0: i32) -> (i32, i32) {
    %c0_i32 = arith.constant 0 : i32
    %c0_i32_0 = arith.constant 0 : i32
    %c0_i32_1 = arith.constant 0 : i32
    return %c0_i32, %c0_i32_0 : i32, i32
  }
  func.func @transform_4(%arg0: i32) -> (i32, i32) {
    %c0_i32 = arith.constant 0 : i32
    %c0_i32_0 = arith.constant 0 : i32
    %c0_i32_1 = arith.constant 0 : i32
    return %c0_i32, %c0_i32_0 : i32, i32
  }
  func.func @transform_5(%arg0: i32) -> (i32, i32) {
    %c0_i32 = arith.constant 0 : i32
    %c0_i32_0 = arith.constant 0 : i32
    %c0_i32_1 = arith.constant 0 : i32
    return %c0_i32, %c0_i32_0 : i32, i32
  }
  func.func @transform_6(%arg0: i32) -> (i32, i32) {
    %c0_i32 = arith.constant 0 : i32
    %c0_i32_0 = arith.constant 0 : i32
    %c0_i32_1 = arith.constant 0 : i32
    return %c0_i32, %c0_i32_0 : i32, i32
  }
  func.func @transform_7(%arg0: i32) -> (i32, i32) {
    %c0_i32 = arith.constant 0 : i32
    %c0_i32_0 = arith.constant 0 : i32
    %c0_i32_1 = arith.constant 0 : i32
    return %c0_i32, %c0_i32_0 : i32, i32
  }
  func.func @transform_8(%arg0: i32) -> (i32, i32) {
    %c0_i32 = arith.constant 0 : i32
    %c0_i32_0 = arith.constant 0 : i32
    %c0_i32_1 = arith.constant 0 : i32
    return %c0_i32, %c0_i32_0 : i32, i32
  }
  func.func @transform_9(%arg0: i32) -> (i32, i32) {
    %c0_i32 = arith.constant 0 : i32
    %c0_i32_0 = arith.constant 0 : i32
    return %arg0, %c0_i32 : i32, i32
  }
}

</mosaic_0001>

<llo_original>
// kernel: tpu_custom_call.1
$region0: #{tpu_custom_call.1}
  #allocation0 [shape = 'u32[]', space=smem, size = 0x4, offset = 0x4, fixed_abs, tag = 'smem constant byte address 0x4 - core index']
  #allocation1 [shape = 'u32[144,128]{1,0:T(1,128)}', space=vmem, size = 0x12000, scoped, tag = 'internal scratch']
  %s0 = inlined_call_operand.hbm [shape: f32[16,128], index: 0, kind: input, shape index: {}]
  %s1 = inlined_call_operand.hbm [shape: bf16[128,512], index: 1, kind: input, shape index: {}]
  %s2 = inlined_call_operand.hbm [shape: bf16[512,256], index: 2, kind: input, shape index: {}]
  %s3 = inlined_call_operand.hbm [shape: bf16[256,128], index: 3, kind: input, shape index: {}]
  %s4 = inlined_call_operand.hbm [shape: bf16[128,256], index: 4, kind: input, shape index: {}]
  %s5 = inlined_call_operand.hbm [shape: bf16[256,512], index: 5, kind: input, shape index: {}]
  %s6 = inlined_call_operand.hbm [shape: bf16[512,1024], index: 6, kind: input, shape index: {}]
  %s7 = inlined_call_operand.hbm [shape: bf16[1024,1024], index: 7, kind: input, shape index: {}]
  %s8 = inlined_call_operand.hbm [shape: f32[1,3712], index: 8, kind: input, shape index: {}]
  %s9 = inlined_call_operand.hbm [shape: f32[16,1024], index: 9, kind: output, shape index: {}]
  %s10 = sld [smem:[#allocation0]]
  $region82: #{tpu_custom_call.1} parent=0
    _
  %s12 = ssub.s32 1, %s10
  %s13 = scalar_select 0, %s12, %s10
  $region1: #{tpu_custom_call.1} parent=0
    #allocation2 [shape = 'u8[8192]{0}', space=vmem, size = 0x2000, scoped, tag = 'input window, operand 0, single buffered']
    #allocation3 [shape = 's32[1]{0}', space=sflag, size = 0x4, scoped, tag = 'scoped memory for tpu_custom_call.1']
    #allocation4 [shape = 's32[1]{0}', space=sflag, size = 0x4, scoped, tag = 'scoped memory for tpu_custom_call.1']
    #allocation5 [shape = 'u8[131072]{0}', space=vmem, size = 0x20000, scoped, tag = 'input window, operand 1, single buffered']
    #allocation6 [shape = 's32[1]{0}', space=sflag, size = 0x4, scoped, tag = 'scoped memory for tpu_custom_call.1']
    #allocation7 [shape = 'u8[262144]{0}', space=vmem, size = 0x40000, scoped, tag = 'input window, operand 2, single buffered']
    #allocation8 [shape = 'u8[65536]{0}', space=vmem, size = 0x10000, scoped, tag = 'input window, operand 3, single buffered']
    #allocation9 [shape = 's32[1]{0}', space=sflag, size = 0x4, scoped, tag = 'scoped memory for tpu_custom_call.1']
    #allocation10 [shape = 'u8[65536]{0}', space=vmem, size = 0x10000, scoped, tag = 'input window, operand 4, single buffered']
    #allocation11 [shape = 'u8[262144]{0}', space=vmem, size = 0x40000, scoped, tag = 'input window, operand 5, single buffered']
    #allocation12 [shape = 's32[1]{0}', space=sflag, size = 0x4, scoped, tag = 'scoped memory for tpu_custom_call.1']
    #allocation13 [shape = 'u8[1048576]{0}', space=vmem, size = 0x100000, scoped, tag = 'input window, operand 6, single buffered']
    #allocation14 [shape = 'u8[2097152]{0}', space=vmem, size = 0x200000, scoped, tag = 'input window, operand 7, single buffered']
    #allocation15 [shape = 's32[1]{0}', space=sflag, size = 0x4, scoped, tag = 'scoped memory for tpu_custom_call.1']
    #allocation16 [shape = 'u8[14848]{0}', space=vmem, size = 0x3c00, scoped, tag = 'input window, operand 8, single buffered']
    #allocation17 [shape = 'u8[65536]{0}', space=vmem, size = 0x10000, scoped, tag = 'output window, operand 0, single buffered']
    %14 = vsyncpa [#allocation3], 0
    %15 = vsyncpa [#allocation6], 0
    %16 = vsyncpa [#allocation9], 0
    %17 = vsyncpa [#allocation12], 0
    %18 = vsyncpa [#allocation15], 0
    %19 = vsyncpa [#allocation4], 0
    // Predicated region
    $region2: #{tpu_custom_call.1} parent=1 // pred_check
      _
    $region3: #{tpu_custom_call.1} parent=1 // pred_check_branch
      %21 = sbr.rel (0) target = $region5
    $region4: #{tpu_custom_call.1} parent=1 // pred_region
      %s23 = ssub.s32 256, 256
      %24 = vsyncadd [#allocation3], %s23
      %s25 = sshll.u32 [#allocation2], 4
      %s26 = int_to_ptr.vmem [resolvable:$true] %s25
      %31 = dma.hbm_to_vmem [thread:$0]  %s0, 256, %s26, [#allocation3], 128, 128, 8
    $region5: #{tpu_custom_call.1} parent=1 // pred_fallthru
      _
    // Predicated region
    $region6: #{tpu_custom_call.1} parent=1 // pred_check
      _
    $region7: #{tpu_custom_call.1} parent=1 // pred_check_branch
      %33 = sbr.rel (0) target = $region9
    $region8: #{tpu_custom_call.1} parent=1 // pred_region
      %s35 = ssub.s32 4096, 4096
      %36 = vsyncadd [#allocation6], %s35
      %s37 = sshll.u32 [#allocation5], 4
      %s38 = int_to_ptr.vmem [resolvable:$true] %s37
      %43 = dma.hbm_to_vmem [thread:$0]  %s1, 4096, %s38, [#allocation6], 256, 256, 16
    $region9: #{tpu_custom_call.1} parent=1 // pred_fallthru
      _
    // Predicated region
    $region10: #{tpu_custom_call.1} parent=1 // pred_check
      _
    $region11: #{tpu_custom_call.1} parent=1 // pred_check_branch
      %45 = sbr.rel (0) target = $region13
    $region12: #{tpu_custom_call.1} parent=1 // pred_region
      %s47 = ssub.s32 8192, 8192
      %48 = vsyncadd [#allocation6], %s47
      %s49 = sshll.u32 [#allocation7], 4
      %s50 = int_to_ptr.vmem [resolvable:$true] %s49
      %55 = dma.hbm_to_vmem [thread:$0]  %s2, 8192, %s50, [#allocation6], 128, 128, 8
    $region13: #{tpu_custom_call.1} parent=1 // pred_fallthru
      _
    // Predicated region
    $region14: #{tpu_custom_call.1} parent=1 // pred_check
      _
    $region15: #{tpu_custom_call.1} parent=1 // pred_check_branch
      %57 = sbr.rel (0) target = $region17
    $region16: #{tpu_custom_call.1} parent=1 // pred_region
      %s59 = ssub.s32 2048, 2048
      %60 = vsyncadd [#allocation9], %s59
      %s61 = sshll.u32 [#allocation8], 4
      %s62 = int_to_ptr.vmem [resolvable:$true] %s61
      %67 = dma.hbm_to_vmem [thread:$0]  %s3, 2048, %s62, [#allocation9], 64, 64, 4
    $region17: #{tpu_custom_call.1} parent=1 // pred_fallthru
      _
    // Predicated region
    $region18: #{tpu_custom_call.1} parent=1 // pred_check
      _
    $region19: #{tpu_custom_call.1} parent=1 // pred_check_branch
      %69 = sbr.rel (0) target = $region21
    $region20: #{tpu_custom_call.1} parent=1 // pred_region
      %s71 = ssub.s32 2048, 2048
      %72 = vsyncadd [#allocation9], %s71
      %s73 = sshll.u32 [#allocation10], 4
      %s74 = int_to_ptr.vmem [resolvable:$true] %s73
      %79 = dma.hbm_to_vmem [thread:$0]  %s4, 2048, %s74, [#allocation9], 128, 128, 8
    $region21: #{tpu_custom_call.1} parent=1 // pred_fallthru
      _
    // Predicated region
    $region22: #{tpu_custom_call.1} parent=1 // pred_check
      _
    $region23: #{tpu_custom_call.1} parent=1 // pred_check_branch
      %81 = sbr.rel (0) target = $region25
    $region24: #{tpu_custom_call.1} parent=1 // pred_region
      %s83 = ssub.s32 8192, 8192
      %84 = vsyncadd [#allocation12], %s83
      %s85 = sshll.u32 [#allocation11], 4
      %s86 = int_to_ptr.vmem [resolvable:$true] %s85
      %91 = dma.hbm_to_vmem [thread:$0]  %s5, 8192, %s86, [#allocation12], 256, 256, 16
    $region25: #{tpu_custom_call.1} parent=1 // pred_fallthru
      _
    // Predicated region
    $region26: #{tpu_custom_call.1} parent=1 // pred_check
      _
    $region27: #{tpu_custom_call.1} parent=1 // pred_check_branch
      %93 = sbr.rel (0) target = $region29
    $region28: #{tpu_custom_call.1} parent=1 // pred_region
      %s95 = ssub.s32 32768, 32768
      %96 = vsyncadd [#allocation12], %s95
      %s97 = sshll.u32 [#allocation13], 4
      %s98 = int_to_ptr.vmem [resolvable:$true] %s97
      %103 = dma.hbm_to_vmem [thread:$0]  %s6, 32768, %s98, [#allocation12], 512, 512, 32
    $region29: #{tpu_custom_call.1} parent=1 // pred_fallthru
      _
    // Predicated region
    $region30: #{tpu_custom_call.1} parent=1 // pred_check
      _
    $region31: #{tpu_custom_call.1} parent=1 // pred_check_branch
      %105 = sbr.rel (0) target = $region33
    $region32: #{tpu_custom_call.1} parent=1 // pred_region
      %s107 = ssub.s32 65536, 65536
      %108 = vsyncadd [#allocation15], %s107
      %s109 = sshll.u32 [#allocation14], 4
      %s110 = int_to_ptr.vmem [resolvable:$true] %s109
      %115 = dma.hbm_to_vmem [thread:$0]  %s7, 65536, %s110, [#allocation15], 512, 512, 32
    $region33: #{tpu_custom_call.1} parent=1 // pred_fallthru
      _
    // Predicated region
    $region34: #{tpu_custom_call.1} parent=1 // pred_check
      _
    $region35: #{tpu_custom_call.1} parent=1 // pred_check_branch
      %117 = sbr.rel (0) target = $region37
    $region36: #{tpu_custom_call.1} parent=1 // pred_region
      %s119 = ssub.s32 464, 464
      %120 = vsyncadd [#allocation15], %s119
      %s122 = sshll.u32 [#allocation16], 4
      %s123 = int_to_ptr.vmem [resolvable:$true] %s122
      %125 = dma.hbm_to_vmem [thread:$0]  %s8, 464, %s123, [#allocation15]
    $region37: #{tpu_custom_call.1} parent=1 // pred_fallthru
      _
    // Predicated region
    $region38: #{tpu_custom_call.1} parent=1 // pred_check
      _
    $region39: #{tpu_custom_call.1} parent=1 // pred_check_branch
      %127 = sbr.rel (0) target = $region41
    $region40: #{tpu_custom_call.1} parent=1 // pred_region
      %128 = dma.done [#allocation3], 256
    $region41: #{tpu_custom_call.1} parent=1 // pred_fallthru
      _
    // Predicated region
    $region42: #{tpu_custom_call.1} parent=1 // pred_check
      _
    $region43: #{tpu_custom_call.1} parent=1 // pred_check_branch
      %130 = sbr.rel (0) target = $region45
    $region44: #{tpu_custom_call.1} parent=1 // pred_region
      %131 = dma.done [#allocation6], 4096
    $region45: #{tpu_custom_call.1} parent=1 // pred_fallthru
      _
    // Predicated region
    $region46: #{tpu_custom_call.1} parent=1 // pred_check
      _
    $region47: #{tpu_custom_call.1} parent=1 // pred_check_branch
      %133 = sbr.rel (0) target = $region49
    $region48: #{tpu_custom_call.1} parent=1 // pred_region
      %134 = dma.done [#allocation6], 8192
    $region49: #{tpu_custom_call.1} parent=1 // pred_fallthru
      _
    // Predicated region
    $region50: #{tpu_custom_call.1} parent=1 // pred_check
      _
    $region51: #{tpu_custom_call.1} parent=1 // pred_check_branch
      %136 = sbr.rel (0) target = $region53
    $region52: #{tpu_custom_call.1} parent=1 // pred_region
      %137 = dma.done [#allocation9], 2048
    $region53: #{tpu_custom_call.1} parent=1 // pred_fallthru
      _
    // Predicated region
    $region54: #{tpu_custom_call.1} parent=1 // pred_check
      _
    $region55: #{tpu_custom_call.1} parent=1 // pred_check_branch
      %139 = sbr.rel (0) target = $region57
    $region56: #{tpu_custom_call.1} parent=1 // pred_region
      %140 = dma.done [#allocation9], 2048
    $region57: #{tpu_custom_call.1} parent=1 // pred_fallthru
      _
    // Predicated region
    $region58: #{tpu_custom_call.1} parent=1 // pred_check
      _
    $region59: #{tpu_custom_call.1} parent=1 // pred_check_branch
      %142 = sbr.rel (0) target = $region61
    $region60: #{tpu_custom_call.1} parent=1 // pred_region
      %143 = dma.done [#allocation12], 8192
    $region61: #{tpu_custom_call.1} parent=1 // pred_fallthru
      _
    // Predicated region
    $region62: #{tpu_custom_call.1} parent=1 // pred_check
      _
    $region63: #{tpu_custom_call.1} parent=1 // pred_check_branch
      %145 = sbr.rel (0) target = $region65
    $region64: #{tpu_custom_call.1} parent=1 // pred_region
      %146 = dma.done [#allocation12], 32768
    $region65: #{tpu_custom_call.1} parent=1 // pred_fallthru
      _
    // Predicated region
    $region66: #{tpu_custom_call.1} parent=1 // pred_check
      _
    $region67: #{tpu_custom_call.1} parent=1 // pred_check_branch
      %148 = sbr.rel (0) target = $region69
    $region68: #{tpu_custom_call.1} parent=1 // pred_region
      %149 = dma.done [#allocation15], 65536
    $region69: #{tpu_custom_call.1} parent=1 // pred_fallthru
      _
    // Predicated region
    $region70: #{tpu_custom_call.1} parent=1 // pred_check
      _
    $region71: #{tpu_custom_call.1} parent=1 // pred_check_branch
      %151 = sbr.rel (0) target = $region73
    $region72: #{tpu_custom_call.1} parent=1 // pred_region
      %152 = dma.done [#allocation15], 464
    $region73: #{tpu_custom_call.1} parent=1 // pred_fallthru
      _
    %v155 = vld [vmem:[#allocation2] sm:$0xff]
    %v156 = vld [vmem:[#allocation2 + $0x8] sm:$0xff]
    %v157 = vpack.c.bf16 %v156, %v155
    %v158 = vld [vmem:[#allocation16] sm:$0xf]
    %v159 = vld [vmem:[#allocation5] sm:$0xff]
    %v160 = vld [vmem:[#allocation5 + $0x8] sm:$0xff]
    %v161 = vld [vmem:[#allocation5 + $0x10] sm:$0xff]
    %v162 = vld [vmem:[#allocation5 + $0x18] sm:$0xff]
    %v163 = vld [vmem:[#allocation5 + $0x20] sm:$0xff]
    %v164 = vld [vmem:[#allocation5 + $0x28] sm:$0xff]
    %v165 = vld [vmem:[#allocation5 + $0x30] sm:$0xff]
    %v166 = vld [vmem:[#allocation5 + $0x38] sm:$0xff]
    %v167 = vld [vmem:[#allocation5 + $0x40] sm:$0xff]
    %v168 = vld [vmem:[#allocation5 + $0x48] sm:$0xff]
    %v169 = vld [vmem:[#allocation5 + $0x50] sm:$0xff]
    %v170 = vld [vmem:[#allocation5 + $0x58] sm:$0xff]
    %v171 = vld [vmem:[#allocation5 + $0x60] sm:$0xff]
    %v172 = vld [vmem:[#allocation5 + $0x68] sm:$0xff]
    %v173 = vld [vmem:[#allocation5 + $0x70] sm:$0xff]
    %v174 = vld [vmem:[#allocation5 + $0x78] sm:$0xff]
    %v175 = vld [vmem:[#allocation5 + $0x80] sm:$0xff]
    %v176 = vld [vmem:[#allocation5 + $0x88] sm:$0xff]
    %v177 = vld [vmem:[#allocation5 + $0x90] sm:$0xff]
    %v178 = vld [vmem:[#allocation5 + $0x98] sm:$0xff]
    %v179 = vld [vmem:[#allocation5 + $0xa0] sm:$0xff]
    %v180 = vld [vmem:[#allocation5 + $0xa8] sm:$0xff]
    %v181 = vld [vmem:[#allocation5 + $0xb0] sm:$0xff]
    %v182 = vld [vmem:[#allocation5 + $0xb8] sm:$0xff]
    %v183 = vld [vmem:[#allocation5 + $0xc0] sm:$0xff]
    %v184 = vld [vmem:[#allocation5 + $0xc8] sm:$0xff]
    %v185 = vld [vmem:[#allocation5 + $0xd0] sm:$0xff]
    %v186 = vld [vmem:[#allocation5 + $0xd8] sm:$0xff]
    %v187 = vld [vmem:[#allocation5 + $0xe0] sm:$0xff]
    %v188 = vld [vmem:[#allocation5 + $0xe8] sm:$0xff]
    %v189 = vld [vmem:[#allocation5 + $0xf0] sm:$0xff]
    %v190 = vld [vmem:[#allocation5 + $0xf8] sm:$0xff]
    %v192 = vlaneseq
    %v193 = vshrl.u32 %v192, 7
    %v194 = vsub.s32 0, %v193
    %v195 = vrot.slane %v158, %v194
    %v196 = vlaneseq
    %v197 = vshrl.u32 %v196, 7
    %v198 = vsub.s32 1, %v197
    %v199 = vrot.slane %v158, %v198
    %v200 = vlaneseq
    %v201 = vshrl.u32 %v200, 7
    %v202 = vsub.s32 2, %v201
    %v203 = vrot.slane %v158, %v202
    %v204 = vlaneseq
    %v205 = vshrl.u32 %v204, 7
    %v206 = vsub.s32 3, %v205
    %v207 = vrot.slane %v158, %v206
    %v244 = vunpack.c.l.b16 %v159
    %v245 = vunpack.c.h.b16 %v159
    %v246 = vunpack.c.l.b16 %v160
    %v247 = vunpack.c.h.b16 %v160
    %v248 = vunpack.c.l.b16 %v161
    %v249 = vunpack.c.h.b16 %v161
    %v250 = vunpack.c.l.b16 %v162
    %v251 = vunpack.c.h.b16 %v162
    %v252 = vunpack.c.l.b16 %v163
    %v253 = vunpack.c.h.b16 %v163
    %v254 = vunpack.c.l.b16 %v164
    %v255 = vunpack.c.h.b16 %v164
    %v256 = vunpack.c.l.b16 %v165
    %v257 = vunpack.c.h.b16 %v165
    %v258 = vunpack.c.l.b16 %v166
    %v259 = vunpack.c.h.b16 %v166
    %v260 = vunpack.c.l.b16 %v167
    %v261 = vunpack.c.h.b16 %v167
    %v262 = vunpack.c.l.b16 %v168
    %v263 = vunpack.c.h.b16 %v168
    %v264 = vunpack.c.l.b16 %v169
    %v265 = vunpack.c.h.b16 %v169
    %v266 = vunpack.c.l.b16 %v170
    %v267 = vunpack.c.h.b16 %v170
    %v268 = vunpack.c.l.b16 %v171
    %v269 = vunpack.c.h.b16 %v171
    %v270 = vunpack.c.l.b16 %v172
    %v271 = vunpack.c.h.b16 %v172
    %v272 = vunpack.c.l.b16 %v173
    %v273 = vunpack.c.h.b16 %v173
    %v274 = vunpack.c.l.b16 %v174
    %v275 = vunpack.c.h.b16 %v174
    %v276 = vunpack.c.l.b16 %v175
    %v277 = vunpack.c.h.b16 %v175
    %v278 = vunpack.c.l.b16 %v176
    %v279 = vunpack.c.h.b16 %v176
    %v280 = vunpack.c.l.b16 %v177
    %v281 = vunpack.c.h.b16 %v177
    %v282 = vunpack.c.l.b16 %v178
    %v283 = vunpack.c.h.b16 %v178
    %v284 = vunpack.c.l.b16 %v179
    %v285 = vunpack.c.h.b16 %v179
    %v286 = vunpack.c.l.b16 %v180
    %v287 = vunpack.c.h.b16 %v180
    %v288 = vunpack.c.l.b16 %v181
    %v289 = vunpack.c.h.b16 %v181
    %v290 = vunpack.c.l.b16 %v182
    %v291 = vunpack.c.h.b16 %v182
    %v292 = vunpack.c.l.b16 %v183
    %v293 = vunpack.c.h.b16 %v183
    %v294 = vunpack.c.l.b16 %v184
    %v295 = vunpack.c.h.b16 %v184
    %v296 = vunpack.c.l.b16 %v185
    %v297 = vunpack.c.h.b16 %v185
    %v298 = vunpack.c.l.b16 %v186
    %v299 = vunpack.c.h.b16 %v186
    %v300 = vunpack.c.l.b16 %v187
    %v301 = vunpack.c.h.b16 %v187
    %v302 = vunpack.c.l.b16 %v188
    %v303 = vunpack.c.h.b16 %v188
    %v304 = vunpack.c.l.b16 %v189
    %v305 = vunpack.c.h.b16 %v189
    %v306 = vunpack.c.l.b16 %v190
    %v307 = vunpack.c.h.b16 %v190
    %v308 = vpack.c.b16 %v248, %v244
    %v309 = vpack.c.b16 %v249, %v245
    %v310 = vpack.c.b16 %v250, %v246
    %v311 = vpack.c.b16 %v251, %v247
    %v312 = vpack.c.b16 %v256, %v252
    %v313 = vpack.c.b16 %v257, %v253
    %v314 = vpack.c.b16 %v258, %v254
    %v315 = vpack.c.b16 %v259, %v255
    %v316 = vpack.c.b16 %v264, %v260
    %v317 = vpack.c.b16 %v265, %v261
    %v318 = vpack.c.b16 %v266, %v262
    %v319 = vpack.c.b16 %v267, %v263
    %v320 = vpack.c.b16 %v272, %v268
    %v321 = vpack.c.b16 %v273, %v269
    %v322 = vpack.c.b16 %v274, %v270
    %v323 = vpack.c.b16 %v275, %v271
    %v324 = vpack.c.b16 %v280, %v276
    %v325 = vpack.c.b16 %v281, %v277
    %v326 = vpack.c.b16 %v282, %v278
    %v327 = vpack.c.b16 %v283, %v279
    %v328 = vpack.c.b16 %v288, %v284
    %v329 = vpack.c.b16 %v289, %v285
    %v330 = vpack.c.b16 %v290, %v286
    %v331 = vpack.c.b16 %v291, %v287
    %v332 = vpack.c.b16 %v296, %v292
    %v333 = vpack.c.b16 %v297, %v293
    %v334 = vpack.c.b16 %v298, %v294
    %v335 = vpack.c.b16 %v299, %v295
    %v336 = vpack.c.b16 %v304, %v300
    %v337 = vpack.c.b16 %v305, %v301
    %v338 = vpack.c.b16 %v306, %v302
    %v339 = vpack.c.b16 %v307, %v303
    %372 = vmatprep.subr.bf16.mxu0 %v337
    %373 = vmatpush1.bf16.msra.mxu0 %v336
    %374 = vmatprep.subr.bf16.mxu0 %v333
    %375 = vmatpush1.bf16.msra.mxu0 %v332
    %376 = vmatprep.subr.bf16.mxu0 %v329
    %377 = vmatpush1.bf16.msra.mxu0 %v328
    %378 = vmatprep.subr.bf16.mxu0 %v325
    %379 = vmatpush1.bf16.msra.mxu0 %v324
    %380 = vmatprep.subr.bf16.mxu0 %v321
    %381 = vmatpush1.bf16.msra.mxu0 %v320
    %382 = vmatprep.subr.bf16.mxu0 %v317
    %383 = vmatpush1.bf16.msra.mxu0 %v316
    %384 = vmatprep.subr.bf16.mxu0 %v313
    %385 = vmatpush1.bf16.msra.mxu0 %v312
    %386 = vmatprep.subr.bf16.mxu0 %v309
    %387 = vmatpush1.bf16.msra.mxu0 %v308
    %388 = vmatprep.subr.bf16.mxu0 0
    %389 = vmatpush2.bf16.msra.mxu0 0
    %390 = vmatprep.subr.bf16.mxu0 0
    %391 = vmatpush2.bf16.msra.mxu0 0
    %392 = vmatprep.subr.bf16.mxu0 0
    %393 = vmatpush2.bf16.msra.mxu0 0
    %394 = vmatprep.subr.bf16.mxu0 0
    %395 = vmatpush2.bf16.msra.mxu0 0
    %396 = vmatprep.subr.bf16.mxu0 0
    %397 = vmatpush2.bf16.msra.mxu0 0
    %398 = vmatprep.subr.bf16.mxu0 0
    %399 = vmatpush2.bf16.msra.mxu0 0
    %400 = vmatprep.subr.bf16.mxu0 0
    %401 = vmatpush2.bf16.msra.mxu0 0
    %402 = vmatprep.subr.bf16.mxu0 0
    %403 = vmatpush2.bf16.msra.mxu0 0
    %404 = vmatprep.mubr.bf16.mxu0 0
    %405 = vmatmul.mubr.bf16.gmra.mxu0 %v157
    %v406 = vpop.f32.mrf.mxu0
    %v407 = vadd.f32 %v195, %v406
    %v408 = vpop.f32.mrf.mxu0
    %v409 = vadd.f32 %v199, %v408
    %v410 = vpop.f32.mrf.mxu0
    %v411 = vadd.f32 %v195, %v410
    %v412 = vpop.f32.mrf.mxu0
    %v413 = vadd.f32 %v199, %v412
    %414 = vdwg.mxu0
    %415 = vmatprep.subr.bf16.mxu0 %v339
    %416 = vmatpush1.bf16.msra.mxu0 %v338
    %417 = vmatprep.subr.bf16.mxu0 %v335
    %418 = vmatpush1.bf16.msra.mxu0 %v334
    %419 = vmatprep.subr.bf16.mxu0 %v331
    %420 = vmatpush1.bf16.msra.mxu0 %v330
    %421 = vmatprep.subr.bf16.mxu0 %v327
    %422 = vmatpush1.bf16.msra.mxu0 %v326
    %423 = vmatprep.subr.bf16.mxu0 %v323
    %424 = vmatpush1.bf16.msra.mxu0 %v322
    %425 = vmatprep.subr.bf16.mxu0 %v319
    %426 = vmatpush1.bf16.msra.mxu0 %v318
    %427 = vmatprep.subr.bf16.mxu0 %v315
    %428 = vmatpush1.bf16.msra.mxu0 %v314
    %429 = vmatprep.subr.bf16.mxu0 %v311
    %430 = vmatpush1.bf16.msra.mxu0 %v310
    %431 = vmatprep.subr.bf16.mxu0 0
    %432 = vmatpush2.bf16.msra.mxu0 0
    %433 = vmatprep.subr.bf16.mxu0 0
    %434 = vmatpush2.bf16.msra.mxu0 0
    %435 = vmatprep.subr.bf16.mxu0 0
    %436 = vmatpush2.bf16.msra.mxu0 0
    %437 = vmatprep.subr.bf16.mxu0 0
    %438 = vmatpush2.bf16.msra.mxu0 0
    %439 = vmatprep.subr.bf16.mxu0 0
    %440 = vmatpush2.bf16.msra.mxu0 0
    %441 = vmatprep.subr.bf16.mxu0 0
    %442 = vmatpush2.bf16.msra.mxu0 0
    %443 = vmatprep.subr.bf16.mxu0 0
    %444 = vmatpush2.bf16.msra.mxu0 0
    %445 = vmatprep.subr.bf16.mxu0 0
    %446 = vmatpush2.bf16.msra.mxu0 0
    %447 = vmatprep.mubr.bf16.mxu0 0
    %448 = vmatmul.mubr.bf16.gmra.mxu0 %v157
    %v449 = vpop.f32.mrf.mxu0
    %v450 = vadd.f32 %v203, %v449
    %v451 = vpop.f32.mrf.mxu0
    %v452 = vadd.f32 %v207, %v451
    %v453 = vpop.f32.mrf.mxu0
    %v454 = vadd.f32 %v203, %v453
    %v455 = vpop.f32.mrf.mxu0
    %v456 = vadd.f32 %v207, %v455
    %457 = vdwg.mxu0
    %v458 = vpack.c.bf16 %v411, %v407
    %v459 = vpack.c.bf16 %v413, %v409
    %v460 = vpack.c.bf16 %v454, %v450
    %v461 = vpack.c.bf16 %v456, %v452
    %v462 = vmul.bf16 %v458, 1045249613
    %v463 = vmul.bf16 %v459, 1045249613
    %v464 = vmul.bf16 %v460, 1045249613
    %v465 = vmul.bf16 %v461, 1045249613
    %v466 = vmax.bf16 %v458, %v462
    %v467 = vmax.bf16 %v459, %v463
    %v468 = vmax.bf16 %v460, %v464
    %v469 = vmax.bf16 %v461, %v465
    %v470 = vld [vmem:[#allocation16 + $0x4] sm:$0x3]
    %v471 = vld [vmem:[#allocation7] sm:$0xff]
    %v472 = vld [vmem:[#allocation7 + $0x8] sm:$0xff]
    %v473 = vld [vmem:[#allocation7 + $0x10] sm:$0xff]
    %v474 = vld [vmem:[#allocation7 + $0x18] sm:$0xff]
    %v475 = vld [vmem:[#allocation7 + $0x20] sm:$0xff]
    %v476 = vld [vmem:[#allocation7 + $0x28] sm:$0xff]
    %v477 = vld [vmem:[#allocation7 + $0x30] sm:$0xff]
    %v478 = vld [vmem:[#allocation7 + $0x38] sm:$0xff]
    %v479 = vld [vmem:[#allocation7 + $0x40] sm:$0xff]
    %v480 = vld [vmem:[#allocation7 + $0x48] sm:$0xff]
    %v481 = vld [vmem:[#allocation7 + $0x50] sm:$0xff]
    %v482 = vld [vmem:[#allocation7 + $0x58] sm:$0xff]
    %v483 = vld [vmem:[#allocation7 + $0x60] sm:$0xff]
    %v484 = vld [vmem:[#allocation7 + $0x68] sm:$0xff]
    %v485 = vld [vmem:[#allocation7 + $0x70] sm:$0xff]
    %v486 = vld [vmem:[#allocation7 + $0x78] sm:$0xff]
    %v487 = vld [vmem:[#allocation7 + $0x80] sm:$0xff]
    %v488 = vld [vmem:[#allocation7 + $0x88] sm:$0xff]
    %v489 = vld [vmem:[#allocation7 + $0x90] sm:$0xff]
    %v490 = vld [vmem:[#allocation7 + $0x98] sm:$0xff]
    %v491 = vld [vmem:[#allocation7 + $0xa0] sm:$0xff]
    %v492 = vld [vmem:[#allocation7 + $0xa8] sm:$0xff]
    %v493 = vld [vmem:[#allocation7 + $0xb0] sm:$0xff]
    %v494 = vld [vmem:[#allocation7 + $0xb8] sm:$0xff]
    %v495 = vld [vmem:[#allocation7 + $0xc0] sm:$0xff]
    %v496 = vld [vmem:[#allocation7 + $0xc8] sm:$0xff]
    %v497 = vld [vmem:[#allocation7 + $0xd0] sm:$0xff]
    %v498 = vld [vmem:[#allocation7 + $0xd8] sm:$0xff]
    %v499 = vld [vmem:[#allocation7 + $0xe0] sm:$0xff]
    %v500 = vld [vmem:[#allocation7 + $0xe8] sm:$0xff]
    %v501 = vld [vmem:[#allocation7 + $0xf0] sm:$0xff]
    %v502 = vld [vmem:[#allocation7 + $0xf8] sm:$0xff]
    %v503 = vld [vmem:[#allocation7 + $0x100] sm:$0xff]
    %v504 = vld [vmem:[#allocation7 + $0x108] sm:$0xff]
    %v505 = vld [vmem:[#allocation7 + $0x110] sm:$0xff]
    %v506 = vld [vmem:[#allocation7 + $0x118] sm:$0xff]
    %v507 = vld [vmem:[#allocation7 + $0x120] sm:$0xff]
    %v508 = vld [vmem:[#allocation7 + $0x128] sm:$0xff]
    %v509 = vld [vmem:[#allocation7 + $0x130] sm:$0xff]
    %v510 = vld [vmem:[#allocation7 + $0x138] sm:$0xff]
    %v511 = vld [vmem:[#allocation7 + $0x140] sm:$0xff]
    %v512 = vld [vmem:[#allocation7 + $0x148] sm:$0xff]
    %v513 = vld [vmem:[#allocation7 + $0x150] sm:$0xff]
    %v514 = vld [vmem:[#allocation7 + $0x158] sm:$0xff]
    %v515 = vld [vmem:[#allocation7 + $0x160] sm:$0xff]
    %v516 = vld [vmem:[#allocation7 + $0x168] sm:$0xff]
    %v517 = vld [vmem:[#allocation7 + $0x170] sm:$0xff]
    %v518 = vld [vmem:[#allocation7 + $0x178] sm:$0xff]
    %v519 = vld [vmem:[#allocation7 + $0x180] sm:$0xff]
    %v520 = vld [vmem:[#allocation7 + $0x188] sm:$0xff]
    %v521 = vld [vmem:[#allocation7 + $0x190] sm:$0xff]
    %v522 = vld [vmem:[#allocation7 + $0x198] sm:$0xff]
    %v523 = vld [vmem:[#allocation7 + $0x1a0] sm:$0xff]
    %v524 = vld [vmem:[#allocation7 + $0x1a8] sm:$0xff]
    %v525 = vld [vmem:[#allocation7 + $0x1b0] sm:$0xff]
    %v526 = vld [vmem:[#allocation7 + $0x1b8] sm:$0xff]
    %v527 = vld [vmem:[#allocation7 + $0x1c0] sm:$0xff]
    %v528 = vld [vmem:[#allocation7 + $0x1c8] sm:$0xff]
    %v529 = vld [vmem:[#allocation7 + $0x1d0] sm:$0xff]
    %v530 = vld [vmem:[#allocation7 + $0x1d8] sm:$0xff]
    %v531 = vld [vmem:[#allocation7 + $0x1e0] sm:$0xff]
    %v532 = vld [vmem:[#allocation7 + $0x1e8] sm:$0xff]
    %v533 = vld [vmem:[#allocation7 + $0x1f0] sm:$0xff]
    %v534 = vld [vmem:[#allocation7 + $0x1f8] sm:$0xff]
    %v536 = vlaneseq
    %v537 = vshrl.u32 %v536, 7
    %v538 = vsub.s32 0, %v537
    %v539 = vrot.slane %v470, %v538
    %v540 = vlaneseq
    %v541 = vshrl.u32 %v540, 7
    %v542 = vsub.s32 1, %v541
    %v543 = vrot.slane %v470, %v542
    %v610 = vunpack.c.l.b16 %v471
    %v611 = vunpack.c.h.b16 %v471
    %v612 = vunpack.c.l.b16 %v472
    %v613 = vunpack.c.h.b16 %v472
    %v614 = vunpack.c.l.b16 %v473
    %v615 = vunpack.c.h.b16 %v473
    %v616 = vunpack.c.l.b16 %v474
    %v617 = vunpack.c.h.b16 %v474
    %v618 = vunpack.c.l.b16 %v475
    %v619 = vunpack.c.h.b16 %v475
    %v620 = vunpack.c.l.b16 %v476
    %v621 = vunpack.c.h.b16 %v476
    %v622 = vunpack.c.l.b16 %v477
    %v623 = vunpack.c.h.b16 %v477
    %v624 = vunpack.c.l.b16 %v478
    %v625 = vunpack.c.h.b16 %v478
    %v626 = vunpack.c.l.b16 %v479
    %v627 = vunpack.c.h.b16 %v479
    %v628 = vunpack.c.l.b16 %v480
    %v629 = vunpack.c.h.b16 %v480
    %v630 = vunpack.c.l.b16 %v481
    %v631 = vunpack.c.h.b16 %v481
    %v632 = vunpack.c.l.b16 %v482
    %v633 = vunpack.c.h.b16 %v482
    %v634 = vunpack.c.l.b16 %v483
    %v635 = vunpack.c.h.b16 %v483
    %v636 = vunpack.c.l.b16 %v484
    %v637 = vunpack.c.h.b16 %v484
    %v638 = vunpack.c.l.b16 %v485
    %v639 = vunpack.c.h.b16 %v485
    %v640 = vunpack.c.l.b16 %v486
    %v641 = vunpack.c.h.b16 %v486
    %v642 = vunpack.c.l.b16 %v487
    %v643 = vunpack.c.h.b16 %v487
    %v644 = vunpack.c.l.b16 %v488
    %v645 = vunpack.c.h.b16 %v488
    %v646 = vunpack.c.l.b16 %v489
    %v647 = vunpack.c.h.b16 %v489
    %v648 = vunpack.c.l.b16 %v490
    %v649 = vunpack.c.h.b16 %v490
    %v650 = vunpack.c.l.b16 %v491
    %v651 = vunpack.c.h.b16 %v491
    %v652 = vunpack.c.l.b16 %v492
    %v653 = vunpack.c.h.b16 %v492
    %v654 = vunpack.c.l.b16 %v493
    %v655 = vunpack.c.h.b16 %v493
    %v656 = vunpack.c.l.b16 %v494
    %v657 = vunpack.c.h.b16 %v494
    %v658 = vunpack.c.l.b16 %v495
    %v659 = vunpack.c.h.b16 %v495
    %v660 = vunpack.c.l.b16 %v496
    %v661 = vunpack.c.h.b16 %v496
    %v662 = vunpack.c.l.b16 %v497
    %v663 = vunpack.c.h.b16 %v497
    %v664 = vunpack.c.l.b16 %v498
    %v665 = vunpack.c.h.b16 %v498
    %v666 = vunpack.c.l.b16 %v499
    %v667 = vunpack.c.h.b16 %v499
    %v668 = vunpack.c.l.b16 %v500
    %v669 = vunpack.c.h.b16 %v500
    %v670 = vunpack.c.l.b16 %v501
    %v671 = vunpack.c.h.b16 %v501
    %v672 = vunpack.c.l.b16 %v502
    %v673 = vunpack.c.h.b16 %v502
    %v674 = vunpack.c.l.b16 %v503
    %v675 = vunpack.c.h.b16 %v503
    %v676 = vunpack.c.l.b16 %v504
    %v677 = vunpack.c.h.b16 %v504
    %v678 = vunpack.c.l.b16 %v505
    %v679 = vunpack.c.h.b16 %v505
    %v680 = vunpack.c.l.b16 %v506
    %v681 = vunpack.c.h.b16 %v506
    %v682 = vunpack.c.l.b16 %v507
    %v683 = vunpack.c.h.b16 %v507
    %v684 = vunpack.c.l.b16 %v508
    %v685 = vunpack.c.h.b16 %v508
    %v686 = vunpack.c.l.b16 %v509
    %v687 = vunpack.c.h.b16 %v509
    %v688 = vunpack.c.l.b16 %v510
    %v689 = vunpack.c.h.b16 %v510
    %v690 = vunpack.c.l.b16 %v511
    %v691 = vunpack.c.h.b16 %v511
    %v692 = vunpack.c.l.b16 %v512
    %v693 = vunpack.c.h.b16 %v512
    %v694 = vunpack.c.l.b16 %v513
    %v695 = vunpack.c.h.b16 %v513
    %v696 = vunpack.c.l.b16 %v514
    %v697 = vunpack.c.h.b16 %v514
    %v698 = vunpack.c.l.b16 %v515
    %v699 = vunpack.c.h.b16 %v515
    %v700 = vunpack.c.l.b16 %v516
    %v701 = vunpack.c.h.b16 %v516
    %v702 = vunpack.c.l.b16 %v517
    %v703 = vunpack.c.h.b16 %v517
    %v704 = vunpack.c.l.b16 %v518
    %v705 = vunpack.c.h.b16 %v518
    %v706 = vunpack.c.l.b16 %v519
    %v707 = vunpack.c.h.b16 %v519
    %v708 = vunpack.c.l.b16 %v520
    %v709 = vunpack.c.h.b16 %v520
    %v710 = vunpack.c.l.b16 %v521
    %v711 = vunpack.c.h.b16 %v521
    %v712 = vunpack.c.l.b16 %v522
    %v713 = vunpack.c.h.b16 %v522
    %v714 = vunpack.c.l.b16 %v523
    %v715 = vunpack.c.h.b16 %v523
    %v716 = vunpack.c.l.b16 %v524
    %v717 = vunpack.c.h.b16 %v524
    %v718 = vunpack.c.l.b16 %v525
    %v719 = vunpack.c.h.b16 %v525
    %v720 = vunpack.c.l.b16 %v526
    %v721 = vunpack.c.h.b16 %v526
    %v722 = vunpack.c.l.b16 %v527
    %v723 = vunpack.c.h.b16 %v527
    %v724 = vunpack.c.l.b16 %v528
    %v725 = vunpack.c.h.b16 %v528
    %v726 = vunpack.c.l.b16 %v529
    %v727 = vunpack.c.h.b16 %v529
    %v728 = vunpack.c.l.b16 %v530
    %v729 = vunpack.c.h.b16 %v530
    %v730 = vunpack.c.l.b16 %v531
    %v731 = vunpack.c.h.b16 %v531
    %v732 = vunpack.c.l.b16 %v532
    %v733 = vunpack.c.h.b16 %v532
    %v734 = vunpack.c.l.b16 %v533
    %v735 = vunpack.c.h.b16 %v533
    %v736 = vunpack.c.l.b16 %v534
    %v737 = vunpack.c.h.b16 %v534
    %v738 = vpack.c.b16 %v612, %v610
    %v739 = vpack.c.b16 %v613, %v611
    %v740 = vpack.c.b16 %v616, %v614
    %v741 = vpack.c.b16 %v617, %v615
    %v742 = vpack.c.b16 %v620, %v618
    %v743 = vpack.c.b16 %v621, %v619
    %v744 = vpack.c.b16 %v624, %v622
    %v745 = vpack.c.b16 %v625, %v623
    %v746 = vpack.c.b16 %v628, %v626
    %v747 = vpack.c.b16 %v629, %v627
    %v748 = vpack.c.b16 %v632, %v630
    %v749 = vpack.c.b16 %v633, %v631
    %v750 = vpack.c.b16 %v636, %v634
    %v751 = vpack.c.b16 %v637, %v635
    %v752 = vpack.c.b16 %v640, %v638
    %v753 = vpack.c.b16 %v641, %v639
    %v754 = vpack.c.b16 %v644, %v642
    %v755 = vpack.c.b16 %v645, %v643
    %v756 = vpack.c.b16 %v648, %v646
    %v757 = vpack.c.b16 %v649, %v647
    %v758 = vpack.c.b16 %v652, %v650
    %v759 = vpack.c.b16 %v653, %v651
    %v760 = vpack.c.b16 %v656, %v654
    %v761 = vpack.c.b16 %v657, %v655
    %v762 = vpack.c.b16 %v660, %v658
    %v763 = vpack.c.b16 %v661, %v659
    %v764 = vpack.c.b16 %v664, %v662
    %v765 = vpack.c.b16 %v665, %v663
    %v766 = vpack.c.b16 %v668, %v666
    %v767 = vpack.c.b16 %v669, %v667
    %v768 = vpack.c.b16 %v672, %v670
    %v769 = vpack.c.b16 %v673, %v671
    %v770 = vpack.c.b16 %v676, %v674
    %v771 = vpack.c.b16 %v677, %v675
    %v772 = vpack.c.b16 %v680, %v678
    %v773 = vpack.c.b16 %v681, %v679
    %v774 = vpack.c.b16 %v684, %v682
    %v775 = vpack.c.b16 %v685, %v683
    %v776 = vpack.c.b16 %v688, %v686
    %v777 = vpack.c.b16 %v689, %v687
    %v778 = vpack.c.b16 %v692, %v690
    %v779 = vpack.c.b16 %v693, %v691
    %v780 = vpack.c.b16 %v696, %v694
    %v781 = vpack.c.b16 %v697, %v695
    %v782 = vpack.c.b16 %v700, %v698
    %v783 = vpack.c.b16 %v701, %v699
    %v784 = vpack.c.b16 %v704, %v702
    %v785 = vpack.c.b16 %v705, %v703
    %v786 = vpack.c.b16 %v708, %v706
    %v787 = vpack.c.b16 %v709, %v707
    %v788 = vpack.c.b16 %v712, %v710
    %v789 = vpack.c.b16 %v713, %v711
    %v790 = vpack.c.b16 %v716, %v714
    %v791 = vpack.c.b16 %v717, %v715
    %v792 = vpack.c.b16 %v720, %v718
    %v793 = vpack.c.b16 %v721, %v719
    %v794 = vpack.c.b16 %v724, %v722
    %v795 = vpack.c.b16 %v725, %v723
    %v796 = vpack.c.b16 %v728, %v726
    %v797 = vpack.c.b16 %v729, %v727
    %v798 = vpack.c.b16 %v732, %v730
    %v799 = vpack.c.b16 %v733, %v731
    %v800 = vpack.c.b16 %v736, %v734
    %v801 = vpack.c.b16 %v737, %v735
    %866 = vmatprep.subr.bf16.mxu0 %v753
    %867 = vmatpush1.bf16.msra.mxu0 %v752
    %868 = vmatprep.subr.bf16.mxu0 %v751
    %869 = vmatpush1.bf16.msra.mxu0 %v750
    %870 = vmatprep.subr.bf16.mxu0 %v749
    %871 = vmatpush1.bf16.msra.mxu0 %v748
    %872 = vmatprep.subr.bf16.mxu0 %v747
    %873 = vmatpush1.bf16.msra.mxu0 %v746
    %874 = vmatprep.subr.bf16.mxu0 %v745
    %875 = vmatpush1.bf16.msra.mxu0 %v744
    %876 = vmatprep.subr.bf16.mxu0 %v743
    %877 = vmatpush1.bf16.msra.mxu0 %v742
    %878 = vmatprep.subr.bf16.mxu0 %v741
    %879 = vmatpush1.bf16.msra.mxu0 %v740
    %880 = vmatprep.subr.bf16.mxu0 %v739
    %881 = vmatpush1.bf16.msra.mxu0 %v738
    %882 = vmatprep.subr.bf16.mxu0 %v769
    %883 = vmatpush2.bf16.msra.mxu0 %v768
    %884 = vmatprep.subr.bf16.mxu0 %v767
    %885 = vmatpush2.bf16.msra.mxu0 %v766
    %886 = vmatprep.subr.bf16.mxu0 %v765
    %887 = vmatpush2.bf16.msra.mxu0 %v764
    %888 = vmatprep.subr.bf16.mxu0 %v763
    %889 = vmatpush2.bf16.msra.mxu0 %v762
    %890 = vmatprep.subr.bf16.mxu0 %v761
    %891 = vmatpush2.bf16.msra.mxu0 %v760
    %892 = vmatprep.subr.bf16.mxu0 %v759
    %893 = vmatpush2.bf16.msra.mxu0 %v758
    %894 = vmatprep.subr.bf16.mxu0 %v757
    %895 = vmatpush2.bf16.msra.mxu0 %v756
    %896 = vmatprep.subr.bf16.mxu0 %v755
    %897 = vmatpush2.bf16.msra.mxu0 %v754
    %898 = vmatprep.mubr.bf16.mxu0 %v467
    %899 = vmatmul.mubr.bf16.gmra.mxu0 %v466
    %v900 = vpop.f32.mrf.mxu0
    %v901 = vadd.f32 %v539, %v900
    %v902 = vpop.f32.mrf.mxu0
    %v903 = vadd.f32 %v543, %v902
    %v904 = vpop.f32.mrf.mxu0
    %v905 = vadd.f32 %v539, %v904
    %v906 = vpop.f32.mrf.mxu0
    %v907 = vadd.f32 %v543, %v906
    %908 = vdwg.mxu0
    %909 = vmatprep.subr.bf16.mxu0 %v785
    %910 = vmatpush1.bf16.msra.mxu0 %v784
    %911 = vmatprep.subr.bf16.mxu0 %v783
    %912 = vmatpush1.bf16.msra.mxu0 %v782
    %913 = vmatprep.subr.bf16.mxu0 %v781
    %914 = vmatpush1.bf16.msra.mxu0 %v780
    %915 = vmatprep.subr.bf16.mxu0 %v779
    %916 = vmatpush1.bf16.msra.mxu0 %v778
    %917 = vmatprep.subr.bf16.mxu0 %v777
    %918 = vmatpush1.bf16.msra.mxu0 %v776
    %919 = vmatprep.subr.bf16.mxu0 %v775
    %920 = vmatpush1.bf16.msra.mxu0 %v774
    %921 = vmatprep.subr.bf16.mxu0 %v773
    %922 = vmatpush1.bf16.msra.mxu0 %v772
    %923 = vmatprep.subr.bf16.mxu0 %v771
    %924 = vmatpush1.bf16.msra.mxu0 %v770
    %925 = vmatprep.subr.bf16.mxu0 %v801
    %926 = vmatpush2.bf16.msra.mxu0 %v800
    %927 = vmatprep.subr.bf16.mxu0 %v799
    %928 = vmatpush2.bf16.msra.mxu0 %v798
    %929 = vmatprep.subr.bf16.mxu0 %v797
    %930 = vmatpush2.bf16.msra.mxu0 %v796
    %931 = vmatprep.subr.bf16.mxu0 %v795
    %932 = vmatpush2.bf16.msra.mxu0 %v794
    %933 = vmatprep.subr.bf16.mxu0 %v793
    %934 = vmatpush2.bf16.msra.mxu0 %v792
    %935 = vmatprep.subr.bf16.mxu0 %v791
    %936 = vmatpush2.bf16.msra.mxu0 %v790
    %937 = vmatprep.subr.bf16.mxu0 %v789
    %938 = vmatpush2.bf16.msra.mxu0 %v788
    %939 = vmatprep.subr.bf16.mxu0 %v787
    %940 = vmatpush2.bf16.msra.mxu0 %v786
    %941 = vmatprep.mubr.bf16.mxu0 %v469
    %942 = vmatmul.mubr.bf16.gmra.mxu0 %v468
    %v943 = vpop.f32.mrf.mxu0
    %v944 = vadd.f32 %v901, %v943
    %v945 = vpop.f32.mrf.mxu0
    %v946 = vadd.f32 %v903, %v945
    %v947 = vpop.f32.mrf.mxu0
    %v948 = vadd.f32 %v905, %v947
    %v949 = vpop.f32.mrf.mxu0
    %v950 = vadd.f32 %v907, %v949
    %951 = vdwg.mxu0
    %v952 = vpack.c.bf16 %v948, %v944
    %v953 = vpack.c.bf16 %v950, %v946
    %v954 = vmul.bf16 %v952, 1045249613
    %v955 = vmul.bf16 %v953, 1045249613
    %v956 = vmax.bf16 %v952, %v954
    %v957 = vmax.bf16 %v953, %v955
    %v958 = vld [vmem:[#allocation16 + $0x6] sm:$0x1]
    %v959 = vld [vmem:[#allocation8] sm:$0xf]
    %v960 = vld [vmem:[#allocation8 + $0x4] sm:$0xf]
    %v961 = vld [vmem:[#allocation8 + $0x8] sm:$0xf]
    %v962 = vld [vmem:[#allocation8 + $0xc] sm:$0xf]
    %v963 = vld [vmem:[#allocation8 + $0x10] sm:$0xf]
    %v964 = vld [vmem:[#allocation8 + $0x14] sm:$0xf]
    %v965 = vld [vmem:[#allocation8 + $0x18] sm:$0xf]
    %v966 = vld [vmem:[#allocation8 + $0x1c] sm:$0xf]
    %v967 = vld [vmem:[#allocation8 + $0x20] sm:$0xf]
    %v968 = vld [vmem:[#allocation8 + $0x24] sm:$0xf]
    %v969 = vld [vmem:[#allocation8 + $0x28] sm:$0xf]
    %v970 = vld [vmem:[#allocation8 + $0x2c] sm:$0xf]
    %v971 = vld [vmem:[#allocation8 + $0x30] sm:$0xf]
    %v972 = vld [vmem:[#allocation8 + $0x34] sm:$0xf]
    %v973 = vld [vmem:[#allocation8 + $0x38] sm:$0xf]
    %v974 = vld [vmem:[#allocation8 + $0x3c] sm:$0xf]
    %v975 = vld [vmem:[#allocation8 + $0x40] sm:$0xf]
    %v976 = vld [vmem:[#allocation8 + $0x44] sm:$0xf]
    %v977 = vld [vmem:[#allocation8 + $0x48] sm:$0xf]
    %v978 = vld [vmem:[#allocation8 + $0x4c] sm:$0xf]
    %v979 = vld [vmem:[#allocation8 + $0x50] sm:$0xf]
    %v980 = vld [vmem:[#allocation8 + $0x54] sm:$0xf]
    %v981 = vld [vmem:[#allocation8 + $0x58] sm:$0xf]
    %v982 = vld [vmem:[#allocation8 + $0x5c] sm:$0xf]
    %v983 = vld [vmem:[#allocation8 + $0x60] sm:$0xf]
    %v984 = vld [vmem:[#allocation8 + $0x64] sm:$0xf]
    %v985 = vld [vmem:[#allocation8 + $0x68] sm:$0xf]
    %v986 = vld [vmem:[#allocation8 + $0x6c] sm:$0xf]
    %v987 = vld [vmem:[#allocation8 + $0x70] sm:$0xf]
    %v988 = vld [vmem:[#allocation8 + $0x74] sm:$0xf]
    %v989 = vld [vmem:[#allocation8 + $0x78] sm:$0xf]
    %v990 = vld [vmem:[#allocation8 + $0x7c] sm:$0xf]
    %v992 = vlaneseq
    %v993 = vshrl.u32 %v992, 7
    %v994 = vsub.s32 0, %v993
    %v995 = vrot.slane %v958, %v994
    %v1029 = vunpack.c.l.b16 %v959
    %v1030 = vunpack.c.l.b16 %v960
    %v1031 = vunpack.c.l.b16 %v961
    %v1032 = vunpack.c.l.b16 %v962
    %v1033 = vunpack.c.l.b16 %v963
    %v1034 = vunpack.c.l.b16 %v964
    %v1035 = vunpack.c.l.b16 %v965
    %v1036 = vunpack.c.l.b16 %v966
    %v1037 = vunpack.c.l.b16 %v967
    %v1038 = vunpack.c.l.b16 %v968
    %v1039 = vunpack.c.l.b16 %v969
    %v1040 = vunpack.c.l.b16 %v970
    %v1041 = vunpack.c.l.b16 %v971
    %v1042 = vunpack.c.l.b16 %v972
    %v1043 = vunpack.c.l.b16 %v973
    %v1044 = vunpack.c.l.b16 %v974
    %v1045 = vunpack.c.l.b16 %v975
    %v1046 = vunpack.c.l.b16 %v976
    %v1047 = vunpack.c.l.b16 %v977
    %v1048 = vunpack.c.l.b16 %v978
    %v1049 = vunpack.c.l.b16 %v979
    %v1050 = vunpack.c.l.b16 %v980
    %v1051 = vunpack.c.l.b16 %v981
    %v1052 = vunpack.c.l.b16 %v982
    %v1053 = vunpack.c.l.b16 %v983
    %v1054 = vunpack.c.l.b16 %v984
    %v1055 = vunpack.c.l.b16 %v985
    %v1056 = vunpack.c.l.b16 %v986
    %v1057 = vunpack.c.l.b16 %v987
    %v1058 = vunpack.c.l.b16 %v988
    %v1059 = vunpack.c.l.b16 %v989
    %v1060 = vunpack.c.l.b16 %v990
    %v1061 = vpack.c.b16 %v1030, %v1029
    %v1062 = vpack.c.b16 %v1032, %v1031
    %v1063 = vpack.c.b16 %v1034, %v1033
    %v1064 = vpack.c.b16 %v1036, %v1035
    %v1065 = vpack.c.b16 %v1038, %v1037
    %v1066 = vpack.c.b16 %v1040, %v1039
    %v1067 = vpack.c.b16 %v1042, %v1041
    %v1068 = vpack.c.b16 %v1044, %v1043
    %v1069 = vpack.c.b16 %v1046, %v1045
    %v1070 = vpack.c.b16 %v1048, %v1047
    %v1071 = vpack.c.b16 %v1050, %v1049
    %v1072 = vpack.c.b16 %v1052, %v1051
    %v1073 = vpack.c.b16 %v1054, %v1053
    %v1074 = vpack.c.b16 %v1056, %v1055
    %v1075 = vpack.c.b16 %v1058, %v1057
    %v1076 = vpack.c.b16 %v1060, %v1059
    %1093 = vmatprep.subr.bf16.mxu0 0
    %1094 = vmatpush1.bf16.msra.mxu0 %v1068
    %1095 = vmatprep.subr.bf16.mxu0 0
    %1096 = vmatpush1.bf16.msra.mxu0 %v1067
    %1097 = vmatprep.subr.bf16.mxu0 0
    %1098 = vmatpush1.bf16.msra.mxu0 %v1066
    %1099 = vmatprep.subr.bf16.mxu0 0
    %1100 = vmatpush1.bf16.msra.mxu0 %v1065
    %1101 = vmatprep.subr.bf16.mxu0 0
    %1102 = vmatpush1.bf16.msra.mxu0 %v1064
    %1103 = vmatprep.subr.bf16.mxu0 0
    %1104 = vmatpush1.bf16.msra.mxu0 %v1063
    %1105 = vmatprep.subr.bf16.mxu0 0
    %1106 = vmatpush1.bf16.msra.mxu0 %v1062
    %1107 = vmatprep.subr.bf16.mxu0 0
    %1108 = vmatpush1.bf16.msra.mxu0 %v1061
    %1109 = vmatprep.subr.bf16.mxu0 0
    %1110 = vmatpush2.bf16.msra.mxu0 %v1076
    %1111 = vmatprep.subr.bf16.mxu0 0
    %1112 = vmatpush2.bf16.msra.mxu0 %v1075
    %1113 = vmatprep.subr.bf16.mxu0 0
    %1114 = vmatpush2.bf16.msra.mxu0 %v1074
    %1115 = vmatprep.subr.bf16.mxu0 0
    %1116 = vmatpush2.bf16.msra.mxu0 %v1073
    %1117 = vmatprep.subr.bf16.mxu0 0
    %1118 = vmatpush2.bf16.msra.mxu0 %v1072
    %1119 = vmatprep.subr.bf16.mxu0 0
    %1120 = vmatpush2.bf16.msra.mxu0 %v1071
    %1121 = vmatprep.subr.bf16.mxu0 0
    %1122 = vmatpush2.bf16.msra.mxu0 %v1070
    %1123 = vmatprep.subr.bf16.mxu0 0
    %1124 = vmatpush2.bf16.msra.mxu0 %v1069
    %1125 = vmatprep.mubr.bf16.mxu0 %v957
    %1126 = vmatmul.mubr.bf16.gmra.mxu0 %v956
    %v1127 = vpop.f32.mrf.mxu0
    %v1128 = vadd.f32 %v995, %v1127
    %v1129 = vpop.f32.mrf.mxu0
    %v1130 = vpop.f32.mrf.mxu0
    %v1131 = vadd.f32 %v995, %v1130
    %v1132 = vpop.f32.mrf.mxu0
    %1133 = vdwg.mxu0
    %v1134 = vtanh.pop %v1128
    %v1135 = vtanh.pop %v1131
    %v1136 = vpack.c.bf16 %v1135, %v1134
    %v1137 = vld [vmem:[#allocation16 + $0x7] sm:$0x3]
    %v1138 = vld [vmem:[#allocation10] sm:$0xff]
    %v1139 = vld [vmem:[#allocation10 + $0x8] sm:$0xff]
    %v1140 = vld [vmem:[#allocation10 + $0x10] sm:$0xff]
    %v1141 = vld [vmem:[#allocation10 + $0x18] sm:$0xff]
    %v1142 = vld [vmem:[#allocation10 + $0x20] sm:$0xff]
    %v1143 = vld [vmem:[#allocation10 + $0x28] sm:$0xff]
    %v1144 = vld [vmem:[#allocation10 + $0x30] sm:$0xff]
    %v1145 = vld [vmem:[#allocation10 + $0x38] sm:$0xff]
    %v1146 = vld [vmem:[#allocation10 + $0x40] sm:$0xff]
    %v1147 = vld [vmem:[#allocation10 + $0x48] sm:$0xff]
    %v1148 = vld [vmem:[#allocation10 + $0x50] sm:$0xff]
    %v1149 = vld [vmem:[#allocation10 + $0x58] sm:$0xff]
    %v1150 = vld [vmem:[#allocation10 + $0x60] sm:$0xff]
    %v1151 = vld [vmem:[#allocation10 + $0x68] sm:$0xff]
    %v1152 = vld [vmem:[#allocation10 + $0x70] sm:$0xff]
    %v1153 = vld [vmem:[#allocation10 + $0x78] sm:$0xff]
    %v1155 = vlaneseq
    %v1156 = vshrl.u32 %v1155, 7
    %v1157 = vsub.s32 0, %v1156
    %v1158 = vrot.slane %v1137, %v1157
    %v1159 = vlaneseq
    %v1160 = vshrl.u32 %v1159, 7
    %v1161 = vsub.s32 1, %v1160
    %v1162 = vrot.slane %v1137, %v1161
    %v1181 = vunpack.c.l.b16 %v1138
    %v1182 = vunpack.c.h.b16 %v1138
    %v1183 = vunpack.c.l.b16 %v1139
    %v1184 = vunpack.c.h.b16 %v1139
    %v1185 = vunpack.c.l.b16 %v1140
    %v1186 = vunpack.c.h.b16 %v1140
    %v1187 = vunpack.c.l.b16 %v1141
    %v1188 = vunpack.c.h.b16 %v1141
    %v1189 = vunpack.c.l.b16 %v1142
    %v1190 = vunpack.c.h.b16 %v1142
    %v1191 = vunpack.c.l.b16 %v1143
    %v1192 = vunpack.c.h.b16 %v1143
    %v1193 = vunpack.c.l.b16 %v1144
    %v1194 = vunpack.c.h.b16 %v1144
    %v1195 = vunpack.c.l.b16 %v1145
    %v1196 = vunpack.c.h.b16 %v1145
    %v1197 = vunpack.c.l.b16 %v1146
    %v1198 = vunpack.c.h.b16 %v1146
    %v1199 = vunpack.c.l.b16 %v1147
    %v1200 = vunpack.c.h.b16 %v1147
    %v1201 = vunpack.c.l.b16 %v1148
    %v1202 = vunpack.c.h.b16 %v1148
    %v1203 = vunpack.c.l.b16 %v1149
    %v1204 = vunpack.c.h.b16 %v1149
    %v1205 = vunpack.c.l.b16 %v1150
    %v1206 = vunpack.c.h.b16 %v1150
    %v1207 = vunpack.c.l.b16 %v1151
    %v1208 = vunpack.c.h.b16 %v1151
    %v1209 = vunpack.c.l.b16 %v1152
    %v1210 = vunpack.c.h.b16 %v1152
    %v1211 = vunpack.c.l.b16 %v1153
    %v1212 = vunpack.c.h.b16 %v1153
    %v1213 = vpack.c.b16 %v1183, %v1181
    %v1214 = vpack.c.b16 %v1184, %v1182
    %v1215 = vpack.c.b16 %v1187, %v1185
    %v1216 = vpack.c.b16 %v1188, %v1186
    %v1217 = vpack.c.b16 %v1191, %v1189
    %v1218 = vpack.c.b16 %v1192, %v1190
    %v1219 = vpack.c.b16 %v1195, %v1193
    %v1220 = vpack.c.b16 %v1196, %v1194
    %v1221 = vpack.c.b16 %v1199, %v1197
    %v1222 = vpack.c.b16 %v1200, %v1198
    %v1223 = vpack.c.b16 %v1203, %v1201
    %v1224 = vpack.c.b16 %v1204, %v1202
    %v1225 = vpack.c.b16 %v1207, %v1205
    %v1226 = vpack.c.b16 %v1208, %v1206
    %v1227 = vpack.c.b16 %v1211, %v1209
    %v1228 = vpack.c.b16 %v1212, %v1210
    %1245 = vmatprep.subr.bf16.mxu0 %v1228
    %1246 = vmatpush1.bf16.msra.mxu0 %v1227
    %1247 = vmatprep.subr.bf16.mxu0 %v1226
    %1248 = vmatpush1.bf16.msra.mxu0 %v1225
    %1249 = vmatprep.subr.bf16.mxu0 %v1224
    %1250 = vmatpush1.bf16.msra.mxu0 %v1223
    %1251 = vmatprep.subr.bf16.mxu0 %v1222
    %1252 = vmatpush1.bf16.msra.mxu0 %v1221
    %1253 = vmatprep.subr.bf16.mxu0 %v1220
    %1254 = vmatpush1.bf16.msra.mxu0 %v1219
    %1255 = vmatprep.subr.bf16.mxu0 %v1218
    %1256 = vmatpush1.bf16.msra.mxu0 %v1217
    %1257 = vmatprep.subr.bf16.mxu0 %v1216
    %1258 = vmatpush1.bf16.msra.mxu0 %v1215
    %1259 = vmatprep.subr.bf16.mxu0 %v1214
    %1260 = vmatpush1.bf16.msra.mxu0 %v1213
    %1261 = vmatprep.subr.bf16.mxu0 0
    %1262 = vmatpush2.bf16.msra.mxu0 0
    %1263 = vmatprep.subr.bf16.mxu0 0
    %1264 = vmatpush2.bf16.msra.mxu0 0
    %1265 = vmatprep.subr.bf16.mxu0 0
    %1266 = vmatpush2.bf16.msra.mxu0 0
    %1267 = vmatprep.subr.bf16.mxu0 0
    %1268 = vmatpush2.bf16.msra.mxu0 0
    %1269 = vmatprep.subr.bf16.mxu0 0
    %1270 = vmatpush2.bf16.msra.mxu0 0
    %1271 = vmatprep.subr.bf16.mxu0 0
    %1272 = vmatpush2.bf16.msra.mxu0 0
    %1273 = vmatprep.subr.bf16.mxu0 0
    %1274 = vmatpush2.bf16.msra.mxu0 0
    %1275 = vmatprep.subr.bf16.mxu0 0
    %1276 = vmatpush2.bf16.msra.mxu0 0
    %1277 = vmatprep.mubr.bf16.mxu0 0
    %1278 = vmatmul.mubr.bf16.gmra.mxu0 %v1136
    %v1279 = vpop.f32.mrf.mxu0
    %v1280 = vadd.f32 %v1158, %v1279
    %v1281 = vpop.f32.mrf.mxu0
    %v1282 = vadd.f32 %v1162, %v1281
    %v1283 = vpop.f32.mrf.mxu0
    %v1284 = vadd.f32 %v1158, %v1283
    %v1285 = vpop.f32.mrf.mxu0
    %v1286 = vadd.f32 %v1162, %v1285
    %1287 = vdwg.mxu0
    %v1288 = vpack.c.bf16 %v1284, %v1280
    %v1289 = vpack.c.bf16 %v1286, %v1282
    %v1290 = vmul.bf16 %v1288, 1045249613
    %v1291 = vmul.bf16 %v1289, 1045249613
    %v1292 = vmax.bf16 %v1288, %v1290
    %v1293 = vmax.bf16 %v1289, %v1291
    %v1294 = vld [vmem:[#allocation16 + $0x9] sm:$0xf]
    %v1295 = vld [vmem:[#allocation11] sm:$0xff]
    %v1296 = vld [vmem:[#allocation11 + $0x8] sm:$0xff]
    %v1297 = vld [vmem:[#allocation11 + $0x10] sm:$0xff]
    %v1298 = vld [vmem:[#allocation11 + $0x18] sm:$0xff]
    %v1299 = vld [vmem:[#allocation11 + $0x20] sm:$0xff]
    %v1300 = vld [vmem:[#allocation11 + $0x28] sm:$0xff]
    %v1301 = vld [vmem:[#allocation11 + $0x30] sm:$0xff]
    %v1302 = vld [vmem:[#allocation11 + $0x38] sm:$0xff]
    %v1303 = vld [vmem:[#allocation11 + $0x40] sm:$0xff]
    %v1304 = vld [vmem:[#allocation11 + $0x48] sm:$0xff]
    %v1305 = vld [vmem:[#allocation11 + $0x50] sm:$0xff]
    %v1306 = vld [vmem:[#allocation11 + $0x58] sm:$0xff]
    %v1307 = vld [vmem:[#allocation11 + $0x60] sm:$0xff]
    %v1308 = vld [vmem:[#allocation11 + $0x68] sm:$0xff]
    %v1309 = vld [vmem:[#allocation11 + $0x70] sm:$0xff]
    %v1310 = vld [vmem:[#allocation11 + $0x78] sm:$0xff]
    %v1311 = vld [vmem:[#allocation11 + $0x80] sm:$0xff]
    %v1312 = vld [vmem:[#allocation11 + $0x88] sm:$0xff]
    %v1313 = vld [vmem:[#allocation11 + $0x90] sm:$0xff]
    %v1314 = vld [vmem:[#allocation11 + $0x98] sm:$0xff]
    %v1315 = vld [vmem:[#allocation11 + $0xa0] sm:$0xff]
    %v1316 = vld [vmem:[#allocation11 + $0xa8] sm:$0xff]
    %v1317 = vld [vmem:[#allocation11 + $0xb0] sm:$0xff]
    %v1318 = vld [vmem:[#allocation11 + $0xb8] sm:$0xff]
    %v1319 = vld [vmem:[#allocation11 + $0xc0] sm:$0xff]
    %v1320 = vld [vmem:[#allocation11 + $0xc8] sm:$0xff]
    %v1321 = vld [vmem:[#allocation11 + $0xd0] sm:$0xff]
    %v1322 = vld [vmem:[#allocation11 + $0xd8] sm:$0xff]
    %v1323 = vld [vmem:[#allocation11 + $0xe0] sm:$0xff]
    %v1324 = vld [vmem:[#allocation11 + $0xe8] sm:$0xff]
    %v1325 = vld [vmem:[#allocation11 + $0xf0] sm:$0xff]
    %v1326 = vld [vmem:[#allocation11 + $0xf8] sm:$0xff]
    %v1327 = vld [vmem:[#allocation11 + $0x100] sm:$0xff]
    %v1328 = vld [vmem:[#allocation11 + $0x108] sm:$0xff]
    %v1329 = vld [vmem:[#allocation11 + $0x110] sm:$0xff]
    %v1330 = vld [vmem:[#allocation11 + $0x118] sm:$0xff]
    %v1331 = vld [vmem:[#allocation11 + $0x120] sm:$0xff]
    %v1332 = vld [vmem:[#allocation11 + $0x128] sm:$0xff]
    %v1333 = vld [vmem:[#allocation11 + $0x130] sm:$0xff]
    %v1334 = vld [vmem:[#allocation11 + $0x138] sm:$0xff]
    %v1335 = vld [vmem:[#allocation11 + $0x140] sm:$0xff]
    %v1336 = vld [vmem:[#allocation11 + $0x148] sm:$0xff]
    %v1337 = vld [vmem:[#allocation11 + $0x150] sm:$0xff]
    %v1338 = vld [vmem:[#allocation11 + $0x158] sm:$0xff]
    %v1339 = vld [vmem:[#allocation11 + $0x160] sm:$0xff]
    %v1340 = vld [vmem:[#allocation11 + $0x168] sm:$0xff]
    %v1341 = vld [vmem:[#allocation11 + $0x170] sm:$0xff]
    %v1342 = vld [vmem:[#allocation11 + $0x178] sm:$0xff]
    %v1343 = vld [vmem:[#allocation11 + $0x180] sm:$0xff]
    %v1344 = vld [vmem:[#allocation11 + $0x188] sm:$0xff]
    %v1345 = vld [vmem:[#allocation11 + $0x190] sm:$0xff]
    %v1346 = vld [vmem:[#allocation11 + $0x198] sm:$0xff]
    %v1347 = vld [vmem:[#allocation11 + $0x1a0] sm:$0xff]
    %v1348 = vld [vmem:[#allocation11 + $0x1a8] sm:$0xff]
    %v1349 = vld [vmem:[#allocation11 + $0x1b0] sm:$0xff]
    %v1350 = vld [vmem:[#allocation11 + $0x1b8] sm:$0xff]
    %v1351 = vld [vmem:[#allocation11 + $0x1c0] sm:$0xff]
    %v1352 = vld [vmem:[#allocation11 + $0x1c8] sm:$0xff]
    %v1353 = vld [vmem:[#allocation11 + $0x1d0] sm:$0xff]
    %v1354 = vld [vmem:[#allocation11 + $0x1d8] sm:$0xff]
    %v1355 = vld [vmem:[#allocation11 + $0x1e0] sm:$0xff]
    %v1356 = vld [vmem:[#allocation11 + $0x1e8] sm:$0xff]
    %v1357 = vld [vmem:[#allocation11 + $0x1f0] sm:$0xff]
    %v1358 = vld [vmem:[#allocation11 + $0x1f8] sm:$0xff]
    %v1360 = vlaneseq
    %v1361 = vshrl.u32 %v1360, 7
    %v1362 = vsub.s32 0, %v1361
    %v1363 = vrot.slane %v1294, %v1362
    %v1364 = vlaneseq
    %v1365 = vshrl.u32 %v1364, 7
    %v1366 = vsub.s32 1, %v1365
    %v1367 = vrot.slane %v1294, %v1366
    %v1368 = vlaneseq
    %v1369 = vshrl.u32 %v1368, 7
    %v1370 = vsub.s32 2, %v1369
    %v1371 = vrot.slane %v1294, %v1370
    %v1372 = vlaneseq
    %v1373 = vshrl.u32 %v1372, 7
    %v1374 = vsub.s32 3, %v1373
    %v1375 = vrot.slane %v1294, %v1374
    %v1444 = vunpack.c.l.b16 %v1295
    %v1445 = vunpack.c.h.b16 %v1295
    %v1446 = vunpack.c.l.b16 %v1296
    %v1447 = vunpack.c.h.b16 %v1296
    %v1448 = vunpack.c.l.b16 %v1297
    %v1449 = vunpack.c.h.b16 %v1297
    %v1450 = vunpack.c.l.b16 %v1298
    %v1451 = vunpack.c.h.b16 %v1298
    %v1452 = vunpack.c.l.b16 %v1299
    %v1453 = vunpack.c.h.b16 %v1299
    %v1454 = vunpack.c.l.b16 %v1300
    %v1455 = vunpack.c.h.b16 %v1300
    %v1456 = vunpack.c.l.b16 %v1301
    %v1457 = vunpack.c.h.b16 %v1301
    %v1458 = vunpack.c.l.b16 %v1302
    %v1459 = vunpack.c.h.b16 %v1302
    %v1460 = vunpack.c.l.b16 %v1303
    %v1461 = vunpack.c.h.b16 %v1303
    %v1462 = vunpack.c.l.b16 %v1304
    %v1463 = vunpack.c.h.b16 %v1304
    %v1464 = vunpack.c.l.b16 %v1305
    %v1465 = vunpack.c.h.b16 %v1305
    %v1466 = vunpack.c.l.b16 %v1306
    %v1467 = vunpack.c.h.b16 %v1306
    %v1468 = vunpack.c.l.b16 %v1307
    %v1469 = vunpack.c.h.b16 %v1307
    %v1470 = vunpack.c.l.b16 %v1308
    %v1471 = vunpack.c.h.b16 %v1308
    %v1472 = vunpack.c.l.b16 %v1309
    %v1473 = vunpack.c.h.b16 %v1309
    %v1474 = vunpack.c.l.b16 %v1310
    %v1475 = vunpack.c.h.b16 %v1310
    %v1476 = vunpack.c.l.b16 %v1311
    %v1477 = vunpack.c.h.b16 %v1311
    %v1478 = vunpack.c.l.b16 %v1312
    %v1479 = vunpack.c.h.b16 %v1312
    %v1480 = vunpack.c.l.b16 %v1313
    %v1481 = vunpack.c.h.b16 %v1313
    %v1482 = vunpack.c.l.b16 %v1314
    %v1483 = vunpack.c.h.b16 %v1314
    %v1484 = vunpack.c.l.b16 %v1315
    %v1485 = vunpack.c.h.b16 %v1315
    %v1486 = vunpack.c.l.b16 %v1316
    %v1487 = vunpack.c.h.b16 %v1316
    %v1488 = vunpack.c.l.b16 %v1317
    %v1489 = vunpack.c.h.b16 %v1317
    %v1490 = vunpack.c.l.b16 %v1318
    %v1491 = vunpack.c.h.b16 %v1318
    %v1492 = vunpack.c.l.b16 %v1319
    %v1493 = vunpack.c.h.b16 %v1319
    %v1494 = vunpack.c.l.b16 %v1320
    %v1495 = vunpack.c.h.b16 %v1320
    %v1496 = vunpack.c.l.b16 %v1321
    %v1497 = vunpack.c.h.b16 %v1321
    %v1498 = vunpack.c.l.b16 %v1322
    %v1499 = vunpack.c.h.b16 %v1322
    %v1500 = vunpack.c.l.b16 %v1323
    %v1501 = vunpack.c.h.b16 %v1323
    %v1502 = vunpack.c.l.b16 %v1324
    %v1503 = vunpack.c.h.b16 %v1324
    %v1504 = vunpack.c.l.b16 %v1325
    %v1505 = vunpack.c.h.b16 %v1325
    %v1506 = vunpack.c.l.b16 %v1326
    %v1507 = vunpack.c.h.b16 %v1326
    %v1508 = vunpack.c.l.b16 %v1327
    %v1509 = vunpack.c.h.b16 %v1327
    %v1510 = vunpack.c.l.b16 %v1328
    %v1511 = vunpack.c.h.b16 %v1328
    %v1512 = vunpack.c.l.b16 %v1329
    %v1513 = vunpack.c.h.b16 %v1329
    %v1514 = vunpack.c.l.b16 %v1330
    %v1515 = vunpack.c.h.b16 %v1330
    %v1516 = vunpack.c.l.b16 %v1331
    %v1517 = vunpack.c.h.b16 %v1331
    %v1518 = vunpack.c.l.b16 %v1332
    %v1519 = vunpack.c.h.b16 %v1332
    %v1520 = vunpack.c.l.b16 %v1333
    %v1521 = vunpack.c.h.b16 %v1333
    %v1522 = vunpack.c.l.b16 %v1334
    %v1523 = vunpack.c.h.b16 %v1334
    %v1524 = vunpack.c.l.b16 %v1335
    %v1525 = vunpack.c.h.b16 %v1335
    %v1526 = vunpack.c.l.b16 %v1336
    %v1527 = vunpack.c.h.b16 %v1336
    %v1528 = vunpack.c.l.b16 %v1337
    %v1529 = vunpack.c.h.b16 %v1337
    %v1530 = vunpack.c.l.b16 %v1338
    %v1531 = vunpack.c.h.b16 %v1338
    %v1532 = vunpack.c.l.b16 %v1339
    %v1533 = vunpack.c.h.b16 %v1339
    %v1534 = vunpack.c.l.b16 %v1340
    %v1535 = vunpack.c.h.b16 %v1340
    %v1536 = vunpack.c.l.b16 %v1341
    %v1537 = vunpack.c.h.b16 %v1341
    %v1538 = vunpack.c.l.b16 %v1342
    %v1539 = vunpack.c.h.b16 %v1342
    %v1540 = vunpack.c.l.b16 %v1343
    %v1541 = vunpack.c.h.b16 %v1343
    %v1542 = vunpack.c.l.b16 %v1344
    %v1543 = vunpack.c.h.b16 %v1344
    %v1544 = vunpack.c.l.b16 %v1345
    %v1545 = vunpack.c.h.b16 %v1345
    %v1546 = vunpack.c.l.b16 %v1346
    %v1547 = vunpack.c.h.b16 %v1346
    %v1548 = vunpack.c.l.b16 %v1347
    %v1549 = vunpack.c.h.b16 %v1347
    %v1550 = vunpack.c.l.b16 %v1348
    %v1551 = vunpack.c.h.b16 %v1348
    %v1552 = vunpack.c.l.b16 %v1349
    %v1553 = vunpack.c.h.b16 %v1349
    %v1554 = vunpack.c.l.b16 %v1350
    %v1555 = vunpack.c.h.b16 %v1350
    %v1556 = vunpack.c.l.b16 %v1351
    %v1557 = vunpack.c.h.b16 %v1351
    %v1558 = vunpack.c.l.b16 %v1352
    %v1559 = vunpack.c.h.b16 %v1352
    %v1560 = vunpack.c.l.b16 %v1353
    %v1561 = vunpack.c.h.b16 %v1353
    %v1562 = vunpack.c.l.b16 %v1354
    %v1563 = vunpack.c.h.b16 %v1354
    %v1564 = vunpack.c.l.b16 %v1355
    %v1565 = vunpack.c.h.b16 %v1355
    %v1566 = vunpack.c.l.b16 %v1356
    %v1567 = vunpack.c.h.b16 %v1356
    %v1568 = vunpack.c.l.b16 %v1357
    %v1569 = vunpack.c.h.b16 %v1357
    %v1570 = vunpack.c.l.b16 %v1358
    %v1571 = vunpack.c.h.b16 %v1358
    %v1572 = vpack.c.b16 %v1448, %v1444
    %v1573 = vpack.c.b16 %v1449, %v1445
    %v1574 = vpack.c.b16 %v1450, %v1446
    %v1575 = vpack.c.b16 %v1451, %v1447
    %v1576 = vpack.c.b16 %v1456, %v1452
    %v1577 = vpack.c.b16 %v1457, %v1453
    %v1578 = vpack.c.b16 %v1458, %v1454
    %v1579 = vpack.c.b16 %v1459, %v1455
    %v1580 = vpack.c.b16 %v1464, %v1460
    %v1581 = vpack.c.b16 %v1465, %v1461
    %v1582 = vpack.c.b16 %v1466, %v1462
    %v1583 = vpack.c.b16 %v1467, %v1463
    %v1584 = vpack.c.b16 %v1472, %v1468
    %v1585 = vpack.c.b16 %v1473, %v1469
    %v1586 = vpack.c.b16 %v1474, %v1470
    %v1587 = vpack.c.b16 %v1475, %v1471
    %v1588 = vpack.c.b16 %v1480, %v1476
    %v1589 = vpack.c.b16 %v1481, %v1477
    %v1590 = vpack.c.b16 %v1482, %v1478
    %v1591 = vpack.c.b16 %v1483, %v1479
    %v1592 = vpack.c.b16 %v1488, %v1484
    %v1593 = vpack.c.b16 %v1489, %v1485
    %v1594 = vpack.c.b16 %v1490, %v1486
    %v1595 = vpack.c.b16 %v1491, %v1487
    %v1596 = vpack.c.b16 %v1496, %v1492
    %v1597 = vpack.c.b16 %v1497, %v1493
    %v1598 = vpack.c.b16 %v1498, %v1494
    %v1599 = vpack.c.b16 %v1499, %v1495
    %v1600 = vpack.c.b16 %v1504, %v1500
    %v1601 = vpack.c.b16 %v1505, %v1501
    %v1602 = vpack.c.b16 %v1506, %v1502
    %v1603 = vpack.c.b16 %v1507, %v1503
    %v1604 = vpack.c.b16 %v1512, %v1508
    %v1605 = vpack.c.b16 %v1513, %v1509
    %v1606 = vpack.c.b16 %v1514, %v1510
    %v1607 = vpack.c.b16 %v1515, %v1511
    %v1608 = vpack.c.b16 %v1520, %v1516
    %v1609 = vpack.c.b16 %v1521, %v1517
    %v1610 = vpack.c.b16 %v1522, %v1518
    %v1611 = vpack.c.b16 %v1523, %v1519
    %v1612 = vpack.c.b16 %v1528, %v1524
    %v1613 = vpack.c.b16 %v1529, %v1525
    %v1614 = vpack.c.b16 %v1530, %v1526
    %v1615 = vpack.c.b16 %v1531, %v1527
    %v1616 = vpack.c.b16 %v1536, %v1532
    %v1617 = vpack.c.b16 %v1537, %v1533
    %v1618 = vpack.c.b16 %v1538, %v1534
    %v1619 = vpack.c.b16 %v1539, %v1535
    %v1620 = vpack.c.b16 %v1544, %v1540
    %v1621 = vpack.c.b16 %v1545, %v1541
    %v1622 = vpack.c.b16 %v1546, %v1542
    %v1623 = vpack.c.b16 %v1547, %v1543
    %v1624 = vpack.c.b16 %v1552, %v1548
    %v1625 = vpack.c.b16 %v1553, %v1549
    %v1626 = vpack.c.b16 %v1554, %v1550
    %v1627 = vpack.c.b16 %v1555, %v1551
    %v1628 = vpack.c.b16 %v1560, %v1556
    %v1629 = vpack.c.b16 %v1561, %v1557
    %v1630 = vpack.c.b16 %v1562, %v1558
    %v1631 = vpack.c.b16 %v1563, %v1559
    %v1632 = vpack.c.b16 %v1568, %v1564
    %v1633 = vpack.c.b16 %v1569, %v1565
    %v1634 = vpack.c.b16 %v1570, %v1566
    %v1635 = vpack.c.b16 %v1571, %v1567
    %1700 = vmatprep.subr.bf16.mxu0 %v1601
    %1701 = vmatpush1.bf16.msra.mxu0 %v1600
    %1702 = vmatprep.subr.bf16.mxu0 %v1597
    %1703 = vmatpush1.bf16.msra.mxu0 %v1596
    %1704 = vmatprep.subr.bf16.mxu0 %v1593
    %1705 = vmatpush1.bf16.msra.mxu0 %v1592
    %1706 = vmatprep.subr.bf16.mxu0 %v1589
    %1707 = vmatpush1.bf16.msra.mxu0 %v1588
    %1708 = vmatprep.subr.bf16.mxu0 %v1585
    %1709 = vmatpush1.bf16.msra.mxu0 %v1584
    %1710 = vmatprep.subr.bf16.mxu0 %v1581
    %1711 = vmatpush1.bf16.msra.mxu0 %v1580
    %1712 = vmatprep.subr.bf16.mxu0 %v1577
    %1713 = vmatpush1.bf16.msra.mxu0 %v1576
    %1714 = vmatprep.subr.bf16.mxu0 %v1573
    %1715 = vmatpush1.bf16.msra.mxu0 %v1572
    %1716 = vmatprep.subr.bf16.mxu0 %v1633
    %1717 = vmatpush2.bf16.msra.mxu0 %v1632
    %1718 = vmatprep.subr.bf16.mxu0 %v1629
    %1719 = vmatpush2.bf16.msra.mxu0 %v1628
    %1720 = vmatprep.subr.bf16.mxu0 %v1625
    %1721 = vmatpush2.bf16.msra.mxu0 %v1624
    %1722 = vmatprep.subr.bf16.mxu0 %v1621
    %1723 = vmatpush2.bf16.msra.mxu0 %v1620
    %1724 = vmatprep.subr.bf16.mxu0 %v1617
    %1725 = vmatpush2.bf16.msra.mxu0 %v1616
    %1726 = vmatprep.subr.bf16.mxu0 %v1613
    %1727 = vmatpush2.bf16.msra.mxu0 %v1612
    %1728 = vmatprep.subr.bf16.mxu0 %v1609
    %1729 = vmatpush2.bf16.msra.mxu0 %v1608
    %1730 = vmatprep.subr.bf16.mxu0 %v1605
    %1731 = vmatpush2.bf16.msra.mxu0 %v1604
    %1732 = vmatprep.mubr.bf16.mxu0 %v1293
    %1733 = vmatmul.mubr.bf16.gmra.mxu0 %v1292
    %v1734 = vpop.f32.mrf.mxu0
    %v1735 = vadd.f32 %v1363, %v1734
    %v1736 = vpop.f32.mrf.mxu0
    %v1737 = vadd.f32 %v1367, %v1736
    %v1738 = vpop.f32.mrf.mxu0
    %v1739 = vadd.f32 %v1363, %v1738
    %v1740 = vpop.f32.mrf.mxu0
    %v1741 = vadd.f32 %v1367, %v1740
    %1742 = vdwg.mxu0
    %1743 = vmatprep.subr.bf16.mxu0 %v1603
    %1744 = vmatpush1.bf16.msra.mxu0 %v1602
    %1745 = vmatprep.subr.bf16.mxu0 %v1599
    %1746 = vmatpush1.bf16.msra.mxu0 %v1598
    %1747 = vmatprep.subr.bf16.mxu0 %v1595
    %1748 = vmatpush1.bf16.msra.mxu0 %v1594
    %1749 = vmatprep.subr.bf16.mxu0 %v1591
    %1750 = vmatpush1.bf16.msra.mxu0 %v1590
    %1751 = vmatprep.subr.bf16.mxu0 %v1587
    %1752 = vmatpush1.bf16.msra.mxu0 %v1586
    %1753 = vmatprep.subr.bf16.mxu0 %v1583
    %1754 = vmatpush1.bf16.msra.mxu0 %v1582
    %1755 = vmatprep.subr.bf16.mxu0 %v1579
    %1756 = vmatpush1.bf16.msra.mxu0 %v1578
    %1757 = vmatprep.subr.bf16.mxu0 %v1575
    %1758 = vmatpush1.bf16.msra.mxu0 %v1574
    %1759 = vmatprep.subr.bf16.mxu0 %v1635
    %1760 = vmatpush2.bf16.msra.mxu0 %v1634
    %1761 = vmatprep.subr.bf16.mxu0 %v1631
    %1762 = vmatpush2.bf16.msra.mxu0 %v1630
    %1763 = vmatprep.subr.bf16.mxu0 %v1627
    %1764 = vmatpush2.bf16.msra.mxu0 %v1626
    %1765 = vmatprep.subr.bf16.mxu0 %v1623
    %1766 = vmatpush2.bf16.msra.mxu0 %v1622
    %1767 = vmatprep.subr.bf16.mxu0 %v1619
    %1768 = vmatpush2.bf16.msra.mxu0 %v1618
    %1769 = vmatprep.subr.bf16.mxu0 %v1615
    %1770 = vmatpush2.bf16.msra.mxu0 %v1614
    %1771 = vmatprep.subr.bf16.mxu0 %v1611
    %1772 = vmatpush2.bf16.msra.mxu0 %v1610
    %1773 = vmatprep.subr.bf16.mxu0 %v1607
    %1774 = vmatpush2.bf16.msra.mxu0 %v1606
    %1775 = vmatprep.mubr.bf16.mxu0 %v1293
    %1776 = vmatmul.mubr.bf16.gmra.mxu0 %v1292
    %v1777 = vpop.f32.mrf.mxu0
    %v1778 = vadd.f32 %v1371, %v1777
    %v1779 = vpop.f32.mrf.mxu0
    %v1780 = vadd.f32 %v1375, %v1779
    %v1781 = vpop.f32.mrf.mxu0
    %v1782 = vadd.f32 %v1371, %v1781
    %v1783 = vpop.f32.mrf.mxu0
    %v1784 = vadd.f32 %v1375, %v1783
    %1785 = vdwg.mxu0
    %v1786 = vpack.c.bf16 %v1739, %v1735
    %v1787 = vpack.c.bf16 %v1741, %v1737
    %v1788 = vpack.c.bf16 %v1782, %v1778
    %v1789 = vpack.c.bf16 %v1784, %v1780
    %v1790 = vmul.bf16 %v1786, 1045249613
    %v1791 = vmul.bf16 %v1787, 1045249613
    %v1792 = vmul.bf16 %v1788, 1045249613
    %v1793 = vmul.bf16 %v1789, 1045249613
    %v1794 = vmax.bf16 %v1786, %v1790
    %v1795 = vmax.bf16 %v1787, %v1791
    %v1796 = vmax.bf16 %v1788, %v1792
    %v1797 = vmax.bf16 %v1789, %v1793
    %v1798 = vld [vmem:[#allocation16 + $0xd] sm:$0xff]
    %v1799 = vld [vmem:[#allocation13] sm:$0xff]
    %v1800 = vld [vmem:[#allocation13 + $0x8] sm:$0xff]
    %v1801 = vld [vmem:[#allocation13 + $0x10] sm:$0xff]
    %v1802 = vld [vmem:[#allocation13 + $0x18] sm:$0xff]
    %v1803 = vld [vmem:[#allocation13 + $0x20] sm:$0xff]
    %v1804 = vld [vmem:[#allocation13 + $0x28] sm:$0xff]
    %v1805 = vld [vmem:[#allocation13 + $0x30] sm:$0xff]
    %v1806 = vld [vmem:[#allocation13 + $0x38] sm:$0xff]
    %v1807 = vld [vmem:[#allocation13 + $0x40] sm:$0xff]
    %v1808 = vld [vmem:[#allocation13 + $0x48] sm:$0xff]
    %v1809 = vld [vmem:[#allocation13 + $0x50] sm:$0xff]
    %v1810 = vld [vmem:[#allocation13 + $0x58] sm:$0xff]
    %v1811 = vld [vmem:[#allocation13 + $0x60] sm:$0xff]
    %v1812 = vld [vmem:[#allocation13 + $0x68] sm:$0xff]
    %v1813 = vld [vmem:[#allocation13 + $0x70] sm:$0xff]
    %v1814 = vld [vmem:[#allocation13 + $0x78] sm:$0xff]
    %v1815 = vld [vmem:[#allocation13 + $0x80] sm:$0xff]
    %v1816 = vld [vmem:[#allocation13 + $0x88] sm:$0xff]
    %v1817 = vld [vmem:[#allocation13 + $0x90] sm:$0xff]
    %v1818 = vld [vmem:[#allocation13 + $0x98] sm:$0xff]
    %v1819 = vld [vmem:[#allocation13 + $0xa0] sm:$0xff]
    %v1820 = vld [vmem:[#allocation13 + $0xa8] sm:$0xff]
    %v1821 = vld [vmem:[#allocation13 + $0xb0] sm:$0xff]
    %v1822 = vld [vmem:[#allocation13 + $0xb8] sm:$0xff]
    %v1823 = vld [vmem:[#allocation13 + $0xc0] sm:$0xff]
    %v1824 = vld [vmem:[#allocation13 + $0xc8] sm:$0xff]
    %v1825 = vld [vmem:[#allocation13 + $0xd0] sm:$0xff]
    %v1826 = vld [vmem:[#allocation13 + $0xd8] sm:$0xff]
    %v1827 = vld [vmem:[#allocation13 + $0xe0] sm:$0xff]
    %v1828 = vld [vmem:[#allocation13 + $0xe8] sm:$0xff]
    %v1829 = vld [vmem:[#allocation13 + $0xf0] sm:$0xff]
    %v1830 = vld [vmem:[#allocation13 + $0xf8] sm:$0xff]
    %v1831 = vld [vmem:[#allocation13 + $0x100] sm:$0xff]
    %v1832 = vld [vmem:[#allocation13 + $0x108] sm:$0xff]
    %v1833 = vld [vmem:[#allocation13 + $0x110] sm:$0xff]
    %v1834 = vld [vmem:[#allocation13 + $0x118] sm:$0xff]
    %v1835 = vld [vmem:[#allocation13 + $0x120] sm:$0xff]
    %v1836 = vld [vmem:[#allocation13 + $0x128] sm:$0xff]
    %v1837 = vld [vmem:[#allocation13 + $0x130] sm:$0xff]
    %v1838 = vld [vmem:[#allocation13 + $0x138] sm:$0xff]
    %v1839 = vld [vmem:[#allocation13 + $0x140] sm:$0xff]
    %v1840 = vld [vmem:[#allocation13 + $0x148] sm:$0xff]
    %v1841 = vld [vmem:[#allocation13 + $0x150] sm:$0xff]
    %v1842 = vld [vmem:[#allocation13 + $0x158] sm:$0xff]
    %v1843 = vld [vmem:[#allocation13 + $0x160] sm:$0xff]
    %v1844 = vld [vmem:[#allocation13 + $0x168] sm:$0xff]
    %v1845 = vld [vmem:[#allocation13 + $0x170] sm:$0xff]
    %v1846 = vld [vmem:[#allocation13 + $0x178] sm:$0xff]
    %v1847 = vld [vmem:[#allocation13 + $0x180] sm:$0xff]
    %v1848 = vld [vmem:[#allocation13 + $0x188] sm:$0xff]
    %v1849 = vld [vmem:[#allocation13 + $0x190] sm:$0xff]
    %v1850 = vld [vmem:[#allocation13 + $0x198] sm:$0xff]
    %v1851 = vld [vmem:[#allocation13 + $0x1a0] sm:$0xff]
    %v1852 = vld [vmem:[#allocation13 + $0x1a8] sm:$0xff]
    %v1853 = vld [vmem:[#allocation13 + $0x1b0] sm:$0xff]
    %v1854 = vld [vmem:[#allocation13 + $0x1b8] sm:$0xff]
    %v1855 = vld [vmem:[#allocation13 + $0x1c0] sm:$0xff]
    %v1856 = vld [vmem:[#allocation13 + $0x1c8] sm:$0xff]
    %v1857 = vld [vmem:[#allocation13 + $0x1d0] sm:$0xff]
    %v1858 = vld [vmem:[#allocation13 + $0x1d8] sm:$0xff]
    %v1859 = vld [vmem:[#allocation13 + $0x1e0] sm:$0xff]
    %v1860 = vld [vmem:[#allocation13 + $0x1e8] sm:$0xff]
    %v1861 = vld [vmem:[#allocation13 + $0x1f0] sm:$0xff]
    %v1862 = vld [vmem:[#allocation13 + $0x1f8] sm:$0xff]
    %v1863 = vld [vmem:[#allocation13 + $0x200] sm:$0xff]
    %v1864 = vld [vmem:[#allocation13 + $0x208] sm:$0xff]
    %v1865 = vld [vmem:[#allocation13 + $0x210] sm:$0xff]
    %v1866 = vld [vmem:[#allocation13 + $0x218] sm:$0xff]
    %v1867 = vld [vmem:[#allocation13 + $0x220] sm:$0xff]
    %v1868 = vld [vmem:[#allocation13 + $0x228] sm:$0xff]
    %v1869 = vld [vmem:[#allocation13 + $0x230] sm:$0xff]
    %v1870 = vld [vmem:[#allocation13 + $0x238] sm:$0xff]
    %v1871 = vld [vmem:[#allocation13 + $0x240] sm:$0xff]
    %v1872 = vld [vmem:[#allocation13 + $0x248] sm:$0xff]
    %v1873 = vld [vmem:[#allocation13 + $0x250] sm:$0xff]
    %v1874 = vld [vmem:[#allocation13 + $0x258] sm:$0xff]
    %v1875 = vld [vmem:[#allocation13 + $0x260] sm:$0xff]
    %v1876 = vld [vmem:[#allocation13 + $0x268] sm:$0xff]
    %v1877 = vld [vmem:[#allocation13 + $0x270] sm:$0xff]
    %v1878 = vld [vmem:[#allocation13 + $0x278] sm:$0xff]
    %v1879 = vld [vmem:[#allocation13 + $0x280] sm:$0xff]
    %v1880 = vld [vmem:[#allocation13 + $0x288] sm:$0xff]
    %v1881 = vld [vmem:[#allocation13 + $0x290] sm:$0xff]
    %v1882 = vld [vmem:[#allocation13 + $0x298] sm:$0xff]
    %v1883 = vld [vmem:[#allocation13 + $0x2a0] sm:$0xff]
    %v1884 = vld [vmem:[#allocation13 + $0x2a8] sm:$0xff]
    %v1885 = vld [vmem:[#allocation13 + $0x2b0] sm:$0xff]
    %v1886 = vld [vmem:[#allocation13 + $0x2b8] sm:$0xff]
    %v1887 = vld [vmem:[#allocation13 + $0x2c0] sm:$0xff]
    %v1888 = vld [vmem:[#allocation13 + $0x2c8] sm:$0xff]
    %v1889 = vld [vmem:[#allocation13 + $0x2d0] sm:$0xff]
    %v1890 = vld [vmem:[#allocation13 + $0x2d8] sm:$0xff]
    %v1891 = vld [vmem:[#allocation13 + $0x2e0] sm:$0xff]
    %v1892 = vld [vmem:[#allocation13 + $0x2e8] sm:$0xff]
    %v1893 = vld [vmem:[#allocation13 + $0x2f0] sm:$0xff]
    %v1894 = vld [vmem:[#allocation13 + $0x2f8] sm:$0xff]
    %v1895 = vld [vmem:[#allocation13 + $0x300] sm:$0xff]
    %v1896 = vld [vmem:[#allocation13 + $0x308] sm:$0xff]
    %v1897 = vld [vmem:[#allocation13 + $0x310] sm:$0xff]
    %v1898 = vld [vmem:[#allocation13 + $0x318] sm:$0xff]
    %v1899 = vld [vmem:[#allocation13 + $0x320] sm:$0xff]
    %v1900 = vld [vmem:[#allocation13 + $0x328] sm:$0xff]
    %v1901 = vld [vmem:[#allocation13 + $0x330] sm:$0xff]
    %v1902 = vld [vmem:[#allocation13 + $0x338] sm:$0xff]
    %v1903 = vld [vmem:[#allocation13 + $0x340] sm:$0xff]
    %v1904 = vld [vmem:[#allocation13 + $0x348] sm:$0xff]
    %v1905 = vld [vmem:[#allocation13 + $0x350] sm:$0xff]
    %v1906 = vld [vmem:[#allocation13 + $0x358] sm:$0xff]
    %v1907 = vld [vmem:[#allocation13 + $0x360] sm:$0xff]
    %v1908 = vld [vmem:[#allocation13 + $0x368] sm:$0xff]
    %v1909 = vld [vmem:[#allocation13 + $0x370] sm:$0xff]
    %v1910 = vld [vmem:[#allocation13 + $0x378] sm:$0xff]
    %v1911 = vld [vmem:[#allocation13 + $0x380] sm:$0xff]
    %v1912 = vld [vmem:[#allocation13 + $0x388] sm:$0xff]
    %v1913 = vld [vmem:[#allocation13 + $0x390] sm:$0xff]
    %v1914 = vld [vmem:[#allocation13 + $0x398] sm:$0xff]
    %v1915 = vld [vmem:[#allocation13 + $0x3a0] sm:$0xff]
    %v1916 = vld [vmem:[#allocation13 + $0x3a8] sm:$0xff]
    %v1917 = vld [vmem:[#allocation13 + $0x3b0] sm:$0xff]
    %v1918 = vld [vmem:[#allocation13 + $0x3b8] sm:$0xff]
    %v1919 = vld [vmem:[#allocation13 + $0x3c0] sm:$0xff]
    %v1920 = vld [vmem:[#allocation13 + $0x3c8] sm:$0xff]
    %v1921 = vld [vmem:[#allocation13 + $0x3d0] sm:$0xff]
    %v1922 = vld [vmem:[#allocation13 + $0x3d8] sm:$0xff]
    %v1923 = vld [vmem:[#allocation13 + $0x3e0] sm:$0xff]
    %v1924 = vld [vmem:[#allocation13 + $0x3e8] sm:$0xff]
    %v1925 = vld [vmem:[#allocation13 + $0x3f0] sm:$0xff]
    %v1926 = vld [vmem:[#allocation13 + $0x3f8] sm:$0xff]
    %v1927 = vld [vmem:[#allocation13 + $0x400] sm:$0xff]
    %v1928 = vld [vmem:[#allocation13 + $0x408] sm:$0xff]
    %v1929 = vld [vmem:[#allocation13 + $0x410] sm:$0xff]
    %v1930 = vld [vmem:[#allocation13 + $0x418] sm:$0xff]
    %v1931 = vld [vmem:[#allocation13 + $0x420] sm:$0xff]
    %v1932 = vld [vmem:[#allocation13 + $0x428] sm:$0xff]
    %v1933 = vld [vmem:[#allocation13 + $0x430] sm:$0xff]
    %v1934 = vld [vmem:[#allocation13 + $0x438] sm:$0xff]
    %v1935 = vld [vmem:[#allocation13 + $0x440] sm:$0xff]
    %v1936 = vld [vmem:[#allocation13 + $0x448] sm:$0xff]
    %v1937 = vld [vmem:[#allocation13 + $0x450] sm:$0xff]
    %v1938 = vld [vmem:[#allocation13 + $0x458] sm:$0xff]
    %v1939 = vld [vmem:[#allocation13 + $0x460] sm:$0xff]
    %v1940 = vld [vmem:[#allocation13 + $0x468] sm:$0xff]
    %v1941 = vld [vmem:[#allocation13 + $0x470] sm:$0xff]
    %v1942 = vld [vmem:[#allocation13 + $0x478] sm:$0xff]
    %v1943 = vld [vmem:[#allocation13 + $0x480] sm:$0xff]
    %v1944 = vld [vmem:[#allocation13 + $0x488] sm:$0xff]
    %v1945 = vld [vmem:[#allocation13 + $0x490] sm:$0xff]
    %v1946 = vld [vmem:[#allocation13 + $0x498] sm:$0xff]
    %v1947 = vld [vmem:[#allocation13 + $0x4a0] sm:$0xff]
    %v1948 = vld [vmem:[#allocation13 + $0x4a8] sm:$0xff]
    %v1949 = vld [vmem:[#allocation13 + $0x4b0] sm:$0xff]
    %v1950 = vld [vmem:[#allocation13 + $0x4b8] sm:$0xff]
    %v1951 = vld [vmem:[#allocation13 + $0x4c0] sm:$0xff]
    %v1952 = vld [vmem:[#allocation13 + $0x4c8] sm:$0xff]
    %v1953 = vld [vmem:[#allocation13 + $0x4d0] sm:$0xff]
    %v1954 = vld [vmem:[#allocation13 + $0x4d8] sm:$0xff]
    %v1955 = vld [vmem:[#allocation13 + $0x4e0] sm:$0xff]
    %v1956 = vld [vmem:[#allocation13 + $0x4e8] sm:$0xff]
    %v1957 = vld [vmem:[#allocation13 + $0x4f0] sm:$0xff]
    %v1958 = vld [vmem:[#allocation13 + $0x4f8] sm:$0xff]
    %v1959 = vld [vmem:[#allocation13 + $0x500] sm:$0xff]
    %v1960 = vld [vmem:[#allocation13 + $0x508] sm:$0xff]
    %v1961 = vld [vmem:[#allocation13 + $0x510] sm:$0xff]
    %v1962 = vld [vmem:[#allocation13 + $0x518] sm:$0xff]
    %v1963 = vld [vmem:[#allocation13 + $0x520] sm:$0xff]
    %v1964 = vld [vmem:[#allocation13 + $0x528] sm:$0xff]
    %v1965 = vld [vmem:[#allocation13 + $0x530] sm:$0xff]
    %v1966 = vld [vmem:[#allocation13 + $0x538] sm:$0xff]
    %v1967 = vld [vmem:[#allocation13 + $0x540] sm:$0xff]
    %v1968 = vld [vmem:[#allocation13 + $0x548] sm:$0xff]
    %v1969 = vld [vmem:[#allocation13 + $0x550] sm:$0xff]
    %v1970 = vld [vmem:[#allocation13 + $0x558] sm:$0xff]
    %v1971 = vld [vmem:[#allocation13 + $0x560] sm:$0xff]
    %v1972 = vld [vmem:[#allocation13 + $0x568] sm:$0xff]
    %v1973 = vld [vmem:[#allocation13 + $0x570] sm:$0xff]
    %v1974 = vld [vmem:[#allocation13 + $0x578] sm:$0xff]
    %v1975 = vld [vmem:[#allocation13 + $0x580] sm:$0xff]
    %v1976 = vld [vmem:[#allocation13 + $0x588] sm:$0xff]
    %v1977 = vld [vmem:[#allocation13 + $0x590] sm:$0xff]
    %v1978 = vld [vmem:[#allocation13 + $0x598] sm:$0xff]
    %v1979 = vld [vmem:[#allocation13 + $0x5a0] sm:$0xff]
    %v1980 = vld [vmem:[#allocation13 + $0x5a8] sm:$0xff]
    %v1981 = vld [vmem:[#allocation13 + $0x5b0] sm:$0xff]
    %v1982 = vld [vmem:[#allocation13 + $0x5b8] sm:$0xff]
    %v1983 = vld [vmem:[#allocation13 + $0x5c0] sm:$0xff]
    %v1984 = vld [vmem:[#allocation13 + $0x5c8] sm:$0xff]
    %v1985 = vld [vmem:[#allocation13 + $0x5d0] sm:$0xff]
    %v1986 = vld [vmem:[#allocation13 + $0x5d8] sm:$0xff]
    %v1987 = vld [vmem:[#allocation13 + $0x5e0] sm:$0xff]
    %v1988 = vld [vmem:[#allocation13 + $0x5e8] sm:$0xff]
    %v1989 = vld [vmem:[#allocation13 + $0x5f0] sm:$0xff]
    %v1990 = vld [vmem:[#allocation13 + $0x5f8] sm:$0xff]
    %v1991 = vld [vmem:[#allocation13 + $0x600] sm:$0xff]
    %v1992 = vld [vmem:[#allocation13 + $0x608] sm:$0xff]
    %v1993 = vld [vmem:[#allocation13 + $0x610] sm:$0xff]
    %v1994 = vld [vmem:[#allocation13 + $0x618] sm:$0xff]
    %v1995 = vld [vmem:[#allocation13 + $0x620] sm:$0xff]
    %v1996 = vld [vmem:[#allocation13 + $0x628] sm:$0xff]
    %v1997 = vld [vmem:[#allocation13 + $0x630] sm:$0xff]
    %v1998 = vld [vmem:[#allocation13 + $0x638] sm:$0xff]
    %v1999 = vld [vmem:[#allocation13 + $0x640] sm:$0xff]
    %v2000 = vld [vmem:[#allocation13 + $0x648] sm:$0xff]
    %v2001 = vld [vmem:[#allocation13 + $0x650] sm:$0xff]
    %v2002 = vld [vmem:[#allocation13 + $0x658] sm:$0xff]
    %v2003 = vld [vmem:[#allocation13 + $0x660] sm:$0xff]
    %v2004 = vld [vmem:[#allocation13 + $0x668] sm:$0xff]
    %v2005 = vld [vmem:[#allocation13 + $0x670] sm:$0xff]
    %v2006 = vld [vmem:[#allocation13 + $0x678] sm:$0xff]
    %v2007 = vld [vmem:[#allocation13 + $0x680] sm:$0xff]
    %v2008 = vld [vmem:[#allocation13 + $0x688] sm:$0xff]
    %v2009 = vld [vmem:[#allocation13 + $0x690] sm:$0xff]
    %v2010 = vld [vmem:[#allocation13 + $0x698] sm:$0xff]
    %v2011 = vld [vmem:[#allocation13 + $0x6a0] sm:$0xff]
    %v2012 = vld [vmem:[#allocation13 + $0x6a8] sm:$0xff]
    %v2013 = vld [vmem:[#allocation13 + $0x6b0] sm:$0xff]
    %v2014 = vld [vmem:[#allocation13 + $0x6b8] sm:$0xff]
    %v2015 = vld [vmem:[#allocation13 + $0x6c0] sm:$0xff]
    %v2016 = vld [vmem:[#allocation13 + $0x6c8] sm:$0xff]
    %v2017 = vld [vmem:[#allocation13 + $0x6d0] sm:$0xff]
    %v2018 = vld [vmem:[#allocation13 + $0x6d8] sm:$0xff]
    %v2019 = vld [vmem:[#allocation13 + $0x6e0] sm:$0xff]
    %v2020 = vld [vmem:[#allocation13 + $0x6e8] sm:$0xff]
    %v2021 = vld [vmem:[#allocation13 + $0x6f0] sm:$0xff]
    %v2022 = vld [vmem:[#allocation13 + $0x6f8] sm:$0xff]
    %v2023 = vld [vmem:[#allocation13 + $0x700] sm:$0xff]
    %v2024 = vld [vmem:[#allocation13 + $0x708] sm:$0xff]
    %v2025 = vld [vmem:[#allocation13 + $0x710] sm:$0xff]
    %v2026 = vld [vmem:[#allocation13 + $0x718] sm:$0xff]
    %v2027 = vld [vmem:[#allocation13 + $0x720] sm:$0xff]
    %v2028 = vld [vmem:[#allocation13 + $0x728] sm:$0xff]
    %v2029 = vld [vmem:[#allocation13 + $0x730] sm:$0xff]
    %v2030 = vld [vmem:[#allocation13 + $0x738] sm:$0xff]
    %v2031 = vld [vmem:[#allocation13 + $0x740] sm:$0xff]
    %v2032 = vld [vmem:[#allocation13 + $0x748] sm:$0xff]
    %v2033 = vld [vmem:[#allocation13 + $0x750] sm:$0xff]
    %v2034 = vld [vmem:[#allocation13 + $0x758] sm:$0xff]
    %v2035 = vld [vmem:[#allocation13 + $0x760] sm:$0xff]
    %v2036 = vld [vmem:[#allocation13 + $0x768] sm:$0xff]
    %v2037 = vld [vmem:[#allocation13 + $0x770] sm:$0xff]
    %v2038 = vld [vmem:[#allocation13 + $0x778] sm:$0xff]
    %v2039 = vld [vmem:[#allocation13 + $0x780] sm:$0xff]
    %v2040 = vld [vmem:[#allocation13 + $0x788] sm:$0xff]
    %v2041 = vld [vmem:[#allocation13 + $0x790] sm:$0xff]
    %v2042 = vld [vmem:[#allocation13 + $0x798] sm:$0xff]
    %v2043 = vld [vmem:[#allocation13 + $0x7a0] sm:$0xff]
    %v2044 = vld [vmem:[#allocation13 + $0x7a8] sm:$0xff]
    %v2045 = vld [vmem:[#allocation13 + $0x7b0] sm:$0xff]
    %v2046 = vld [vmem:[#allocation13 + $0x7b8] sm:$0xff]
    %v2047 = vld [vmem:[#allocation13 + $0x7c0] sm:$0xff]
    %v2048 = vld [vmem:[#allocation13 + $0x7c8] sm:$0xff]
    %v2049 = vld [vmem:[#allocation13 + $0x7d0] sm:$0xff]
    %v2050 = vld [vmem:[#allocation13 + $0x7d8] sm:$0xff]
    %v2051 = vld [vmem:[#allocation13 + $0x7e0] sm:$0xff]
    %v2052 = vld [vmem:[#allocation13 + $0x7e8] sm:$0xff]
    %v2053 = vld [vmem:[#allocation13 + $0x7f0] sm:$0xff]
    %v2054 = vld [vmem:[#allocation13 + $0x7f8] sm:$0xff]
    %v2056 = vlaneseq
    %v2057 = vshrl.u32 %v2056, 7
    %v2058 = vsub.s32 0, %v2057
    %v2059 = vrot.slane %v1798, %v2058
    %v2060 = vlaneseq
    %v2061 = vshrl.u32 %v2060, 7
    %v2062 = vsub.s32 1, %v2061
    %v2063 = vrot.slane %v1798, %v2062
    %v2064 = vlaneseq
    %v2065 = vshrl.u32 %v2064, 7
    %v2066 = vsub.s32 2, %v2065
    %v2067 = vrot.slane %v1798, %v2066
    %v2068 = vlaneseq
    %v2069 = vshrl.u32 %v2068, 7
    %v2070 = vsub.s32 3, %v2069
    %v2071 = vrot.slane %v1798, %v2070
    %v2072 = vlaneseq
    %v2073 = vshrl.u32 %v2072, 7
    %v2074 = vsub.s32 4, %v2073
    %v2075 = vrot.slane %v1798, %v2074
    %v2076 = vlaneseq
    %v2077 = vshrl.u32 %v2076, 7
    %v2078 = vsub.s32 5, %v2077
    %v2079 = vrot.slane %v1798, %v2078
    %v2080 = vlaneseq
    %v2081 = vshrl.u32 %v2080, 7
    %v2082 = vsub.s32 6, %v2081
    %v2083 = vrot.slane %v1798, %v2082
    %v2084 = vlaneseq
    %v2085 = vshrl.u32 %v2084, 7
    %v2086 = vsub.s32 7, %v2085
    %v2087 = vrot.slane %v1798, %v2086
    %v2352 = vunpack.c.l.b16 %v1799
    %v2353 = vunpack.c.h.b16 %v1799
    %v2354 = vunpack.c.l.b16 %v1800
    %v2355 = vunpack.c.h.b16 %v1800
    %v2356 = vunpack.c.l.b16 %v1801
    %v2357 = vunpack.c.h.b16 %v1801
    %v2358 = vunpack.c.l.b16 %v1802
    %v2359 = vunpack.c.h.b16 %v1802
    %v2360 = vunpack.c.l.b16 %v1803
    %v2361 = vunpack.c.h.b16 %v1803
    %v2362 = vunpack.c.l.b16 %v1804
    %v2363 = vunpack.c.h.b16 %v1804
    %v2364 = vunpack.c.l.b16 %v1805
    %v2365 = vunpack.c.h.b16 %v1805
    %v2366 = vunpack.c.l.b16 %v1806
    %v2367 = vunpack.c.h.b16 %v1806
    %v2368 = vunpack.c.l.b16 %v1807
    %v2369 = vunpack.c.h.b16 %v1807
    %v2370 = vunpack.c.l.b16 %v1808
    %v2371 = vunpack.c.h.b16 %v1808
    %v2372 = vunpack.c.l.b16 %v1809
    %v2373 = vunpack.c.h.b16 %v1809
    %v2374 = vunpack.c.l.b16 %v1810
    %v2375 = vunpack.c.h.b16 %v1810
    %v2376 = vunpack.c.l.b16 %v1811
    %v2377 = vunpack.c.h.b16 %v1811
    %v2378 = vunpack.c.l.b16 %v1812
    %v2379 = vunpack.c.h.b16 %v1812
    %v2380 = vunpack.c.l.b16 %v1813
    %v2381 = vunpack.c.h.b16 %v1813
    %v2382 = vunpack.c.l.b16 %v1814
    %v2383 = vunpack.c.h.b16 %v1814
    %v2384 = vunpack.c.l.b16 %v1815
    %v2385 = vunpack.c.h.b16 %v1815
    %v2386 = vunpack.c.l.b16 %v1816
    %v2387 = vunpack.c.h.b16 %v1816
    %v2388 = vunpack.c.l.b16 %v1817
    %v2389 = vunpack.c.h.b16 %v1817
    %v2390 = vunpack.c.l.b16 %v1818
    %v2391 = vunpack.c.h.b16 %v1818
    %v2392 = vunpack.c.l.b16 %v1819
    %v2393 = vunpack.c.h.b16 %v1819
    %v2394 = vunpack.c.l.b16 %v1820
    %v2395 = vunpack.c.h.b16 %v1820
    %v2396 = vunpack.c.l.b16 %v1821
    %v2397 = vunpack.c.h.b16 %v1821
    %v2398 = vunpack.c.l.b16 %v1822
    %v2399 = vunpack.c.h.b16 %v1822
    %v2400 = vunpack.c.l.b16 %v1823
    %v2401 = vunpack.c.h.b16 %v1823
    %v2402 = vunpack.c.l.b16 %v1824
    %v2403 = vunpack.c.h.b16 %v1824
    %v2404 = vunpack.c.l.b16 %v1825
    %v2405 = vunpack.c.h.b16 %v1825
    %v2406 = vunpack.c.l.b16 %v1826
    %v2407 = vunpack.c.h.b16 %v1826
    %v2408 = vunpack.c.l.b16 %v1827
    %v2409 = vunpack.c.h.b16 %v1827
    %v2410 = vunpack.c.l.b16 %v1828
    %v2411 = vunpack.c.h.b16 %v1828
    %v2412 = vunpack.c.l.b16 %v1829
    %v2413 = vunpack.c.h.b16 %v1829
    %v2414 = vunpack.c.l.b16 %v1830
    %v2415 = vunpack.c.h.b16 %v1830
    %v2416 = vunpack.c.l.b16 %v1831
    %v2417 = vunpack.c.h.b16 %v1831
    %v2418 = vunpack.c.l.b16 %v1832
    %v2419 = vunpack.c.h.b16 %v1832
    %v2420 = vunpack.c.l.b16 %v1833
    %v2421 = vunpack.c.h.b16 %v1833
    %v2422 = vunpack.c.l.b16 %v1834
    %v2423 = vunpack.c.h.b16 %v1834
    %v2424 = vunpack.c.l.b16 %v1835
    %v2425 = vunpack.c.h.b16 %v1835
    %v2426 = vunpack.c.l.b16 %v1836
    %v2427 = vunpack.c.h.b16 %v1836
    %v2428 = vunpack.c.l.b16 %v1837
    %v2429 = vunpack.c.h.b16 %v1837
    %v2430 = vunpack.c.l.b16 %v1838
    %v2431 = vunpack.c.h.b16 %v1838
    %v2432 = vunpack.c.l.b16 %v1839
    %v2433 = vunpack.c.h.b16 %v1839
    %v2434 = vunpack.c.l.b16 %v1840
    %v2435 = vunpack.c.h.b16 %v1840
    %v2436 = vunpack.c.l.b16 %v1841
    %v2437 = vunpack.c.h.b16 %v1841
    %v2438 = vunpack.c.l.b16 %v1842
    %v2439 = vunpack.c.h.b16 %v1842
    %v2440 = vunpack.c.l.b16 %v1843
    %v2441 = vunpack.c.h.b16 %v1843
    %v2442 = vunpack.c.l.b16 %v1844
    %v2443 = vunpack.c.h.b16 %v1844
    %v2444 = vunpack.c.l.b16 %v1845
    %v2445 = vunpack.c.h.b16 %v1845
    %v2446 = vunpack.c.l.b16 %v1846
    %v2447 = vunpack.c.h.b16 %v1846
    %v2448 = vunpack.c.l.b16 %v1847
    %v2449 = vunpack.c.h.b16 %v1847
    %v2450 = vunpack.c.l.b16 %v1848
    %v2451 = vunpack.c.h.b16 %v1848
    %v2452 = vunpack.c.l.b16 %v1849
    %v2453 = vunpack.c.h.b16 %v1849
    %v2454 = vunpack.c.l.b16 %v1850
    %v2455 = vunpack.c.h.b16 %v1850
    %v2456 = vunpack.c.l.b16 %v1851
    %v2457 = vunpack.c.h.b16 %v1851
    %v2458 = vunpack.c.l.b16 %v1852
    %v2459 = vunpack.c.h.b16 %v1852
    %v2460 = vunpack.c.l.b16 %v1853
    %v2461 = vunpack.c.h.b16 %v1853
    %v2462 = vunpack.c.l.b16 %v1854
    %v2463 = vunpack.c.h.b16 %v1854
    %v2464 = vunpack.c.l.b16 %v1855
    %v2465 = vunpack.c.h.b16 %v1855
    %v2466 = vunpack.c.l.b16 %v1856
    %v2467 = vunpack.c.h.b16 %v1856
    %v2468 = vunpack.c.l.b16 %v1857
    %v2469 = vunpack.c.h.b16 %v1857
    %v2470 = vunpack.c.l.b16 %v1858
    %v2471 = vunpack.c.h.b16 %v1858
    %v2472 = vunpack.c.l.b16 %v1859
    %v2473 = vunpack.c.h.b16 %v1859
    %v2474 = vunpack.c.l.b16 %v1860
    %v2475 = vunpack.c.h.b16 %v1860
    %v2476 = vunpack.c.l.b16 %v1861
    %v2477 = vunpack.c.h.b16 %v1861
    %v2478 = vunpack.c.l.b16 %v1862
    %v2479 = vunpack.c.h.b16 %v1862
    %v2480 = vunpack.c.l.b16 %v1863
    %v2481 = vunpack.c.h.b16 %v1863
    %v2482 = vunpack.c.l.b16 %v1864
    %v2483 = vunpack.c.h.b16 %v1864
    %v2484 = vunpack.c.l.b16 %v1865
    %v2485 = vunpack.c.h.b16 %v1865
    %v2486 = vunpack.c.l.b16 %v1866
    %v2487 = vunpack.c.h.b16 %v1866
    %v2488 = vunpack.c.l.b16 %v1867
    %v2489 = vunpack.c.h.b16 %v1867
    %v2490 = vunpack.c.l.b16 %v1868
    %v2491 = vunpack.c.h.b16 %v1868
    %v2492 = vunpack.c.l.b16 %v1869
    %v2493 = vunpack.c.h.b16 %v1869
    %v2494 = vunpack.c.l.b16 %v1870
    %v2495 = vunpack.c.h.b16 %v1870
    %v2496 = vunpack.c.l.b16 %v1871
    %v2497 = vunpack.c.h.b16 %v1871
    %v2498 = vunpack.c.l.b16 %v1872
    %v2499 = vunpack.c.h.b16 %v1872
    %v2500 = vunpack.c.l.b16 %v1873
    %v2501 = vunpack.c.h.b16 %v1873
    %v2502 = vunpack.c.l.b16 %v1874
    %v2503 = vunpack.c.h.b16 %v1874
    %v2504 = vunpack.c.l.b16 %v1875
    %v2505 = vunpack.c.h.b16 %v1875
    %v2506 = vunpack.c.l.b16 %v1876
    %v2507 = vunpack.c.h.b16 %v1876
    %v2508 = vunpack.c.l.b16 %v1877
    %v2509 = vunpack.c.h.b16 %v1877
    %v2510 = vunpack.c.l.b16 %v1878
    %v2511 = vunpack.c.h.b16 %v1878
    %v2512 = vunpack.c.l.b16 %v1879
    %v2513 = vunpack.c.h.b16 %v1879
    %v2514 = vunpack.c.l.b16 %v1880
    %v2515 = vunpack.c.h.b16 %v1880
    %v2516 = vunpack.c.l.b16 %v1881
    %v2517 = vunpack.c.h.b16 %v1881
    %v2518 = vunpack.c.l.b16 %v1882
    %v2519 = vunpack.c.h.b16 %v1882
    %v2520 = vunpack.c.l.b16 %v1883
    %v2521 = vunpack.c.h.b16 %v1883
    %v2522 = vunpack.c.l.b16 %v1884
    %v2523 = vunpack.c.h.b16 %v1884
    %v2524 = vunpack.c.l.b16 %v1885
    %v2525 = vunpack.c.h.b16 %v1885
    %v2526 = vunpack.c.l.b16 %v1886
    %v2527 = vunpack.c.h.b16 %v1886
    %v2528 = vunpack.c.l.b16 %v1887
    %v2529 = vunpack.c.h.b16 %v1887
    %v2530 = vunpack.c.l.b16 %v1888
    %v2531 = vunpack.c.h.b16 %v1888
    %v2532 = vunpack.c.l.b16 %v1889
    %v2533 = vunpack.c.h.b16 %v1889
    %v2534 = vunpack.c.l.b16 %v1890
    %v2535 = vunpack.c.h.b16 %v1890
    %v2536 = vunpack.c.l.b16 %v1891
    %v2537 = vunpack.c.h.b16 %v1891
    %v2538 = vunpack.c.l.b16 %v1892
    %v2539 = vunpack.c.h.b16 %v1892
    %v2540 = vunpack.c.l.b16 %v1893
    %v2541 = vunpack.c.h.b16 %v1893
    %v2542 = vunpack.c.l.b16 %v1894
    %v2543 = vunpack.c.h.b16 %v1894
    %v2544 = vunpack.c.l.b16 %v1895
    %v2545 = vunpack.c.h.b16 %v1895
    %v2546 = vunpack.c.l.b16 %v1896
    %v2547 = vunpack.c.h.b16 %v1896
    %v2548 = vunpack.c.l.b16 %v1897
    %v2549 = vunpack.c.h.b16 %v1897
    %v2550 = vunpack.c.l.b16 %v1898
    %v2551 = vunpack.c.h.b16 %v1898
    %v2552 = vunpack.c.l.b16 %v1899
    %v2553 = vunpack.c.h.b16 %v1899
    %v2554 = vunpack.c.l.b16 %v1900
    %v2555 = vunpack.c.h.b16 %v1900
    %v2556 = vunpack.c.l.b16 %v1901
    %v2557 = vunpack.c.h.b16 %v1901
    %v2558 = vunpack.c.l.b16 %v1902
    %v2559 = vunpack.c.h.b16 %v1902
    %v2560 = vunpack.c.l.b16 %v1903
    %v2561 = vunpack.c.h.b16 %v1903
    %v2562 = vunpack.c.l.b16 %v1904
    %v2563 = vunpack.c.h.b16 %v1904
    %v2564 = vunpack.c.l.b16 %v1905
    %v2565 = vunpack.c.h.b16 %v1905
    %v2566 = vunpack.c.l.b16 %v1906
    %v2567 = vunpack.c.h.b16 %v1906
    %v2568 = vunpack.c.l.b16 %v1907
    %v2569 = vunpack.c.h.b16 %v1907
    %v2570 = vunpack.c.l.b16 %v1908
    %v2571 = vunpack.c.h.b16 %v1908
    %v2572 = vunpack.c.l.b16 %v1909
    %v2573 = vunpack.c.h.b16 %v1909
    %v2574 = vunpack.c.l.b16 %v1910
    %v2575 = vunpack.c.h.b16 %v1910
    %v2576 = vunpack.c.l.b16 %v1911
    %v2577 = vunpack.c.h.b16 %v1911
    %v2578 = vunpack.c.l.b16 %v1912
    %v2579 = vunpack.c.h.b16 %v1912
    %v2580 = vunpack.c.l.b16 %v1913
    %v2581 = vunpack.c.h.b16 %v1913
    %v2582 = vunpack.c.l.b16 %v1914
    %v2583 = vunpack.c.h.b16 %v1914
    %v2584 = vunpack.c.l.b16 %v1915
    %v2585 = vunpack.c.h.b16 %v1915
    %v2586 = vunpack.c.l.b16 %v1916
    %v2587 = vunpack.c.h.b16 %v1916
    %v2588 = vunpack.c.l.b16 %v1917
    %v2589 = vunpack.c.h.b16 %v1917
    %v2590 = vunpack.c.l.b16 %v1918
    %v2591 = vunpack.c.h.b16 %v1918
    %v2592 = vunpack.c.l.b16 %v1919
    %v2593 = vunpack.c.h.b16 %v1919
    %v2594 = vunpack.c.l.b16 %v1920
    %v2595 = vunpack.c.h.b16 %v1920
    %v2596 = vunpack.c.l.b16 %v1921
    %v2597 = vunpack.c.h.b16 %v1921
    %v2598 = vunpack.c.l.b16 %v1922
    %v2599 = vunpack.c.h.b16 %v1922
    %v2600 = vunpack.c.l.b16 %v1923
    %v2601 = vunpack.c.h.b16 %v1923
    %v2602 = vunpack.c.l.b16 %v1924
    %v2603 = vunpack.c.h.b16 %v1924
    %v2604 = vunpack.c.l.b16 %v1925
    %v2605 = vunpack.c.h.b16 %v1925
    %v2606 = vunpack.c.l.b16 %v1926
    %v2607 = vunpack.c.h.b16 %v1926
    %v2608 = vunpack.c.l.b16 %v1927
    %v2609 = vunpack.c.h.b16 %v1927
    %v2610 = vunpack.c.l.b16 %v1928
    %v2611 = vunpack.c.h.b16 %v1928
    %v2612 = vunpack.c.l.b16 %v1929
    %v2613 = vunpack.c.h.b16 %v1929
    %v2614 = vunpack.c.l.b16 %v1930
    %v2615 = vunpack.c.h.b16 %v1930
    %v2616 = vunpack.c.l.b16 %v1931
    %v2617 = vunpack.c.h.b16 %v1931
    %v2618 = vunpack.c.l.b16 %v1932
    %v2619 = vunpack.c.h.b16 %v1932
    %v2620 = vunpack.c.l.b16 %v1933
    %v2621 = vunpack.c.h.b16 %v1933
    %v2622 = vunpack.c.l.b16 %v1934
    %v2623 = vunpack.c.h.b16 %v1934
    %v2624 = vunpack.c.l.b16 %v1935
    %v2625 = vunpack.c.h.b16 %v1935
    %v2626 = vunpack.c.l.b16 %v1936
    %v2627 = vunpack.c.h.b16 %v1936
    %v2628 = vunpack.c.l.b16 %v1937
    %v2629 = vunpack.c.h.b16 %v1937
    %v2630 = vunpack.c.l.b16 %v1938
    %v2631 = vunpack.c.h.b16 %v1938
    %v2632 = vunpack.c.l.b16 %v1939
    %v2633 = vunpack.c.h.b16 %v1939
    %v2634 = vunpack.c.l.b16 %v1940
    %v2635 = vunpack.c.h.b16 %v1940
    %v2636 = vunpack.c.l.b16 %v1941
    %v2637 = vunpack.c.h.b16 %v1941
    %v2638 = vunpack.c.l.b16 %v1942
    %v2639 = vunpack.c.h.b16 %v1942
    %v2640 = vunpack.c.l.b16 %v1943
    %v2641 = vunpack.c.h.b16 %v1943
    %v2642 = vunpack.c.l.b16 %v1944
    %v2643 = vunpack.c.h.b16 %v1944
    %v2644 = vunpack.c.l.b16 %v1945
    %v2645 = vunpack.c.h.b16 %v1945
    %v2646 = vunpack.c.l.b16 %v1946
    %v2647 = vunpack.c.h.b16 %v1946
    %v2648 = vunpack.c.l.b16 %v1947
    %v2649 = vunpack.c.h.b16 %v1947
    %v2650 = vunpack.c.l.b16 %v1948
    %v2651 = vunpack.c.h.b16 %v1948
    %v2652 = vunpack.c.l.b16 %v1949
    %v2653 = vunpack.c.h.b16 %v1949
    %v2654 = vunpack.c.l.b16 %v1950
    %v2655 = vunpack.c.h.b16 %v1950
    %v2656 = vunpack.c.l.b16 %v1951
    %v2657 = vunpack.c.h.b16 %v1951
    %v2658 = vunpack.c.l.b16 %v1952
    %v2659 = vunpack.c.h.b16 %v1952
    %v2660 = vunpack.c.l.b16 %v1953
    %v2661 = vunpack.c.h.b16 %v1953
    %v2662 = vunpack.c.l.b16 %v1954
    %v2663 = vunpack.c.h.b16 %v1954
    %v2664 = vunpack.c.l.b16 %v1955
    %v2665 = vunpack.c.h.b16 %v1955
    %v2666 = vunpack.c.l.b16 %v1956
    %v2667 = vunpack.c.h.b16 %v1956
    %v2668 = vunpack.c.l.b16 %v1957
    %v2669 = vunpack.c.h.b16 %v1957
    %v2670 = vunpack.c.l.b16 %v1958
    %v2671 = vunpack.c.h.b16 %v1958
    %v2672 = vunpack.c.l.b16 %v1959
    %v2673 = vunpack.c.h.b16 %v1959
    %v2674 = vunpack.c.l.b16 %v1960
    %v2675 = vunpack.c.h.b16 %v1960
    %v2676 = vunpack.c.l.b16 %v1961
    %v2677 = vunpack.c.h.b16 %v1961
    %v2678 = vunpack.c.l.b16 %v1962
    %v2679 = vunpack.c.h.b16 %v1962
    %v2680 = vunpack.c.l.b16 %v1963
    %v2681 = vunpack.c.h.b16 %v1963
    %v2682 = vunpack.c.l.b16 %v1964
    %v2683 = vunpack.c.h.b16 %v1964
    %v2684 = vunpack.c.l.b16 %v1965
    %v2685 = vunpack.c.h.b16 %v1965
    %v2686 = vunpack.c.l.b16 %v1966
    %v2687 = vunpack.c.h.b16 %v1966
    %v2688 = vunpack.c.l.b16 %v1967
    %v2689 = vunpack.c.h.b16 %v1967
    %v2690 = vunpack.c.l.b16 %v1968
    %v2691 = vunpack.c.h.b16 %v1968
    %v2692 = vunpack.c.l.b16 %v1969
    %v2693 = vunpack.c.h.b16 %v1969
    %v2694 = vunpack.c.l.b16 %v1970
    %v2695 = vunpack.c.h.b16 %v1970
    %v2696 = vunpack.c.l.b16 %v1971
    %v2697 = vunpack.c.h.b16 %v1971
    %v2698 = vunpack.c.l.b16 %v1972
    %v2699 = vunpack.c.h.b16 %v1972
    %v2700 = vunpack.c.l.b16 %v1973
    %v2701 = vunpack.c.h.b16 %v1973
    %v2702 = vunpack.c.l.b16 %v1974
    %v2703 = vunpack.c.h.b16 %v1974
    %v2704 = vunpack.c.l.b16 %v1975
    %v2705 = vunpack.c.h.b16 %v1975
    %v2706 = vunpack.c.l.b16 %v1976
    %v2707 = vunpack.c.h.b16 %v1976
    %v2708 = vunpack.c.l.b16 %v1977
    %v2709 = vunpack.c.h.b16 %v1977
    %v2710 = vunpack.c.l.b16 %v1978
    %v2711 = vunpack.c.h.b16 %v1978
    %v2712 = vunpack.c.l.b16 %v1979
    %v2713 = vunpack.c.h.b16 %v1979
    %v2714 = vunpack.c.l.b16 %v1980
    %v2715 = vunpack.c.h.b16 %v1980
    %v2716 = vunpack.c.l.b16 %v1981
    %v2717 = vunpack.c.h.b16 %v1981
    %v2718 = vunpack.c.l.b16 %v1982
    %v2719 = vunpack.c.h.b16 %v1982
    %v2720 = vunpack.c.l.b16 %v1983
    %v2721 = vunpack.c.h.b16 %v1983
    %v2722 = vunpack.c.l.b16 %v1984
    %v2723 = vunpack.c.h.b16 %v1984
    %v2724 = vunpack.c.l.b16 %v1985
    %v2725 = vunpack.c.h.b16 %v1985
    %v2726 = vunpack.c.l.b16 %v1986
    %v2727 = vunpack.c.h.b16 %v1986
    %v2728 = vunpack.c.l.b16 %v1987
    %v2729 = vunpack.c.h.b16 %v1987
    %v2730 = vunpack.c.l.b16 %v1988
    %v2731 = vunpack.c.h.b16 %v1988
    %v2732 = vunpack.c.l.b16 %v1989
    %v2733 = vunpack.c.h.b16 %v1989
    %v2734 = vunpack.c.l.b16 %v1990
    %v2735 = vunpack.c.h.b16 %v1990
    %v2736 = vunpack.c.l.b16 %v1991
    %v2737 = vunpack.c.h.b16 %v1991
    %v2738 = vunpack.c.l.b16 %v1992
    %v2739 = vunpack.c.h.b16 %v1992
    %v2740 = vunpack.c.l.b16 %v1993
    %v2741 = vunpack.c.h.b16 %v1993
    %v2742 = vunpack.c.l.b16 %v1994
    %v2743 = vunpack.c.h.b16 %v1994
    %v2744 = vunpack.c.l.b16 %v1995
    %v2745 = vunpack.c.h.b16 %v1995
    %v2746 = vunpack.c.l.b16 %v1996
    %v2747 = vunpack.c.h.b16 %v1996
    %v2748 = vunpack.c.l.b16 %v1997
    %v2749 = vunpack.c.h.b16 %v1997
    %v2750 = vunpack.c.l.b16 %v1998
    %v2751 = vunpack.c.h.b16 %v1998
    %v2752 = vunpack.c.l.b16 %v1999
    %v2753 = vunpack.c.h.b16 %v1999
    %v2754 = vunpack.c.l.b16 %v2000
    %v2755 = vunpack.c.h.b16 %v2000
    %v2756 = vunpack.c.l.b16 %v2001
    %v2757 = vunpack.c.h.b16 %v2001
    %v2758 = vunpack.c.l.b16 %v2002
    %v2759 = vunpack.c.h.b16 %v2002
    %v2760 = vunpack.c.l.b16 %v2003
    %v2761 = vunpack.c.h.b16 %v2003
    %v2762 = vunpack.c.l.b16 %v2004
    %v2763 = vunpack.c.h.b16 %v2004
    %v2764 = vunpack.c.l.b16 %v2005
    %v2765 = vunpack.c.h.b16 %v2005
    %v2766 = vunpack.c.l.b16 %v2006
    %v2767 = vunpack.c.h.b16 %v2006
    %v2768 = vunpack.c.l.b16 %v2007
    %v2769 = vunpack.c.h.b16 %v2007
    %v2770 = vunpack.c.l.b16 %v2008
    %v2771 = vunpack.c.h.b16 %v2008
    %v2772 = vunpack.c.l.b16 %v2009
    %v2773 = vunpack.c.h.b16 %v2009
    %v2774 = vunpack.c.l.b16 %v2010
    %v2775 = vunpack.c.h.b16 %v2010
    %v2776 = vunpack.c.l.b16 %v2011
    %v2777 = vunpack.c.h.b16 %v2011
    %v2778 = vunpack.c.l.b16 %v2012
    %v2779 = vunpack.c.h.b16 %v2012
    %v2780 = vunpack.c.l.b16 %v2013
    %v2781 = vunpack.c.h.b16 %v2013
    %v2782 = vunpack.c.l.b16 %v2014
    %v2783 = vunpack.c.h.b16 %v2014
    %v2784 = vunpack.c.l.b16 %v2015
    %v2785 = vunpack.c.h.b16 %v2015
    %v2786 = vunpack.c.l.b16 %v2016
    %v2787 = vunpack.c.h.b16 %v2016
    %v2788 = vunpack.c.l.b16 %v2017
    %v2789 = vunpack.c.h.b16 %v2017
    %v2790 = vunpack.c.l.b16 %v2018
    %v2791 = vunpack.c.h.b16 %v2018
    %v2792 = vunpack.c.l.b16 %v2019
    %v2793 = vunpack.c.h.b16 %v2019
    %v2794 = vunpack.c.l.b16 %v2020
    %v2795 = vunpack.c.h.b16 %v2020
    %v2796 = vunpack.c.l.b16 %v2021
    %v2797 = vunpack.c.h.b16 %v2021
    %v2798 = vunpack.c.l.b16 %v2022
    %v2799 = vunpack.c.h.b16 %v2022
    %v2800 = vunpack.c.l.b16 %v2023
    %v2801 = vunpack.c.h.b16 %v2023
    %v2802 = vunpack.c.l.b16 %v2024
    %v2803 = vunpack.c.h.b16 %v2024
    %v2804 = vunpack.c.l.b16 %v2025
    %v2805 = vunpack.c.h.b16 %v2025
    %v2806 = vunpack.c.l.b16 %v2026
    %v2807 = vunpack.c.h.b16 %v2026
    %v2808 = vunpack.c.l.b16 %v2027
    %v2809 = vunpack.c.h.b16 %v2027
    %v2810 = vunpack.c.l.b16 %v2028
    %v2811 = vunpack.c.h.b16 %v2028
    %v2812 = vunpack.c.l.b16 %v2029
    %v2813 = vunpack.c.h.b16 %v2029
    %v2814 = vunpack.c.l.b16 %v2030
    %v2815 = vunpack.c.h.b16 %v2030
    %v2816 = vunpack.c.l.b16 %v2031
    %v2817 = vunpack.c.h.b16 %v2031
    %v2818 = vunpack.c.l.b16 %v2032
    %v2819 = vunpack.c.h.b16 %v2032
    %v2820 = vunpack.c.l.b16 %v2033
    %v2821 = vunpack.c.h.b16 %v2033
    %v2822 = vunpack.c.l.b16 %v2034
    %v2823 = vunpack.c.h.b16 %v2034
    %v2824 = vunpack.c.l.b16 %v2035
    %v2825 = vunpack.c.h.b16 %v2035
    %v2826 = vunpack.c.l.b16 %v2036
    %v2827 = vunpack.c.h.b16 %v2036
    %v2828 = vunpack.c.l.b16 %v2037
    %v2829 = vunpack.c.h.b16 %v2037
    %v2830 = vunpack.c.l.b16 %v2038
    %v2831 = vunpack.c.h.b16 %v2038
    %v2832 = vunpack.c.l.b16 %v2039
    %v2833 = vunpack.c.h.b16 %v2039
    %v2834 = vunpack.c.l.b16 %v2040
    %v2835 = vunpack.c.h.b16 %v2040
    %v2836 = vunpack.c.l.b16 %v2041
    %v2837 = vunpack.c.h.b16 %v2041
    %v2838 = vunpack.c.l.b16 %v2042
    %v2839 = vunpack.c.h.b16 %v2042
    %v2840 = vunpack.c.l.b16 %v2043
    %v2841 = vunpack.c.h.b16 %v2043
    %v2842 = vunpack.c.l.b16 %v2044
    %v2843 = vunpack.c.h.b16 %v2044
    %v2844 = vunpack.c.l.b16 %v2045
    %v2845 = vunpack.c.h.b16 %v2045
    %v2846 = vunpack.c.l.b16 %v2046
    %v2847 = vunpack.c.h.b16 %v2046
    %v2848 = vunpack.c.l.b16 %v2047
    %v2849 = vunpack.c.h.b16 %v2047
    %v2850 = vunpack.c.l.b16 %v2048
    %v2851 = vunpack.c.h.b16 %v2048
    %v2852 = vunpack.c.l.b16 %v2049
    %v2853 = vunpack.c.h.b16 %v2049
    %v2854 = vunpack.c.l.b16 %v2050
    %v2855 = vunpack.c.h.b16 %v2050
    %v2856 = vunpack.c.l.b16 %v2051
    %v2857 = vunpack.c.h.b16 %v2051
    %v2858 = vunpack.c.l.b16 %v2052
    %v2859 = vunpack.c.h.b16 %v2052
    %v2860 = vunpack.c.l.b16 %v2053
    %v2861 = vunpack.c.h.b16 %v2053
    %v2862 = vunpack.c.l.b16 %v2054
    %v2863 = vunpack.c.h.b16 %v2054
    %v2864 = vpack.c.b16 %v2360, %v2352
    %v2865 = vpack.c.b16 %v2361, %v2353
    %v2866 = vpack.c.b16 %v2362, %v2354
    %v2867 = vpack.c.b16 %v2363, %v2355
    %v2868 = vpack.c.b16 %v2364, %v2356
    %v2869 = vpack.c.b16 %v2365, %v2357
    %v2870 = vpack.c.b16 %v2366, %v2358
    %v2871 = vpack.c.b16 %v2367, %v2359
    %v2872 = vpack.c.b16 %v2376, %v2368
    %v2873 = vpack.c.b16 %v2377, %v2369
    %v2874 = vpack.c.b16 %v2378, %v2370
    %v2875 = vpack.c.b16 %v2379, %v2371
    %v2876 = vpack.c.b16 %v2380, %v2372
    %v2877 = vpack.c.b16 %v2381, %v2373
    %v2878 = vpack.c.b16 %v2382, %v2374
    %v2879 = vpack.c.b16 %v2383, %v2375
    %v2880 = vpack.c.b16 %v2392, %v2384
    %v2881 = vpack.c.b16 %v2393, %v2385
    %v2882 = vpack.c.b16 %v2394, %v2386
    %v2883 = vpack.c.b16 %v2395, %v2387
    %v2884 = vpack.c.b16 %v2396, %v2388
    %v2885 = vpack.c.b16 %v2397, %v2389
    %v2886 = vpack.c.b16 %v2398, %v2390
    %v2887 = vpack.c.b16 %v2399, %v2391
    %v2888 = vpack.c.b16 %v2408, %v2400
    %v2889 = vpack.c.b16 %v2409, %v2401
    %v2890 = vpack.c.b16 %v2410, %v2402
    %v2891 = vpack.c.b16 %v2411, %v2403
    %v2892 = vpack.c.b16 %v2412, %v2404
    %v2893 = vpack.c.b16 %v2413, %v2405
    %v2894 = vpack.c.b16 %v2414, %v2406
    %v2895 = vpack.c.b16 %v2415, %v2407
    %v2896 = vpack.c.b16 %v2424, %v2416
    %v2897 = vpack.c.b16 %v2425, %v2417
    %v2898 = vpack.c.b16 %v2426, %v2418
    %v2899 = vpack.c.b16 %v2427, %v2419
    %v2900 = vpack.c.b16 %v2428, %v2420
    %v2901 = vpack.c.b16 %v2429, %v2421
    %v2902 = vpack.c.b16 %v2430, %v2422
    %v2903 = vpack.c.b16 %v2431, %v2423
    %v2904 = vpack.c.b16 %v2440, %v2432
    %v2905 = vpack.c.b16 %v2441, %v2433
    %v2906 = vpack.c.b16 %v2442, %v2434
    %v2907 = vpack.c.b16 %v2443, %v2435
    %v2908 = vpack.c.b16 %v2444, %v2436
    %v2909 = vpack.c.b16 %v2445, %v2437
    %v2910 = vpack.c.b16 %v2446, %v2438
    %v2911 = vpack.c.b16 %v2447, %v2439
    %v2912 = vpack.c.b16 %v2456, %v2448
    %v2913 = vpack.c.b16 %v2457, %v2449
    %v2914 = vpack.c.b16 %v2458, %v2450
    %v2915 = vpack.c.b16 %v2459, %v2451
    %v2916 = vpack.c.b16 %v2460, %v2452
    %v2917 = vpack.c.b16 %v2461, %v2453
    %v2918 = vpack.c.b16 %v2462, %v2454
    %v2919 = vpack.c.b16 %v2463, %v2455
    %v2920 = vpack.c.b16 %v2472, %v2464
    %v2921 = vpack.c.b16 %v2473, %v2465
    %v2922 = vpack.c.b16 %v2474, %v2466
    %v2923 = vpack.c.b16 %v2475, %v2467
    %v2924 = vpack.c.b16 %v2476, %v2468
    %v2925 = vpack.c.b16 %v2477, %v2469
    %v2926 = vpack.c.b16 %v2478, %v2470
    %v2927 = vpack.c.b16 %v2479, %v2471
    %v2928 = vpack.c.b16 %v2488, %v2480
    %v2929 = vpack.c.b16 %v2489, %v2481
    %v2930 = vpack.c.b16 %v2490, %v2482
    %v2931 = vpack.c.b16 %v2491, %v2483
    %v2932 = vpack.c.b16 %v2492, %v2484
    %v2933 = vpack.c.b16 %v2493, %v2485
    %v2934 = vpack.c.b16 %v2494, %v2486
    %v2935 = vpack.c.b16 %v2495, %v2487
    %v2936 = vpack.c.b16 %v2504, %v2496
    %v2937 = vpack.c.b16 %v2505, %v2497
    %v2938 = vpack.c.b16 %v2506, %v2498
    %v2939 = vpack.c.b16 %v2507, %v2499
    %v2940 = vpack.c.b16 %v2508, %v2500
    %v2941 = vpack.c.b16 %v2509, %v2501
    %v2942 = vpack.c.b16 %v2510, %v2502
    %v2943 = vpack.c.b16 %v2511, %v2503
    %v2944 = vpack.c.b16 %v2520, %v2512
    %v2945 = vpack.c.b16 %v2521, %v2513
    %v2946 = vpack.c.b16 %v2522, %v2514
    %v2947 = vpack.c.b16 %v2523, %v2515
    %v2948 = vpack.c.b16 %v2524, %v2516
    %v2949 = vpack.c.b16 %v2525, %v2517
    %v2950 = vpack.c.b16 %v2526, %v2518
    %v2951 = vpack.c.b16 %v2527, %v2519
    %v2952 = vpack.c.b16 %v2536, %v2528
    %v2953 = vpack.c.b16 %v2537, %v2529
    %v2954 = vpack.c.b16 %v2538, %v2530
    %v2955 = vpack.c.b16 %v2539, %v2531
    %v2956 = vpack.c.b16 %v2540, %v2532
    %v2957 = vpack.c.b16 %v2541, %v2533
    %v2958 = vpack.c.b16 %v2542, %v2534
    %v2959 = vpack.c.b16 %v2543, %v2535
    %v2960 = vpack.c.b16 %v2552, %v2544
    %v2961 = vpack.c.b16 %v2553, %v2545
    %v2962 = vpack.c.b16 %v2554, %v2546
    %v2963 = vpack.c.b16 %v2555, %v2547
    %v2964 = vpack.c.b16 %v2556, %v2548
    %v2965 = vpack.c.b16 %v2557, %v2549
    %v2966 = vpack.c.b16 %v2558, %v2550
    %v2967 = vpack.c.b16 %v2559, %v2551
    %v2968 = vpack.c.b16 %v2568, %v2560
    %v2969 = vpack.c.b16 %v2569, %v2561
    %v2970 = vpack.c.b16 %v2570, %v2562
    %v2971 = vpack.c.b16 %v2571, %v2563
    %v2972 = vpack.c.b16 %v2572, %v2564
    %v2973 = vpack.c.b16 %v2573, %v2565
    %v2974 = vpack.c.b16 %v2574, %v2566
    %v2975 = vpack.c.b16 %v2575, %v2567
    %v2976 = vpack.c.b16 %v2584, %v2576
    %v2977 = vpack.c.b16 %v2585, %v2577
    %v2978 = vpack.c.b16 %v2586, %v2578
    %v2979 = vpack.c.b16 %v2587, %v2579
    %v2980 = vpack.c.b16 %v2588, %v2580
    %v2981 = vpack.c.b16 %v2589, %v2581
    %v2982 = vpack.c.b16 %v2590, %v2582
    %v2983 = vpack.c.b16 %v2591, %v2583
    %v2984 = vpack.c.b16 %v2600, %v2592
    %v2985 = vpack.c.b16 %v2601, %v2593
    %v2986 = vpack.c.b16 %v2602, %v2594
    %v2987 = vpack.c.b16 %v2603, %v2595
    %v2988 = vpack.c.b16 %v2604, %v2596
    %v2989 = vpack.c.b16 %v2605, %v2597
    %v2990 = vpack.c.b16 %v2606, %v2598
    %v2991 = vpack.c.b16 %v2607, %v2599
    %v2992 = vpack.c.b16 %v2616, %v2608
    %v2993 = vpack.c.b16 %v2617, %v2609
    %v2994 = vpack.c.b16 %v2618, %v2610
    %v2995 = vpack.c.b16 %v2619, %v2611
    %v2996 = vpack.c.b16 %v2620, %v2612
    %v2997 = vpack.c.b16 %v2621, %v2613
    %v2998 = vpack.c.b16 %v2622, %v2614
    %v2999 = vpack.c.b16 %v2623, %v2615
    %v3000 = vpack.c.b16 %v2632, %v2624
    %v3001 = vpack.c.b16 %v2633, %v2625
    %v3002 = vpack.c.b16 %v2634, %v2626
    %v3003 = vpack.c.b16 %v2635, %v2627
    %v3004 = vpack.c.b16 %v2636, %v2628
    %v3005 = vpack.c.b16 %v2637, %v2629
    %v3006 = vpack.c.b16 %v2638, %v2630
    %v3007 = vpack.c.b16 %v2639, %v2631
    %v3008 = vpack.c.b16 %v2648, %v2640
    %v3009 = vpack.c.b16 %v2649, %v2641
    %v3010 = vpack.c.b16 %v2650, %v2642
    %v3011 = vpack.c.b16 %v2651, %v2643
    %v3012 = vpack.c.b16 %v2652, %v2644
    %v3013 = vpack.c.b16 %v2653, %v2645
    %v3014 = vpack.c.b16 %v2654, %v2646
    %v3015 = vpack.c.b16 %v2655, %v2647
    %v3016 = vpack.c.b16 %v2664, %v2656
    %v3017 = vpack.c.b16 %v2665, %v2657
    %v3018 = vpack.c.b16 %v2666, %v2658
    %v3019 = vpack.c.b16 %v2667, %v2659
    %v3020 = vpack.c.b16 %v2668, %v2660
    %v3021 = vpack.c.b16 %v2669, %v2661
    %v3022 = vpack.c.b16 %v2670, %v2662
    %v3023 = vpack.c.b16 %v2671, %v2663
    %v3024 = vpack.c.b16 %v2680, %v2672
    %v3025 = vpack.c.b16 %v2681, %v2673
    %v3026 = vpack.c.b16 %v2682, %v2674
    %v3027 = vpack.c.b16 %v2683, %v2675
    %v3028 = vpack.c.b16 %v2684, %v2676
    %v3029 = vpack.c.b16 %v2685, %v2677
    %v3030 = vpack.c.b16 %v2686, %v2678
    %v3031 = vpack.c.b16 %v2687, %v2679
    %v3032 = vpack.c.b16 %v2696, %v2688
    %v3033 = vpack.c.b16 %v2697, %v2689
    %v3034 = vpack.c.b16 %v2698, %v2690
    %v3035 = vpack.c.b16 %v2699, %v2691
    %v3036 = vpack.c.b16 %v2700, %v2692
    %v3037 = vpack.c.b16 %v2701, %v2693
    %v3038 = vpack.c.b16 %v2702, %v2694
    %v3039 = vpack.c.b16 %v2703, %v2695
    %v3040 = vpack.c.b16 %v2712, %v2704
    %v3041 = vpack.c.b16 %v2713, %v2705
    %v3042 = vpack.c.b16 %v2714, %v2706
    %v3043 = vpack.c.b16 %v2715, %v2707
    %v3044 = vpack.c.b16 %v2716, %v2708
    %v3045 = vpack.c.b16 %v2717, %v2709
    %v3046 = vpack.c.b16 %v2718, %v2710
    %v3047 = vpack.c.b16 %v2719, %v2711
    %v3048 = vpack.c.b16 %v2728, %v2720
    %v3049 = vpack.c.b16 %v2729, %v2721
    %v3050 = vpack.c.b16 %v2730, %v2722
    %v3051 = vpack.c.b16 %v2731, %v2723
    %v3052 = vpack.c.b16 %v2732, %v2724
    %v3053 = vpack.c.b16 %v2733, %v2725
    %v3054 = vpack.c.b16 %v2734, %v2726
    %v3055 = vpack.c.b16 %v2735, %v2727
    %v3056 = vpack.c.b16 %v2744, %v2736
    %v3057 = vpack.c.b16 %v2745, %v2737
    %v3058 = vpack.c.b16 %v2746, %v2738
    %v3059 = vpack.c.b16 %v2747, %v2739
    %v3060 = vpack.c.b16 %v2748, %v2740
    %v3061 = vpack.c.b16 %v2749, %v2741
    %v3062 = vpack.c.b16 %v2750, %v2742
    %v3063 = vpack.c.b16 %v2751, %v2743
    %v3064 = vpack.c.b16 %v2760, %v2752
    %v3065 = vpack.c.b16 %v2761, %v2753
    %v3066 = vpack.c.b16 %v2762, %v2754
    %v3067 = vpack.c.b16 %v2763, %v2755
    %v3068 = vpack.c.b16 %v2764, %v2756
    %v3069 = vpack.c.b16 %v2765, %v2757
    %v3070 = vpack.c.b16 %v2766, %v2758
    %v3071 = vpack.c.b16 %v2767, %v2759
    %v3072 = vpack.c.b16 %v2776, %v2768
    %v3073 = vpack.c.b16 %v2777, %v2769
    %v3074 = vpack.c.b16 %v2778, %v2770
    %v3075 = vpack.c.b16 %v2779, %v2771
    %v3076 = vpack.c.b16 %v2780, %v2772
    %v3077 = vpack.c.b16 %v2781, %v2773
    %v3078 = vpack.c.b16 %v2782, %v2774
    %v3079 = vpack.c.b16 %v2783, %v2775
    %v3080 = vpack.c.b16 %v2792, %v2784
    %v3081 = vpack.c.b16 %v2793, %v2785
    %v3082 = vpack.c.b16 %v2794, %v2786
    %v3083 = vpack.c.b16 %v2795, %v2787
    %v3084 = vpack.c.b16 %v2796, %v2788
    %v3085 = vpack.c.b16 %v2797, %v2789
    %v3086 = vpack.c.b16 %v2798, %v2790
    %v3087 = vpack.c.b16 %v2799, %v2791
    %v3088 = vpack.c.b16 %v2808, %v2800
    %v3089 = vpack.c.b16 %v2809, %v2801
    %v3090 = vpack.c.b16 %v2810, %v2802
    %v3091 = vpack.c.b16 %v2811, %v2803
    %v3092 = vpack.c.b16 %v2812, %v2804
    %v3093 = vpack.c.b16 %v2813, %v2805
    %v3094 = vpack.c.b16 %v2814, %v2806
    %v3095 = vpack.c.b16 %v2815, %v2807
    %v3096 = vpack.c.b16 %v2824, %v2816
    %v3097 = vpack.c.b16 %v2825, %v2817
    %v3098 = vpack.c.b16 %v2826, %v2818
    %v3099 = vpack.c.b16 %v2827, %v2819
    %v3100 = vpack.c.b16 %v2828, %v2820
    %v3101 = vpack.c.b16 %v2829, %v2821
    %v3102 = vpack.c.b16 %v2830, %v2822
    %v3103 = vpack.c.b16 %v2831, %v2823
    %v3104 = vpack.c.b16 %v2840, %v2832
    %v3105 = vpack.c.b16 %v2841, %v2833
    %v3106 = vpack.c.b16 %v2842, %v2834
    %v3107 = vpack.c.b16 %v2843, %v2835
    %v3108 = vpack.c.b16 %v2844, %v2836
    %v3109 = vpack.c.b16 %v2845, %v2837
    %v3110 = vpack.c.b16 %v2846, %v2838
    %v3111 = vpack.c.b16 %v2847, %v2839
    %v3112 = vpack.c.b16 %v2856, %v2848
    %v3113 = vpack.c.b16 %v2857, %v2849
    %v3114 = vpack.c.b16 %v2858, %v2850
    %v3115 = vpack.c.b16 %v2859, %v2851
    %v3116 = vpack.c.b16 %v2860, %v2852
    %v3117 = vpack.c.b16 %v2861, %v2853
    %v3118 = vpack.c.b16 %v2862, %v2854
    %v3119 = vpack.c.b16 %v2863, %v2855
    %3376 = vmatprep.subr.bf16.mxu0 %v2921
    %3377 = vmatpush1.bf16.msra.mxu0 %v2920
    %3378 = vmatprep.subr.bf16.mxu0 %v2913
    %3379 = vmatpush1.bf16.msra.mxu0 %v2912
    %3380 = vmatprep.subr.bf16.mxu0 %v2905
    %3381 = vmatpush1.bf16.msra.mxu0 %v2904
    %3382 = vmatprep.subr.bf16.mxu0 %v2897
    %3383 = vmatpush1.bf16.msra.mxu0 %v2896
    %3384 = vmatprep.subr.bf16.mxu0 %v2889
    %3385 = vmatpush1.bf16.msra.mxu0 %v2888
    %3386 = vmatprep.subr.bf16.mxu0 %v2881
    %3387 = vmatpush1.bf16.msra.mxu0 %v2880
    %3388 = vmatprep.subr.bf16.mxu0 %v2873
    %3389 = vmatpush1.bf16.msra.mxu0 %v2872
    %3390 = vmatprep.subr.bf16.mxu0 %v2865
    %3391 = vmatpush1.bf16.msra.mxu0 %v2864
    %3392 = vmatprep.subr.bf16.mxu0 %v2985
    %3393 = vmatpush2.bf16.msra.mxu0 %v2984
    %3394 = vmatprep.subr.bf16.mxu0 %v2977
    %3395 = vmatpush2.bf16.msra.mxu0 %v2976
    %3396 = vmatprep.subr.bf16.mxu0 %v2969
    %3397 = vmatpush2.bf16.msra.mxu0 %v2968
    %3398 = vmatprep.subr.bf16.mxu0 %v2961
    %3399 = vmatpush2.bf16.msra.mxu0 %v2960
    %3400 = vmatprep.subr.bf16.mxu0 %v2953
    %3401 = vmatpush2.bf16.msra.mxu0 %v2952
    %3402 = vmatprep.subr.bf16.mxu0 %v2945
    %3403 = vmatpush2.bf16.msra.mxu0 %v2944
    %3404 = vmatprep.subr.bf16.mxu0 %v2937
    %3405 = vmatpush2.bf16.msra.mxu0 %v2936
    %3406 = vmatprep.subr.bf16.mxu0 %v2929
    %3407 = vmatpush2.bf16.msra.mxu0 %v2928
    %3408 = vmatprep.mubr.bf16.mxu0 %v1795
    %3409 = vmatmul.mubr.bf16.gmra.mxu0 %v1794
    %v3410 = vpop.f32.mrf.mxu0
    %v3411 = vadd.f32 %v2059, %v3410
    %v3412 = vpop.f32.mrf.mxu0
    %v3413 = vadd.f32 %v2063, %v3412
    %v3414 = vpop.f32.mrf.mxu0
    %v3415 = vadd.f32 %v2059, %v3414
    %v3416 = vpop.f32.mrf.mxu0
    %v3417 = vadd.f32 %v2063, %v3416
    %3418 = vdwg.mxu0
    %3419 = vmatprep.subr.bf16.mxu0 %v3049
    %3420 = vmatpush1.bf16.msra.mxu0 %v3048
    %3421 = vmatprep.subr.bf16.mxu0 %v3041
    %3422 = vmatpush1.bf16.msra.mxu0 %v3040
    %3423 = vmatprep.subr.bf16.mxu0 %v3033
    %3424 = vmatpush1.bf16.msra.mxu0 %v3032
    %3425 = vmatprep.subr.bf16.mxu0 %v3025
    %3426 = vmatpush1.bf16.msra.mxu0 %v3024
    %3427 = vmatprep.subr.bf16.mxu0 %v3017
    %3428 = vmatpush1.bf16.msra.mxu0 %v3016
    %3429 = vmatprep.subr.bf16.mxu0 %v3009
    %3430 = vmatpush1.bf16.msra.mxu0 %v3008
    %3431 = vmatprep.subr.bf16.mxu0 %v3001
    %3432 = vmatpush1.bf16.msra.mxu0 %v3000
    %3433 = vmatprep.subr.bf16.mxu0 %v2993
    %3434 = vmatpush1.bf16.msra.mxu0 %v2992
    %3435 = vmatprep.subr.bf16.mxu0 %v3113
    %3436 = vmatpush2.bf16.msra.mxu0 %v3112
    %3437 = vmatprep.subr.bf16.mxu0 %v3105
    %3438 = vmatpush2.bf16.msra.mxu0 %v3104
    %3439 = vmatprep.subr.bf16.mxu0 %v3097
    %3440 = vmatpush2.bf16.msra.mxu0 %v3096
    %3441 = vmatprep.subr.bf16.mxu0 %v3089
    %3442 = vmatpush2.bf16.msra.mxu0 %v3088
    %3443 = vmatprep.subr.bf16.mxu0 %v3081
    %3444 = vmatpush2.bf16.msra.mxu0 %v3080
    %3445 = vmatprep.subr.bf16.mxu0 %v3073
    %3446 = vmatpush2.bf16.msra.mxu0 %v3072
    %3447 = vmatprep.subr.bf16.mxu0 %v3065
    %3448 = vmatpush2.bf16.msra.mxu0 %v3064
    %3449 = vmatprep.subr.bf16.mxu0 %v3057
    %3450 = vmatpush2.bf16.msra.mxu0 %v3056
    %3451 = vmatprep.mubr.bf16.mxu0 %v1797
    %3452 = vmatmul.mubr.bf16.gmra.mxu0 %v1796
    %v3453 = vpop.f32.mrf.mxu0
    %v3454 = vadd.f32 %v3411, %v3453
    %v3455 = vpop.f32.mrf.mxu0
    %v3456 = vadd.f32 %v3413, %v3455
    %v3457 = vpop.f32.mrf.mxu0
    %v3458 = vadd.f32 %v3415, %v3457
    %v3459 = vpop.f32.mrf.mxu0
    %v3460 = vadd.f32 %v3417, %v3459
    %3461 = vdwg.mxu0
    %3462 = vmatprep.subr.bf16.mxu0 %v2923
    %3463 = vmatpush1.bf16.msra.mxu0 %v2922
    %3464 = vmatprep.subr.bf16.mxu0 %v2915
    %3465 = vmatpush1.bf16.msra.mxu0 %v2914
    %3466 = vmatprep.subr.bf16.mxu0 %v2907
    %3467 = vmatpush1.bf16.msra.mxu0 %v2906
    %3468 = vmatprep.subr.bf16.mxu0 %v2899
    %3469 = vmatpush1.bf16.msra.mxu0 %v2898
    %3470 = vmatprep.subr.bf16.mxu0 %v2891
    %3471 = vmatpush1.bf16.msra.mxu0 %v2890
    %3472 = vmatprep.subr.bf16.mxu0 %v2883
    %3473 = vmatpush1.bf16.msra.mxu0 %v2882
    %3474 = vmatprep.subr.bf16.mxu0 %v2875
    %3475 = vmatpush1.bf16.msra.mxu0 %v2874
    %3476 = vmatprep.subr.bf16.mxu0 %v2867
    %3477 = vmatpush1.bf16.msra.mxu0 %v2866
    %3478 = vmatprep.subr.bf16.mxu0 %v2987
    %3479 = vmatpush2.bf16.msra.mxu0 %v2986
    %3480 = vmatprep.subr.bf16.mxu0 %v2979
    %3481 = vmatpush2.bf16.msra.mxu0 %v2978
    %3482 = vmatprep.subr.bf16.mxu0 %v2971
    %3483 = vmatpush2.bf16.msra.mxu0 %v2970
    %3484 = vmatprep.subr.bf16.mxu0 %v2963
    %3485 = vmatpush2.bf16.msra.mxu0 %v2962
    %3486 = vmatprep.subr.bf16.mxu0 %v2955
    %3487 = vmatpush2.bf16.msra.mxu0 %v2954
    %3488 = vmatprep.subr.bf16.mxu0 %v2947
    %3489 = vmatpush2.bf16.msra.mxu0 %v2946
    %3490 = vmatprep.subr.bf16.mxu0 %v2939
    %3491 = vmatpush2.bf16.msra.mxu0 %v2938
    %3492 = vmatprep.subr.bf16.mxu0 %v2931
    %3493 = vmatpush2.bf16.msra.mxu0 %v2930
    %3494 = vmatprep.mubr.bf16.mxu0 %v1795
    %3495 = vmatmul.mubr.bf16.gmra.mxu0 %v1794
    %v3496 = vpop.f32.mrf.mxu0
    %v3497 = vadd.f32 %v2067, %v3496
    %v3498 = vpop.f32.mrf.mxu0
    %v3499 = vadd.f32 %v2071, %v3498
    %v3500 = vpop.f32.mrf.mxu0
    %v3501 = vadd.f32 %v2067, %v3500
    %v3502 = vpop.f32.mrf.mxu0
    %v3503 = vadd.f32 %v2071, %v3502
    %3504 = vdwg.mxu0
    %3505 = vmatprep.subr.bf16.mxu0 %v3051
    %3506 = vmatpush1.bf16.msra.mxu0 %v3050
    %3507 = vmatprep.subr.bf16.mxu0 %v3043
    %3508 = vmatpush1.bf16.msra.mxu0 %v3042
    %3509 = vmatprep.subr.bf16.mxu0 %v3035
    %3510 = vmatpush1.bf16.msra.mxu0 %v3034
    %3511 = vmatprep.subr.bf16.mxu0 %v3027
    %3512 = vmatpush1.bf16.msra.mxu0 %v3026
    %3513 = vmatprep.subr.bf16.mxu0 %v3019
    %3514 = vmatpush1.bf16.msra.mxu0 %v3018
    %3515 = vmatprep.subr.bf16.mxu0 %v3011
    %3516 = vmatpush1.bf16.msra.mxu0 %v3010
    %3517 = vmatprep.subr.bf16.mxu0 %v3003
    %3518 = vmatpush1.bf16.msra.mxu0 %v3002
    %3519 = vmatprep.subr.bf16.mxu0 %v2995
    %3520 = vmatpush1.bf16.msra.mxu0 %v2994
    %3521 = vmatprep.subr.bf16.mxu0 %v3115
    %3522 = vmatpush2.bf16.msra.mxu0 %v3114
    %3523 = vmatprep.subr.bf16.mxu0 %v3107
    %3524 = vmatpush2.bf16.msra.mxu0 %v3106
    %3525 = vmatprep.subr.bf16.mxu0 %v3099
    %3526 = vmatpush2.bf16.msra.mxu0 %v3098
    %3527 = vmatprep.subr.bf16.mxu0 %v3091
    %3528 = vmatpush2.bf16.msra.mxu0 %v3090
    %3529 = vmatprep.subr.bf16.mxu0 %v3083
    %3530 = vmatpush2.bf16.msra.mxu0 %v3082
    %3531 = vmatprep.subr.bf16.mxu0 %v3075
    %3532 = vmatpush2.bf16.msra.mxu0 %v3074
    %3533 = vmatprep.subr.bf16.mxu0 %v3067
    %3534 = vmatpush2.bf16.msra.mxu0 %v3066
    %3535 = vmatprep.subr.bf16.mxu0 %v3059
    %3536 = vmatpush2.bf16.msra.mxu0 %v3058
    %3537 = vmatprep.mubr.bf16.mxu0 %v1797
    %3538 = vmatmul.mubr.bf16.gmra.mxu0 %v1796
    %v3539 = vpop.f32.mrf.mxu0
    %v3540 = vadd.f32 %v3497, %v3539
    %v3541 = vpop.f32.mrf.mxu0
    %v3542 = vadd.f32 %v3499, %v3541
    %v3543 = vpop.f32.mrf.mxu0
    %v3544 = vadd.f32 %v3501, %v3543
    %v3545 = vpop.f32.mrf.mxu0
    %v3546 = vadd.f32 %v3503, %v3545
    %3547 = vdwg.mxu0
    %3548 = vmatprep.subr.bf16.mxu0 %v2925
    %3549 = vmatpush1.bf16.msra.mxu0 %v2924
    %3550 = vmatprep.subr.bf16.mxu0 %v2917
    %3551 = vmatpush1.bf16.msra.mxu0 %v2916
    %3552 = vmatprep.subr.bf16.mxu0 %v2909
    %3553 = vmatpush1.bf16.msra.mxu0 %v2908
    %3554 = vmatprep.subr.bf16.mxu0 %v2901
    %3555 = vmatpush1.bf16.msra.mxu0 %v2900
    %3556 = vmatprep.subr.bf16.mxu0 %v2893
    %3557 = vmatpush1.bf16.msra.mxu0 %v2892
    %3558 = vmatprep.subr.bf16.mxu0 %v2885
    %3559 = vmatpush1.bf16.msra.mxu0 %v2884
    %3560 = vmatprep.subr.bf16.mxu0 %v2877
    %3561 = vmatpush1.bf16.msra.mxu0 %v2876
    %3562 = vmatprep.subr.bf16.mxu0 %v2869
    %3563 = vmatpush1.bf16.msra.mxu0 %v2868
    %3564 = vmatprep.subr.bf16.mxu0 %v2989
    %3565 = vmatpush2.bf16.msra.mxu0 %v2988
    %3566 = vmatprep.subr.bf16.mxu0 %v2981
    %3567 = vmatpush2.bf16.msra.mxu0 %v2980
    %3568 = vmatprep.subr.bf16.mxu0 %v2973
    %3569 = vmatpush2.bf16.msra.mxu0 %v2972
    %3570 = vmatprep.subr.bf16.mxu0 %v2965
    %3571 = vmatpush2.bf16.msra.mxu0 %v2964
    %3572 = vmatprep.subr.bf16.mxu0 %v2957
    %3573 = vmatpush2.bf16.msra.mxu0 %v2956
    %3574 = vmatprep.subr.bf16.mxu0 %v2949
    %3575 = vmatpush2.bf16.msra.mxu0 %v2948
    %3576 = vmatprep.subr.bf16.mxu0 %v2941
    %3577 = vmatpush2.bf16.msra.mxu0 %v2940
    %3578 = vmatprep.subr.bf16.mxu0 %v2933
    %3579 = vmatpush2.bf16.msra.mxu0 %v2932
    %3580 = vmatprep.mubr.bf16.mxu0 %v1795
    %3581 = vmatmul.mubr.bf16.gmra.mxu0 %v1794
    %v3582 = vpop.f32.mrf.mxu0
    %v3583 = vadd.f32 %v2075, %v3582
    %v3584 = vpop.f32.mrf.mxu0
    %v3585 = vadd.f32 %v2079, %v3584
    %v3586 = vpop.f32.mrf.mxu0
    %v3587 = vadd.f32 %v2075, %v3586
    %v3588 = vpop.f32.mrf.mxu0
    %v3589 = vadd.f32 %v2079, %v3588
    %3590 = vdwg.mxu0
    %3591 = vmatprep.subr.bf16.mxu0 %v3053
    %3592 = vmatpush1.bf16.msra.mxu0 %v3052
    %3593 = vmatprep.subr.bf16.mxu0 %v3045
    %3594 = vmatpush1.bf16.msra.mxu0 %v3044
    %3595 = vmatprep.subr.bf16.mxu0 %v3037
    %3596 = vmatpush1.bf16.msra.mxu0 %v3036
    %3597 = vmatprep.subr.bf16.mxu0 %v3029
    %3598 = vmatpush1.bf16.msra.mxu0 %v3028
    %3599 = vmatprep.subr.bf16.mxu0 %v3021
    %3600 = vmatpush1.bf16.msra.mxu0 %v3020
    %3601 = vmatprep.subr.bf16.mxu0 %v3013
    %3602 = vmatpush1.bf16.msra.mxu0 %v3012
    %3603 = vmatprep.subr.bf16.mxu0 %v3005
    %3604 = vmatpush1.bf16.msra.mxu0 %v3004
    %3605 = vmatprep.subr.bf16.mxu0 %v2997
    %3606 = vmatpush1.bf16.msra.mxu0 %v2996
    %3607 = vmatprep.subr.bf16.mxu0 %v3117
    %3608 = vmatpush2.bf16.msra.mxu0 %v3116
    %3609 = vmatprep.subr.bf16.mxu0 %v3109
    %3610 = vmatpush2.bf16.msra.mxu0 %v3108
    %3611 = vmatprep.subr.bf16.mxu0 %v3101
    %3612 = vmatpush2.bf16.msra.mxu0 %v3100
    %3613 = vmatprep.subr.bf16.mxu0 %v3093
    %3614 = vmatpush2.bf16.msra.mxu0 %v3092
    %3615 = vmatprep.subr.bf16.mxu0 %v3085
    %3616 = vmatpush2.bf16.msra.mxu0 %v3084
    %3617 = vmatprep.subr.bf16.mxu0 %v3077
    %3618 = vmatpush2.bf16.msra.mxu0 %v3076
    %3619 = vmatprep.subr.bf16.mxu0 %v3069
    %3620 = vmatpush2.bf16.msra.mxu0 %v3068
    %3621 = vmatprep.subr.bf16.mxu0 %v3061
    %3622 = vmatpush2.bf16.msra.mxu0 %v3060
    %3623 = vmatprep.mubr.bf16.mxu0 %v1797
    %3624 = vmatmul.mubr.bf16.gmra.mxu0 %v1796
    %v3625 = vpop.f32.mrf.mxu0
    %v3626 = vadd.f32 %v3583, %v3625
    %v3627 = vpop.f32.mrf.mxu0
    %v3628 = vadd.f32 %v3585, %v3627
    %v3629 = vpop.f32.mrf.mxu0
    %v3630 = vadd.f32 %v3587, %v3629
    %v3631 = vpop.f32.mrf.mxu0
    %v3632 = vadd.f32 %v3589, %v3631
    %3633 = vdwg.mxu0
    %3634 = vmatprep.subr.bf16.mxu0 %v2927
    %3635 = vmatpush1.bf16.msra.mxu0 %v2926
    %3636 = vmatprep.subr.bf16.mxu0 %v2919
    %3637 = vmatpush1.bf16.msra.mxu0 %v2918
    %3638 = vmatprep.subr.bf16.mxu0 %v2911
    %3639 = vmatpush1.bf16.msra.mxu0 %v2910
    %3640 = vmatprep.subr.bf16.mxu0 %v2903
    %3641 = vmatpush1.bf16.msra.mxu0 %v2902
    %3642 = vmatprep.subr.bf16.mxu0 %v2895
    %3643 = vmatpush1.bf16.msra.mxu0 %v2894
    %3644 = vmatprep.subr.bf16.mxu0 %v2887
    %3645 = vmatpush1.bf16.msra.mxu0 %v2886
    %3646 = vmatprep.subr.bf16.mxu0 %v2879
    %3647 = vmatpush1.bf16.msra.mxu0 %v2878
    %3648 = vmatprep.subr.bf16.mxu0 %v2871
    %3649 = vmatpush1.bf16.msra.mxu0 %v2870
    %3650 = vmatprep.subr.bf16.mxu0 %v2991
    %3651 = vmatpush2.bf16.msra.mxu0 %v2990
    %3652 = vmatprep.subr.bf16.mxu0 %v2983
    %3653 = vmatpush2.bf16.msra.mxu0 %v2982
    %3654 = vmatprep.subr.bf16.mxu0 %v2975
    %3655 = vmatpush2.bf16.msra.mxu0 %v2974
    %3656 = vmatprep.subr.bf16.mxu0 %v2967
    %3657 = vmatpush2.bf16.msra.mxu0 %v2966
    %3658 = vmatprep.subr.bf16.mxu0 %v2959
    %3659 = vmatpush2.bf16.msra.mxu0 %v2958
    %3660 = vmatprep.subr.bf16.mxu0 %v2951
    %3661 = vmatpush2.bf16.msra.mxu0 %v2950
    %3662 = vmatprep.subr.bf16.mxu0 %v2943
    %3663 = vmatpush2.bf16.msra.mxu0 %v2942
    %3664 = vmatprep.subr.bf16.mxu0 %v2935
    %3665 = vmatpush2.bf16.msra.mxu0 %v2934
    %3666 = vmatprep.mubr.bf16.mxu0 %v1795
    %3667 = vmatmul.mubr.bf16.gmra.mxu0 %v1794
    %v3668 = vpop.f32.mrf.mxu0
    %v3669 = vadd.f32 %v2083, %v3668
    %v3670 = vpop.f32.mrf.mxu0
    %v3671 = vadd.f32 %v2087, %v3670
    %v3672 = vpop.f32.mrf.mxu0
    %v3673 = vadd.f32 %v2083, %v3672
    %v3674 = vpop.f32.mrf.mxu0
    %v3675 = vadd.f32 %v2087, %v3674
    %3676 = vdwg.mxu0
    %3677 = vmatprep.subr.bf16.mxu0 %v3055
    %3678 = vmatpush1.bf16.msra.mxu0 %v3054
    %3679 = vmatprep.subr.bf16.mxu0 %v3047
    %3680 = vmatpush1.bf16.msra.mxu0 %v3046
    %3681 = vmatprep.subr.bf16.mxu0 %v3039
    %3682 = vmatpush1.bf16.msra.mxu0 %v3038
    %3683 = vmatprep.subr.bf16.mxu0 %v3031
    %3684 = vmatpush1.bf16.msra.mxu0 %v3030
    %3685 = vmatprep.subr.bf16.mxu0 %v3023
    %3686 = vmatpush1.bf16.msra.mxu0 %v3022
    %3687 = vmatprep.subr.bf16.mxu0 %v3015
    %3688 = vmatpush1.bf16.msra.mxu0 %v3014
    %3689 = vmatprep.subr.bf16.mxu0 %v3007
    %3690 = vmatpush1.bf16.msra.mxu0 %v3006
    %3691 = vmatprep.subr.bf16.mxu0 %v2999
    %3692 = vmatpush1.bf16.msra.mxu0 %v2998
    %3693 = vmatprep.subr.bf16.mxu0 %v3119
    %3694 = vmatpush2.bf16.msra.mxu0 %v3118
    %3695 = vmatprep.subr.bf16.mxu0 %v3111
    %3696 = vmatpush2.bf16.msra.mxu0 %v3110
    %3697 = vmatprep.subr.bf16.mxu0 %v3103
    %3698 = vmatpush2.bf16.msra.mxu0 %v3102
    %3699 = vmatprep.subr.bf16.mxu0 %v3095
    %3700 = vmatpush2.bf16.msra.mxu0 %v3094
    %3701 = vmatprep.subr.bf16.mxu0 %v3087
    %3702 = vmatpush2.bf16.msra.mxu0 %v3086
    %3703 = vmatprep.subr.bf16.mxu0 %v3079
    %3704 = vmatpush2.bf16.msra.mxu0 %v3078
    %3705 = vmatprep.subr.bf16.mxu0 %v3071
    %3706 = vmatpush2.bf16.msra.mxu0 %v3070
    %3707 = vmatprep.subr.bf16.mxu0 %v3063
    %3708 = vmatpush2.bf16.msra.mxu0 %v3062
    %3709 = vmatprep.mubr.bf16.mxu0 %v1797
    %3710 = vmatmul.mubr.bf16.gmra.mxu0 %v1796
    %v3711 = vpop.f32.mrf.mxu0
    %v3712 = vadd.f32 %v3669, %v3711
    %v3713 = vpop.f32.mrf.mxu0
    %v3714 = vadd.f32 %v3671, %v3713
    %v3715 = vpop.f32.mrf.mxu0
    %v3716 = vadd.f32 %v3673, %v3715
    %v3717 = vpop.f32.mrf.mxu0
    %v3718 = vadd.f32 %v3675, %v3717
    %3719 = vdwg.mxu0
    %v3720 = vpack.c.bf16 %v3458, %v3454
    %v3721 = vpack.c.bf16 %v3460, %v3456
    %v3722 = vpack.c.bf16 %v3544, %v3540
    %v3723 = vpack.c.bf16 %v3546, %v3542
    %v3724 = vpack.c.bf16 %v3630, %v3626
    %v3725 = vpack.c.bf16 %v3632, %v3628
    %v3726 = vpack.c.bf16 %v3716, %v3712
    %v3727 = vpack.c.bf16 %v3718, %v3714
    %v3728 = vmul.bf16 %v3720, 1045249613
    %v3729 = vmul.bf16 %v3721, 1045249613
    %v3730 = vmul.bf16 %v3722, 1045249613
    %v3731 = vmul.bf16 %v3723, 1045249613
    %v3732 = vmul.bf16 %v3724, 1045249613
    %v3733 = vmul.bf16 %v3725, 1045249613
    %v3734 = vmul.bf16 %v3726, 1045249613
    %v3735 = vmul.bf16 %v3727, 1045249613
    %v3736 = vmax.bf16 %v3720, %v3728
    %v3737 = vmax.bf16 %v3721, %v3729
    %v3738 = vmax.bf16 %v3722, %v3730
    %v3739 = vmax.bf16 %v3723, %v3731
    %v3740 = vmax.bf16 %v3724, %v3732
    %v3741 = vmax.bf16 %v3725, %v3733
    %v3742 = vmax.bf16 %v3726, %v3734
    %v3743 = vmax.bf16 %v3727, %v3735
    %v3744 = vld [vmem:[#allocation16 + $0x15] sm:$0xff]
    %v3745 = vld [vmem:[#allocation14] sm:$0xff]
    %v3746 = vld [vmem:[#allocation14 + $0x8] sm:$0xff]
    %v3747 = vld [vmem:[#allocation14 + $0x10] sm:$0xff]
    %v3748 = vld [vmem:[#allocation14 + $0x18] sm:$0xff]
    %v3749 = vld [vmem:[#allocation14 + $0x20] sm:$0xff]
    %v3750 = vld [vmem:[#allocation14 + $0x28] sm:$0xff]
    %v3751 = vld [vmem:[#allocation14 + $0x30] sm:$0xff]
    %v3752 = vld [vmem:[#allocation14 + $0x38] sm:$0xff]
    %v3753 = vld [vmem:[#allocation14 + $0x40] sm:$0xff]
    %v3754 = vld [vmem:[#allocation14 + $0x48] sm:$0xff]
    %v3755 = vld [vmem:[#allocation14 + $0x50] sm:$0xff]
    %v3756 = vld [vmem:[#allocation14 + $0x58] sm:$0xff]
    %v3757 = vld [vmem:[#allocation14 + $0x60] sm:$0xff]
    %v3758 = vld [vmem:[#allocation14 + $0x68] sm:$0xff]
    %v3759 = vld [vmem:[#allocation14 + $0x70] sm:$0xff]
    %v3760 = vld [vmem:[#allocation14 + $0x78] sm:$0xff]
    %v3761 = vld [vmem:[#allocation14 + $0x80] sm:$0xff]
    %v3762 = vld [vmem:[#allocation14 + $0x88] sm:$0xff]
    %v3763 = vld [vmem:[#allocation14 + $0x90] sm:$0xff]
    %v3764 = vld [vmem:[#allocation14 + $0x98] sm:$0xff]
    %v3765 = vld [vmem:[#allocation14 + $0xa0] sm:$0xff]
    %v3766 = vld [vmem:[#allocation14 + $0xa8] sm:$0xff]
    %v3767 = vld [vmem:[#allocation14 + $0xb0] sm:$0xff]
    %v3768 = vld [vmem:[#allocation14 + $0xb8] sm:$0xff]
    %v3769 = vld [vmem:[#allocation14 + $0xc0] sm:$0xff]
    %v3770 = vld [vmem:[#allocation14 + $0xc8] sm:$0xff]
    %v3771 = vld [vmem:[#allocation14 + $0xd0] sm:$0xff]
    %v3772 = vld [vmem:[#allocation14 + $0xd8] sm:$0xff]
    %v3773 = vld [vmem:[#allocation14 + $0xe0] sm:$0xff]
    %v3774 = vld [vmem:[#allocation14 + $0xe8] sm:$0xff]
    %v3775 = vld [vmem:[#allocation14 + $0xf0] sm:$0xff]
    %v3776 = vld [vmem:[#allocation14 + $0xf8] sm:$0xff]
    %v3777 = vld [vmem:[#allocation14 + $0x100] sm:$0xff]
    %v3778 = vld [vmem:[#allocation14 + $0x108] sm:$0xff]
    %v3779 = vld [vmem:[#allocation14 + $0x110] sm:$0xff]
    %v3780 = vld [vmem:[#allocation14 + $0x118] sm:$0xff]
    %v3781 = vld [vmem:[#allocation14 + $0x120] sm:$0xff]
    %v3782 = vld [vmem:[#allocation14 + $0x128] sm:$0xff]
    %v3783 = vld [vmem:[#allocation14 + $0x130] sm:$0xff]
    %v3784 = vld [vmem:[#allocation14 + $0x138] sm:$0xff]
    %v3785 = vld [vmem:[#allocation14 + $0x140] sm:$0xff]
    %v3786 = vld [vmem:[#allocation14 + $0x148] sm:$0xff]
    %v3787 = vld [vmem:[#allocation14 + $0x150] sm:$0xff]
    %v3788 = vld [vmem:[#allocation14 + $0x158] sm:$0xff]
    %v3789 = vld [vmem:[#allocation14 + $0x160] sm:$0xff]
    %v3790 = vld [vmem:[#allocation14 + $0x168] sm:$0xff]
    %v3791 = vld [vmem:[#allocation14 + $0x170] sm:$0xff]
    %v3792 = vld [vmem:[#allocation14 + $0x178] sm:$0xff]
    %v3793 = vld [vmem:[#allocation14 + $0x180] sm:$0xff]
    %v3794 = vld [vmem:[#allocation14 + $0x188] sm:$0xff]
    %v3795 = vld [vmem:[#allocation14 + $0x190] sm:$0xff]
    %v3796 = vld [vmem:[#allocation14 + $0x198] sm:$0xff]
    %v3797 = vld [vmem:[#allocation14 + $0x1a0] sm:$0xff]
    %v3798 = vld [vmem:[#allocation14 + $0x1a8] sm:$0xff]
    %v3799 = vld [vmem:[#allocation14 + $0x1b0] sm:$0xff]
    %v3800 = vld [vmem:[#allocation14 + $0x1b8] sm:$0xff]
    %v3801 = vld [vmem:[#allocation14 + $0x1c0] sm:$0xff]
    %v3802 = vld [vmem:[#allocation14 + $0x1c8] sm:$0xff]
    %v3803 = vld [vmem:[#allocation14 + $0x1d0] sm:$0xff]
    %v3804 = vld [vmem:[#allocation14 + $0x1d8] sm:$0xff]
    %v3805 = vld [vmem:[#allocation14 + $0x1e0] sm:$0xff]
    %v3806 = vld [vmem:[#allocation14 + $0x1e8] sm:$0xff]
    %v3807 = vld [vmem:[#allocation14 + $0x1f0] sm:$0xff]
    %v3808 = vld [vmem:[#allocation14 + $0x1f8] sm:$0xff]
    %v3809 = vld [vmem:[#allocation14 + $0x200] sm:$0xff]
    %v3810 = vld [vmem:[#allocation14 + $0x208] sm:$0xff]
    %v3811 = vld [vmem:[#allocation14 + $0x210] sm:$0xff]
    %v3812 = vld [vmem:[#allocation14 + $0x218] sm:$0xff]
    %v3813 = vld [vmem:[#allocation14 + $0x220] sm:$0xff]
    %v3814 = vld [vmem:[#allocation14 + $0x228] sm:$0xff]
    %v3815 = vld [vmem:[#allocation14 + $0x230] sm:$0xff]
    %v3816 = vld [vmem:[#allocation14 + $0x238] sm:$0xff]
    %v3817 = vld [vmem:[#allocation14 + $0x240] sm:$0xff]
    %v3818 = vld [vmem:[#allocation14 + $0x248] sm:$0xff]
    %v3819 = vld [vmem:[#allocation14 + $0x250] sm:$0xff]
    %v3820 = vld [vmem:[#allocation14 + $0x258] sm:$0xff]
    %v3821 = vld [vmem:[#allocation14 + $0x260] sm:$0xff]
    %v3822 = vld [vmem:[#allocation14 + $0x268] sm:$0xff]
    %v3823 = vld [vmem:[#allocation14 + $0x270] sm:$0xff]
    %v3824 = vld [vmem:[#allocation14 + $0x278] sm:$0xff]
    %v3825 = vld [vmem:[#allocation14 + $0x280] sm:$0xff]
    %v3826 = vld [vmem:[#allocation14 + $0x288] sm:$0xff]
    %v3827 = vld [vmem:[#allocation14 + $0x290] sm:$0xff]
    %v3828 = vld [vmem:[#allocation14 + $0x298] sm:$0xff]
    %v3829 = vld [vmem:[#allocation14 + $0x2a0] sm:$0xff]
    %v3830 = vld [vmem:[#allocation14 + $0x2a8] sm:$0xff]
    %v3831 = vld [vmem:[#allocation14 + $0x2b0] sm:$0xff]
    %v3832 = vld [vmem:[#allocation14 + $0x2b8] sm:$0xff]
    %v3833 = vld [vmem:[#allocation14 + $0x2c0] sm:$0xff]
    %v3834 = vld [vmem:[#allocation14 + $0x2c8] sm:$0xff]
    %v3835 = vld [vmem:[#allocation14 + $0x2d0] sm:$0xff]
    %v3836 = vld [vmem:[#allocation14 + $0x2d8] sm:$0xff]
    %v3837 = vld [vmem:[#allocation14 + $0x2e0] sm:$0xff]
    %v3838 = vld [vmem:[#allocation14 + $0x2e8] sm:$0xff]
    %v3839 = vld [vmem:[#allocation14 + $0x2f0] sm:$0xff]
    %v3840 = vld [vmem:[#allocation14 + $0x2f8] sm:$0xff]
    %v3841 = vld [vmem:[#allocation14 + $0x300] sm:$0xff]
    %v3842 = vld [vmem:[#allocation14 + $0x308] sm:$0xff]
    %v3843 = vld [vmem:[#allocation14 + $0x310] sm:$0xff]
    %v3844 = vld [vmem:[#allocation14 + $0x318] sm:$0xff]
    %v3845 = vld [vmem:[#allocation14 + $0x320] sm:$0xff]
    %v3846 = vld [vmem:[#allocation14 + $0x328] sm:$0xff]
    %v3847 = vld [vmem:[#allocation14 + $0x330] sm:$0xff]
    %v3848 = vld [vmem:[#allocation14 + $0x338] sm:$0xff]
    %v3849 = vld [vmem:[#allocation14 + $0x340] sm:$0xff]
    %v3850 = vld [vmem:[#allocation14 + $0x348] sm:$0xff]
    %v3851 = vld [vmem:[#allocation14 + $0x350] sm:$0xff]
    %v3852 = vld [vmem:[#allocation14 + $0x358] sm:$0xff]
    %v3853 = vld [vmem:[#allocation14 + $0x360] sm:$0xff]
    %v3854 = vld [vmem:[#allocation14 + $0x368] sm:$0xff]
    %v3855 = vld [vmem:[#allocation14 + $0x370] sm:$0xff]
    %v3856 = vld [vmem:[#allocation14 + $0x378] sm:$0xff]
    %v3857 = vld [vmem:[#allocation14 + $0x380] sm:$0xff]
    %v3858 = vld [vmem:[#allocation14 + $0x388] sm:$0xff]
    %v3859 = vld [vmem:[#allocation14 + $0x390] sm:$0xff]
    %v3860 = vld [vmem:[#allocation14 + $0x398] sm:$0xff]
    %v3861 = vld [vmem:[#allocation14 + $0x3a0] sm:$0xff]
    %v3862 = vld [vmem:[#allocation14 + $0x3a8] sm:$0xff]
    %v3863 = vld [vmem:[#allocation14 + $0x3b0] sm:$0xff]
    %v3864 = vld [vmem:[#allocation14 + $0x3b8] sm:$0xff]
    %v3865 = vld [vmem:[#allocation14 + $0x3c0] sm:$0xff]
    %v3866 = vld [vmem:[#allocation14 + $0x3c8] sm:$0xff]
    %v3867 = vld [vmem:[#allocation14 + $0x3d0] sm:$0xff]
    %v3868 = vld [vmem:[#allocation14 + $0x3d8] sm:$0xff]
    %v3869 = vld [vmem:[#allocation14 + $0x3e0] sm:$0xff]
    %v3870 = vld [vmem:[#allocation14 + $0x3e8] sm:$0xff]
    %v3871 = vld [vmem:[#allocation14 + $0x3f0] sm:$0xff]
    %v3872 = vld [vmem:[#allocation14 + $0x3f8] sm:$0xff]
    %v3873 = vld [vmem:[#allocation14 + $0x400] sm:$0xff]
    %v3874 = vld [vmem:[#allocation14 + $0x408] sm:$0xff]
    %v3875 = vld [vmem:[#allocation14 + $0x410] sm:$0xff]
    %v3876 = vld [vmem:[#allocation14 + $0x418] sm:$0xff]
    %v3877 = vld [vmem:[#allocation14 + $0x420] sm:$0xff]
    %v3878 = vld [vmem:[#allocation14 + $0x428] sm:$0xff]
    %v3879 = vld [vmem:[#allocation14 + $0x430] sm:$0xff]
    %v3880 = vld [vmem:[#allocation14 + $0x438] sm:$0xff]
    %v3881 = vld [vmem:[#allocation14 + $0x440] sm:$0xff]
    %v3882 = vld [vmem:[#allocation14 + $0x448] sm:$0xff]
    %v3883 = vld [vmem:[#allocation14 + $0x450] sm:$0xff]
    %v3884 = vld [vmem:[#allocation14 + $0x458] sm:$0xff]
    %v3885 = vld [vmem:[#allocation14 + $0x460] sm:$0xff]
    %v3886 = vld [vmem:[#allocation14 + $0x468] sm:$0xff]
    %v3887 = vld [vmem:[#allocation14 + $0x470] sm:$0xff]
    %v3888 = vld [vmem:[#allocation14 + $0x478] sm:$0xff]
    %v3889 = vld [vmem:[#allocation14 + $0x480] sm:$0xff]
    %v3890 = vld [vmem:[#allocation14 + $0x488] sm:$0xff]
    %v3891 = vld [vmem:[#allocation14 + $0x490] sm:$0xff]
    %v3892 = vld [vmem:[#allocation14 + $0x498] sm:$0xff]
    %v3893 = vld [vmem:[#allocation14 + $0x4a0] sm:$0xff]
    %v3894 = vld [vmem:[#allocation14 + $0x4a8] sm:$0xff]
    %v3895 = vld [vmem:[#allocation14 + $0x4b0] sm:$0xff]
    %v3896 = vld [vmem:[#allocation14 + $0x4b8] sm:$0xff]
    %v3897 = vld [vmem:[#allocation14 + $0x4c0] sm:$0xff]
    %v3898 = vld [vmem:[#allocation14 + $0x4c8] sm:$0xff]
    %v3899 = vld [vmem:[#allocation14 + $0x4d0] sm:$0xff]
    %v3900 = vld [vmem:[#allocation14 + $0x4d8] sm:$0xff]
    %v3901 = vld [vmem:[#allocation14 + $0x4e0] sm:$0xff]
    %v3902 = vld [vmem:[#allocation14 + $0x4e8] sm:$0xff]
    %v3903 = vld [vmem:[#allocation14 + $0x4f0] sm:$0xff]
    %v3904 = vld [vmem:[#allocation14 + $0x4f8] sm:$0xff]
    %v3905 = vld [vmem:[#allocation14 + $0x500] sm:$0xff]
    %v3906 = vld [vmem:[#allocation14 + $0x508] sm:$0xff]
    %v3907 = vld [vmem:[#allocation14 + $0x510] sm:$0xff]
    %v3908 = vld [vmem:[#allocation14 + $0x518] sm:$0xff]
    %v3909 = vld [vmem:[#allocation14 + $0x520] sm:$0xff]
    %v3910 = vld [vmem:[#allocation14 + $0x528] sm:$0xff]
    %v3911 = vld [vmem:[#allocation14 + $0x530] sm:$0xff]
    %v3912 = vld [vmem:[#allocation14 + $0x538] sm:$0xff]
    %v3913 = vld [vmem:[#allocation14 + $0x540] sm:$0xff]
    %v3914 = vld [vmem:[#allocation14 + $0x548] sm:$0xff]
    %v3915 = vld [vmem:[#allocation14 + $0x550] sm:$0xff]
    %v3916 = vld [vmem:[#allocation14 + $0x558] sm:$0xff]
    %v3917 = vld [vmem:[#allocation14 + $0x560] sm:$0xff]
    %v3918 = vld [vmem:[#allocation14 + $0x568] sm:$0xff]
    %v3919 = vld [vmem:[#allocation14 + $0x570] sm:$0xff]
    %v3920 = vld [vmem:[#allocation14 + $0x578] sm:$0xff]
    %v3921 = vld [vmem:[#allocation14 + $0x580] sm:$0xff]
    %v3922 = vld [vmem:[#allocation14 + $0x588] sm:$0xff]
    %v3923 = vld [vmem:[#allocation14 + $0x590] sm:$0xff]
    %v3924 = vld [vmem:[#allocation14 + $0x598] sm:$0xff]
    %v3925 = vld [vmem:[#allocation14 + $0x5a0] sm:$0xff]
    %v3926 = vld [vmem:[#allocation14 + $0x5a8] sm:$0xff]
    %v3927 = vld [vmem:[#allocation14 + $0x5b0] sm:$0xff]
    %v3928 = vld [vmem:[#allocation14 + $0x5b8] sm:$0xff]
    %v3929 = vld [vmem:[#allocation14 + $0x5c0] sm:$0xff]
    %v3930 = vld [vmem:[#allocation14 + $0x5c8] sm:$0xff]
    %v3931 = vld [vmem:[#allocation14 + $0x5d0] sm:$0xff]
    %v3932 = vld [vmem:[#allocation14 + $0x5d8] sm:$0xff]
    %v3933 = vld [vmem:[#allocation14 + $0x5e0] sm:$0xff]
    %v3934 = vld [vmem:[#allocation14 + $0x5e8] sm:$0xff]
    %v3935 = vld [vmem:[#allocation14 + $0x5f0] sm:$0xff]
    %v3936 = vld [vmem:[#allocation14 + $0x5f8] sm:$0xff]
    %v3937 = vld [vmem:[#allocation14 + $0x600] sm:$0xff]
    %v3938 = vld [vmem:[#allocation14 + $0x608] sm:$0xff]
    %v3939 = vld [vmem:[#allocation14 + $0x610] sm:$0xff]
    %v3940 = vld [vmem:[#allocation14 + $0x618] sm:$0xff]
    %v3941 = vld [vmem:[#allocation14 + $0x620] sm:$0xff]
    %v3942 = vld [vmem:[#allocation14 + $0x628] sm:$0xff]
    %v3943 = vld [vmem:[#allocation14 + $0x630] sm:$0xff]
    %v3944 = vld [vmem:[#allocation14 + $0x638] sm:$0xff]
    %v3945 = vld [vmem:[#allocation14 + $0x640] sm:$0xff]
    %v3946 = vld [vmem:[#allocation14 + $0x648] sm:$0xff]
    %v3947 = vld [vmem:[#allocation14 + $0x650] sm:$0xff]
    %v3948 = vld [vmem:[#allocation14 + $0x658] sm:$0xff]
    %v3949 = vld [vmem:[#allocation14 + $0x660] sm:$0xff]
    %v3950 = vld [vmem:[#allocation14 + $0x668] sm:$0xff]
    %v3951 = vld [vmem:[#allocation14 + $0x670] sm:$0xff]
    %v3952 = vld [vmem:[#allocation14 + $0x678] sm:$0xff]
    %v3953 = vld [vmem:[#allocation14 + $0x680] sm:$0xff]
    %v3954 = vld [vmem:[#allocation14 + $0x688] sm:$0xff]
    %v3955 = vld [vmem:[#allocation14 + $0x690] sm:$0xff]
    %v3956 = vld [vmem:[#allocation14 + $0x698] sm:$0xff]
    %v3957 = vld [vmem:[#allocation14 + $0x6a0] sm:$0xff]
    %v3958 = vld [vmem:[#allocation14 + $0x6a8] sm:$0xff]
    %v3959 = vld [vmem:[#allocation14 + $0x6b0] sm:$0xff]
    %v3960 = vld [vmem:[#allocation14 + $0x6b8] sm:$0xff]
    %v3961 = vld [vmem:[#allocation14 + $0x6c0] sm:$0xff]
    %v3962 = vld [vmem:[#allocation14 + $0x6c8] sm:$0xff]
    %v3963 = vld [vmem:[#allocation14 + $0x6d0] sm:$0xff]
    %v3964 = vld [vmem:[#allocation14 + $0x6d8] sm:$0xff]
    %v3965 = vld [vmem:[#allocation14 + $0x6e0] sm:$0xff]
    %v3966 = vld [vmem:[#allocation14 + $0x6e8] sm:$0xff]
    %v3967 = vld [vmem:[#allocation14 + $0x6f0] sm:$0xff]
    %v3968 = vld [vmem:[#allocation14 + $0x6f8] sm:$0xff]
    %v3969 = vld [vmem:[#allocation14 + $0x700] sm:$0xff]
    %v3970 = vld [vmem:[#allocation14 + $0x708] sm:$0xff]
    %v3971 = vld [vmem:[#allocation14 + $0x710] sm:$0xff]
    %v3972 = vld [vmem:[#allocation14 + $0x718] sm:$0xff]
    %v3973 = vld [vmem:[#allocation14 + $0x720] sm:$0xff]
    %v3974 = vld [vmem:[#allocation14 + $0x728] sm:$0xff]
    %v3975 = vld [vmem:[#allocation14 + $0x730] sm:$0xff]
    %v3976 = vld [vmem:[#allocation14 + $0x738] sm:$0xff]
    %v3977 = vld [vmem:[#allocation14 + $0x740] sm:$0xff]
    %v3978 = vld [vmem:[#allocation14 + $0x748] sm:$0xff]
    %v3979 = vld [vmem:[#allocation14 + $0x750] sm:$0xff]
    %v3980 = vld [vmem:[#allocation14 + $0x758] sm:$0xff]
    %v3981 = vld [vmem:[#allocation14 + $0x760] sm:$0xff]
    %v3982 = vld [vmem:[#allocation14 + $0x768] sm:$0xff]
    %v3983 = vld [vmem:[#allocation14 + $0x770] sm:$0xff]
    %v3984 = vld [vmem:[#allocation14 + $0x778] sm:$0xff]
    %v3985 = vld [vmem:[#allocation14 + $0x780] sm:$0xff]
    %v3986 = vld [vmem:[#allocation14 + $0x788] sm:$0xff]
    %v3987 = vld [vmem:[#allocation14 + $0x790] sm:$0xff]
    %v3988 = vld [vmem:[#allocation14 + $0x798] sm:$0xff]
    %v3989 = vld [vmem:[#allocation14 + $0x7a0] sm:$0xff]
    %v3990 = vld [vmem:[#allocation14 + $0x7a8] sm:$0xff]
    %v3991 = vld [vmem:[#allocation14 + $0x7b0] sm:$0xff]
    %v3992 = vld [vmem:[#allocation14 + $0x7b8] sm:$0xff]
    %v3993 = vld [vmem:[#allocation14 + $0x7c0] sm:$0xff]
    %v3994 = vld [vmem:[#allocation14 + $0x7c8] sm:$0xff]
    %v3995 = vld [vmem:[#allocation14 + $0x7d0] sm:$0xff]
    %v3996 = vld [vmem:[#allocation14 + $0x7d8] sm:$0xff]
    %v3997 = vld [vmem:[#allocation14 + $0x7e0] sm:$0xff]
    %v3998 = vld [vmem:[#allocation14 + $0x7e8] sm:$0xff]
    %v3999 = vld [vmem:[#allocation14 + $0x7f0] sm:$0xff]
    %v4000 = vld [vmem:[#allocation14 + $0x7f8] sm:$0xff]
    %v4001 = vld [vmem:[#allocation14 + $0x800] sm:$0xff]
    %v4002 = vld [vmem:[#allocation14 + $0x808] sm:$0xff]
    %v4003 = vld [vmem:[#allocation14 + $0x810] sm:$0xff]
    %v4004 = vld [vmem:[#allocation14 + $0x818] sm:$0xff]
    %v4005 = vld [vmem:[#allocation14 + $0x820] sm:$0xff]
    %v4006 = vld [vmem:[#allocation14 + $0x828] sm:$0xff]
    %v4007 = vld [vmem:[#allocation14 + $0x830] sm:$0xff]
    %v4008 = vld [vmem:[#allocation14 + $0x838] sm:$0xff]
    %v4009 = vld [vmem:[#allocation14 + $0x840] sm:$0xff]
    %v4010 = vld [vmem:[#allocation14 + $0x848] sm:$0xff]
    %v4011 = vld [vmem:[#allocation14 + $0x850] sm:$0xff]
    %v4012 = vld [vmem:[#allocation14 + $0x858] sm:$0xff]
    %v4013 = vld [vmem:[#allocation14 + $0x860] sm:$0xff]
    %v4014 = vld [vmem:[#allocation14 + $0x868] sm:$0xff]
    %v4015 = vld [vmem:[#allocation14 + $0x870] sm:$0xff]
    %v4016 = vld [vmem:[#allocation14 + $0x878] sm:$0xff]
    %v4017 = vld [vmem:[#allocation14 + $0x880] sm:$0xff]
    %v4018 = vld [vmem:[#allocation14 + $0x888] sm:$0xff]
    %v4019 = vld [vmem:[#allocation14 + $0x890] sm:$0xff]
    %v4020 = vld [vmem:[#allocation14 + $0x898] sm:$0xff]
    %v4021 = vld [vmem:[#allocation14 + $0x8a0] sm:$0xff]
    %v4022 = vld [vmem:[#allocation14 + $0x8a8] sm:$0xff]
    %v4023 = vld [vmem:[#allocation14 + $0x8b0] sm:$0xff]
    %v4024 = vld [vmem:[#allocation14 + $0x8b8] sm:$0xff]
    %v4025 = vld [vmem:[#allocation14 + $0x8c0] sm:$0xff]
    %v4026 = vld [vmem:[#allocation14 + $0x8c8] sm:$0xff]
    %v4027 = vld [vmem:[#allocation14 + $0x8d0] sm:$0xff]
    %v4028 = vld [vmem:[#allocation14 + $0x8d8] sm:$0xff]
    %v4029 = vld [vmem:[#allocation14 + $0x8e0] sm:$0xff]
    %v4030 = vld [vmem:[#allocation14 + $0x8e8] sm:$0xff]
    %v4031 = vld [vmem:[#allocation14 + $0x8f0] sm:$0xff]
    %v4032 = vld [vmem:[#allocation14 + $0x8f8] sm:$0xff]
    %v4033 = vld [vmem:[#allocation14 + $0x900] sm:$0xff]
    %v4034 = vld [vmem:[#allocation14 + $0x908] sm:$0xff]
    %v4035 = vld [vmem:[#allocation14 + $0x910] sm:$0xff]
    %v4036 = vld [vmem:[#allocation14 + $0x918] sm:$0xff]
    %v4037 = vld [vmem:[#allocation14 + $0x920] sm:$0xff]
    %v4038 = vld [vmem:[#allocation14 + $0x928] sm:$0xff]
    %v4039 = vld [vmem:[#allocation14 + $0x930] sm:$0xff]
    %v4040 = vld [vmem:[#allocation14 + $0x938] sm:$0xff]
    %v4041 = vld [vmem:[#allocation14 + $0x940] sm:$0xff]
    %v4042 = vld [vmem:[#allocation14 + $0x948] sm:$0xff]
    %v4043 = vld [vmem:[#allocation14 + $0x950] sm:$0xff]
    %v4044 = vld [vmem:[#allocation14 + $0x958] sm:$0xff]
    %v4045 = vld [vmem:[#allocation14 + $0x960] sm:$0xff]
    %v4046 = vld [vmem:[#allocation14 + $0x968] sm:$0xff]
    %v4047 = vld [vmem:[#allocation14 + $0x970] sm:$0xff]
    %v4048 = vld [vmem:[#allocation14 + $0x978] sm:$0xff]
    %v4049 = vld [vmem:[#allocation14 + $0x980] sm:$0xff]
    %v4050 = vld [vmem:[#allocation14 + $0x988] sm:$0xff]
    %v4051 = vld [vmem:[#allocation14 + $0x990] sm:$0xff]
    %v4052 = vld [vmem:[#allocation14 + $0x998] sm:$0xff]
    %v4053 = vld [vmem:[#allocation14 + $0x9a0] sm:$0xff]
    %v4054 = vld [vmem:[#allocation14 + $0x9a8] sm:$0xff]
    %v4055 = vld [vmem:[#allocation14 + $0x9b0] sm:$0xff]
    %v4056 = vld [vmem:[#allocation14 + $0x9b8] sm:$0xff]
    %v4057 = vld [vmem:[#allocation14 + $0x9c0] sm:$0xff]
    %v4058 = vld [vmem:[#allocation14 + $0x9c8] sm:$0xff]
    %v4059 = vld [vmem:[#allocation14 + $0x9d0] sm:$0xff]
    %v4060 = vld [vmem:[#allocation14 + $0x9d8] sm:$0xff]
    %v4061 = vld [vmem:[#allocation14 + $0x9e0] sm:$0xff]
    %v4062 = vld [vmem:[#allocation14 + $0x9e8] sm:$0xff]
    %v4063 = vld [vmem:[#allocation14 + $0x9f0] sm:$0xff]
    %v4064 = vld [vmem:[#allocation14 + $0x9f8] sm:$0xff]
    %v4065 = vld [vmem:[#allocation14 + $0xa00] sm:$0xff]
    %v4066 = vld [vmem:[#allocation14 + $0xa08] sm:$0xff]
    %v4067 = vld [vmem:[#allocation14 + $0xa10] sm:$0xff]
    %v4068 = vld [vmem:[#allocation14 + $0xa18] sm:$0xff]
    %v4069 = vld [vmem:[#allocation14 + $0xa20] sm:$0xff]
    %v4070 = vld [vmem:[#allocation14 + $0xa28] sm:$0xff]
    %v4071 = vld [vmem:[#allocation14 + $0xa30] sm:$0xff]
    %v4072 = vld [vmem:[#allocation14 + $0xa38] sm:$0xff]
    %v4073 = vld [vmem:[#allocation14 + $0xa40] sm:$0xff]
    %v4074 = vld [vmem:[#allocation14 + $0xa48] sm:$0xff]
    %v4075 = vld [vmem:[#allocation14 + $0xa50] sm:$0xff]
    %v4076 = vld [vmem:[#allocation14 + $0xa58] sm:$0xff]
    %v4077 = vld [vmem:[#allocation14 + $0xa60] sm:$0xff]
    %v4078 = vld [vmem:[#allocation14 + $0xa68] sm:$0xff]
    %v4079 = vld [vmem:[#allocation14 + $0xa70] sm:$0xff]
    %v4080 = vld [vmem:[#allocation14 + $0xa78] sm:$0xff]
    %v4081 = vld [vmem:[#allocation14 + $0xa80] sm:$0xff]
    %v4082 = vld [vmem:[#allocation14 + $0xa88] sm:$0xff]
    %v4083 = vld [vmem:[#allocation14 + $0xa90] sm:$0xff]
    %v4084 = vld [vmem:[#allocation14 + $0xa98] sm:$0xff]
    %v4085 = vld [vmem:[#allocation14 + $0xaa0] sm:$0xff]
    %v4086 = vld [vmem:[#allocation14 + $0xaa8] sm:$0xff]
    %v4087 = vld [vmem:[#allocation14 + $0xab0] sm:$0xff]
    %v4088 = vld [vmem:[#allocation14 + $0xab8] sm:$0xff]
    %v4089 = vld [vmem:[#allocation14 + $0xac0] sm:$0xff]
    %v4090 = vld [vmem:[#allocation14 + $0xac8] sm:$0xff]
    %v4091 = vld [vmem:[#allocation14 + $0xad0] sm:$0xff]
    %v4092 = vld [vmem:[#allocation14 + $0xad8] sm:$0xff]
    %v4093 = vld [vmem:[#allocation14 + $0xae0] sm:$0xff]
    %v4094 = vld [vmem:[#allocation14 + $0xae8] sm:$0xff]
    %v4095 = vld [vmem:[#allocation14 + $0xaf0] sm:$0xff]
    %v4096 = vld [vmem:[#allocation14 + $0xaf8] sm:$0xff]
    %v4097 = vld [vmem:[#allocation14 + $0xb00] sm:$0xff]
    %v4098 = vld [vmem:[#allocation14 + $0xb08] sm:$0xff]
    %v4099 = vld [vmem:[#allocation14 + $0xb10] sm:$0xff]
    %v4100 = vld [vmem:[#allocation14 + $0xb18] sm:$0xff]
    %v4101 = vld [vmem:[#allocation14 + $0xb20] sm:$0xff]
    %v4102 = vld [vmem:[#allocation14 + $0xb28] sm:$0xff]
    %v4103 = vld [vmem:[#allocation14 + $0xb30] sm:$0xff]
    %v4104 = vld [vmem:[#allocation14 + $0xb38] sm:$0xff]
    %v4105 = vld [vmem:[#allocation14 + $0xb40] sm:$0xff]
    %v4106 = vld [vmem:[#allocation14 + $0xb48] sm:$0xff]
    %v4107 = vld [vmem:[#allocation14 + $0xb50] sm:$0xff]
    %v4108 = vld [vmem:[#allocation14 + $0xb58] sm:$0xff]
    %v4109 = vld [vmem:[#allocation14 + $0xb60] sm:$0xff]
    %v4110 = vld [vmem:[#allocation14 + $0xb68] sm:$0xff]
    %v4111 = vld [vmem:[#allocation14 + $0xb70] sm:$0xff]
    %v4112 = vld [vmem:[#allocation14 + $0xb78] sm:$0xff]
    %v4113 = vld [vmem:[#allocation14 + $0xb80] sm:$0xff]
    %v4114 = vld [vmem:[#allocation14 + $0xb88] sm:$0xff]
    %v4115 = vld [vmem:[#allocation14 + $0xb90] sm:$0xff]
    %v4116 = vld [vmem:[#allocation14 + $0xb98] sm:$0xff]
    %v4117 = vld [vmem:[#allocation14 + $0xba0] sm:$0xff]
    %v4118 = vld [vmem:[#allocation14 + $0xba8] sm:$0xff]
    %v4119 = vld [vmem:[#allocation14 + $0xbb0] sm:$0xff]
    %v4120 = vld [vmem:[#allocation14 + $0xbb8] sm:$0xff]
    %v4121 = vld [vmem:[#allocation14 + $0xbc0] sm:$0xff]
    %v4122 = vld [vmem:[#allocation14 + $0xbc8] sm:$0xff]
    %v4123 = vld [vmem:[#allocation14 + $0xbd0] sm:$0xff]
    %v4124 = vld [vmem:[#allocation14 + $0xbd8] sm:$0xff]
    %v4125 = vld [vmem:[#allocation14 + $0xbe0] sm:$0xff]
    %v4126 = vld [vmem:[#allocation14 + $0xbe8] sm:$0xff]
    %v4127 = vld [vmem:[#allocation14 + $0xbf0] sm:$0xff]
    %v4128 = vld [vmem:[#allocation14 + $0xbf8] sm:$0xff]
    %v4129 = vld [vmem:[#allocation14 + $0xc00] sm:$0xff]
    %v4130 = vld [vmem:[#allocation14 + $0xc08] sm:$0xff]
    %v4131 = vld [vmem:[#allocation14 + $0xc10] sm:$0xff]
    %v4132 = vld [vmem:[#allocation14 + $0xc18] sm:$0xff]
    %v4133 = vld [vmem:[#allocation14 + $0xc20] sm:$0xff]
    %v4134 = vld [vmem:[#allocation14 + $0xc28] sm:$0xff]
    %v4135 = vld [vmem:[#allocation14 + $0xc30] sm:$0xff]
    %v4136 = vld [vmem:[#allocation14 + $0xc38] sm:$0xff]
    %v4137 = vld [vmem:[#allocation14 + $0xc40] sm:$0xff]
    %v4138 = vld [vmem:[#allocation14 + $0xc48] sm:$0xff]
    %v4139 = vld [vmem:[#allocation14 + $0xc50] sm:$0xff]
    %v4140 = vld [vmem:[#allocation14 + $0xc58] sm:$0xff]
    %v4141 = vld [vmem:[#allocation14 + $0xc60] sm:$0xff]
    %v4142 = vld [vmem:[#allocation14 + $0xc68] sm:$0xff]
    %v4143 = vld [vmem:[#allocation14 + $0xc70] sm:$0xff]
    %v4144 = vld [vmem:[#allocation14 + $0xc78] sm:$0xff]
    %v4145 = vld [vmem:[#allocation14 + $0xc80] sm:$0xff]
    %v4146 = vld [vmem:[#allocation14 + $0xc88] sm:$0xff]
    %v4147 = vld [vmem:[#allocation14 + $0xc90] sm:$0xff]
    %v4148 = vld [vmem:[#allocation14 + $0xc98] sm:$0xff]
    %v4149 = vld [vmem:[#allocation14 + $0xca0] sm:$0xff]
    %v4150 = vld [vmem:[#allocation14 + $0xca8] sm:$0xff]
    %v4151 = vld [vmem:[#allocation14 + $0xcb0] sm:$0xff]
    %v4152 = vld [vmem:[#allocation14 + $0xcb8] sm:$0xff]
    %v4153 = vld [vmem:[#allocation14 + $0xcc0] sm:$0xff]
    %v4154 = vld [vmem:[#allocation14 + $0xcc8] sm:$0xff]
    %v4155 = vld [vmem:[#allocation14 + $0xcd0] sm:$0xff]
    %v4156 = vld [vmem:[#allocation14 + $0xcd8] sm:$0xff]
    %v4157 = vld [vmem:[#allocation14 + $0xce0] sm:$0xff]
    %v4158 = vld [vmem:[#allocation14 + $0xce8] sm:$0xff]
    %v4159 = vld [vmem:[#allocation14 + $0xcf0] sm:$0xff]
    %v4160 = vld [vmem:[#allocation14 + $0xcf8] sm:$0xff]
    %v4161 = vld [vmem:[#allocation14 + $0xd00] sm:$0xff]
    %v4162 = vld [vmem:[#allocation14 + $0xd08] sm:$0xff]
    %v4163 = vld [vmem:[#allocation14 + $0xd10] sm:$0xff]
    %v4164 = vld [vmem:[#allocation14 + $0xd18] sm:$0xff]
    %v4165 = vld [vmem:[#allocation14 + $0xd20] sm:$0xff]
    %v4166 = vld [vmem:[#allocation14 + $0xd28] sm:$0xff]
    %v4167 = vld [vmem:[#allocation14 + $0xd30] sm:$0xff]
    %v4168 = vld [vmem:[#allocation14 + $0xd38] sm:$0xff]
    %v4169 = vld [vmem:[#allocation14 + $0xd40] sm:$0xff]
    %v4170 = vld [vmem:[#allocation14 + $0xd48] sm:$0xff]
    %v4171 = vld [vmem:[#allocation14 + $0xd50] sm:$0xff]
    %v4172 = vld [vmem:[#allocation14 + $0xd58] sm:$0xff]
    %v4173 = vld [vmem:[#allocation14 + $0xd60] sm:$0xff]
    %v4174 = vld [vmem:[#allocation14 + $0xd68] sm:$0xff]
    %v4175 = vld [vmem:[#allocation14 + $0xd70] sm:$0xff]
    %v4176 = vld [vmem:[#allocation14 + $0xd78] sm:$0xff]
    %v4177 = vld [vmem:[#allocation14 + $0xd80] sm:$0xff]
    %v4178 = vld [vmem:[#allocation14 + $0xd88] sm:$0xff]
    %v4179 = vld [vmem:[#allocation14 + $0xd90] sm:$0xff]
    %v4180 = vld [vmem:[#allocation14 + $0xd98] sm:$0xff]
    %v4181 = vld [vmem:[#allocation14 + $0xda0] sm:$0xff]
    %v4182 = vld [vmem:[#allocation14 + $0xda8] sm:$0xff]
    %v4183 = vld [vmem:[#allocation14 + $0xdb0] sm:$0xff]
    %v4184 = vld [vmem:[#allocation14 + $0xdb8] sm:$0xff]
    %v4185 = vld [vmem:[#allocation14 + $0xdc0] sm:$0xff]
    %v4186 = vld [vmem:[#allocation14 + $0xdc8] sm:$0xff]
    %v4187 = vld [vmem:[#allocation14 + $0xdd0] sm:$0xff]
    %v4188 = vld [vmem:[#allocation14 + $0xdd8] sm:$0xff]
    %v4189 = vld [vmem:[#allocation14 + $0xde0] sm:$0xff]
    %v4190 = vld [vmem:[#allocation14 + $0xde8] sm:$0xff]
    %v4191 = vld [vmem:[#allocation14 + $0xdf0] sm:$0xff]
    %v4192 = vld [vmem:[#allocation14 + $0xdf8] sm:$0xff]
    %v4193 = vld [vmem:[#allocation14 + $0xe00] sm:$0xff]
    %v4194 = vld [vmem:[#allocation14 + $0xe08] sm:$0xff]
    %v4195 = vld [vmem:[#allocation14 + $0xe10] sm:$0xff]
    %v4196 = vld [vmem:[#allocation14 + $0xe18] sm:$0xff]
    %v4197 = vld [vmem:[#allocation14 + $0xe20] sm:$0xff]
    %v4198 = vld [vmem:[#allocation14 + $0xe28] sm:$0xff]
    %v4199 = vld [vmem:[#allocation14 + $0xe30] sm:$0xff]
    %v4200 = vld [vmem:[#allocation14 + $0xe38] sm:$0xff]
    %v4201 = vld [vmem:[#allocation14 + $0xe40] sm:$0xff]
    %v4202 = vld [vmem:[#allocation14 + $0xe48] sm:$0xff]
    %v4203 = vld [vmem:[#allocation14 + $0xe50] sm:$0xff]
    %v4204 = vld [vmem:[#allocation14 + $0xe58] sm:$0xff]
    %v4205 = vld [vmem:[#allocation14 + $0xe60] sm:$0xff]
    %v4206 = vld [vmem:[#allocation14 + $0xe68] sm:$0xff]
    %v4207 = vld [vmem:[#allocation14 + $0xe70] sm:$0xff]
    %v4208 = vld [vmem:[#allocation14 + $0xe78] sm:$0xff]
    %v4209 = vld [vmem:[#allocation14 + $0xe80] sm:$0xff]
    %v4210 = vld [vmem:[#allocation14 + $0xe88] sm:$0xff]
    %v4211 = vld [vmem:[#allocation14 + $0xe90] sm:$0xff]
    %v4212 = vld [vmem:[#allocation14 + $0xe98] sm:$0xff]
    %v4213 = vld [vmem:[#allocation14 + $0xea0] sm:$0xff]
    %v4214 = vld [vmem:[#allocation14 + $0xea8] sm:$0xff]
    %v4215 = vld [vmem:[#allocation14 + $0xeb0] sm:$0xff]
    %v4216 = vld [vmem:[#allocation14 + $0xeb8] sm:$0xff]
    %v4217 = vld [vmem:[#allocation14 + $0xec0] sm:$0xff]
    %v4218 = vld [vmem:[#allocation14 + $0xec8] sm:$0xff]
    %v4219 = vld [vmem:[#allocation14 + $0xed0] sm:$0xff]
    %v4220 = vld [vmem:[#allocation14 + $0xed8] sm:$0xff]
    %v4221 = vld [vmem:[#allocation14 + $0xee0] sm:$0xff]
    %v4222 = vld [vmem:[#allocation14 + $0xee8] sm:$0xff]
    %v4223 = vld [vmem:[#allocation14 + $0xef0] sm:$0xff]
    %v4224 = vld [vmem:[#allocation14 + $0xef8] sm:$0xff]
    %v4225 = vld [vmem:[#allocation14 + $0xf00] sm:$0xff]
    %v4226 = vld [vmem:[#allocation14 + $0xf08] sm:$0xff]
    %v4227 = vld [vmem:[#allocation14 + $0xf10] sm:$0xff]
    %v4228 = vld [vmem:[#allocation14 + $0xf18] sm:$0xff]
    %v4229 = vld [vmem:[#allocation14 + $0xf20] sm:$0xff]
    %v4230 = vld [vmem:[#allocation14 + $0xf28] sm:$0xff]
    %v4231 = vld [vmem:[#allocation14 + $0xf30] sm:$0xff]
    %v4232 = vld [vmem:[#allocation14 + $0xf38] sm:$0xff]
    %v4233 = vld [vmem:[#allocation14 + $0xf40] sm:$0xff]
    %v4234 = vld [vmem:[#allocation14 + $0xf48] sm:$0xff]
    %v4235 = vld [vmem:[#allocation14 + $0xf50] sm:$0xff]
    %v4236 = vld [vmem:[#allocation14 + $0xf58] sm:$0xff]
    %v4237 = vld [vmem:[#allocation14 + $0xf60] sm:$0xff]
    %v4238 = vld [vmem:[#allocation14 + $0xf68] sm:$0xff]
    %v4239 = vld [vmem:[#allocation14 + $0xf70] sm:$0xff]
    %v4240 = vld [vmem:[#allocation14 + $0xf78] sm:$0xff]
    %v4241 = vld [vmem:[#allocation14 + $0xf80] sm:$0xff]
    %v4242 = vld [vmem:[#allocation14 + $0xf88] sm:$0xff]
    %v4243 = vld [vmem:[#allocation14 + $0xf90] sm:$0xff]
    %v4244 = vld [vmem:[#allocation14 + $0xf98] sm:$0xff]
    %v4245 = vld [vmem:[#allocation14 + $0xfa0] sm:$0xff]
    %v4246 = vld [vmem:[#allocation14 + $0xfa8] sm:$0xff]
    %v4247 = vld [vmem:[#allocation14 + $0xfb0] sm:$0xff]
    %v4248 = vld [vmem:[#allocation14 + $0xfb8] sm:$0xff]
    %v4249 = vld [vmem:[#allocation14 + $0xfc0] sm:$0xff]
    %v4250 = vld [vmem:[#allocation14 + $0xfc8] sm:$0xff]
    %v4251 = vld [vmem:[#allocation14 + $0xfd0] sm:$0xff]
    %v4252 = vld [vmem:[#allocation14 + $0xfd8] sm:$0xff]
    %v4253 = vld [vmem:[#allocation14 + $0xfe0] sm:$0xff]
    %v4254 = vld [vmem:[#allocation14 + $0xfe8] sm:$0xff]
    %v4255 = vld [vmem:[#allocation14 + $0xff0] sm:$0xff]
    %v4256 = vld [vmem:[#allocation14 + $0xff8] sm:$0xff]
    %v4258 = vlaneseq
    %v4259 = vshrl.u32 %v4258, 7
    %v4260 = vsub.s32 0, %v4259
    %v4261 = vrot.slane %v3744, %v4260
    %v4262 = vlaneseq
    %v4263 = vshrl.u32 %v4262, 7
    %v4264 = vsub.s32 1, %v4263
    %v4265 = vrot.slane %v3744, %v4264
    %v4266 = vlaneseq
    %v4267 = vshrl.u32 %v4266, 7
    %v4268 = vsub.s32 2, %v4267
    %v4269 = vrot.slane %v3744, %v4268
    %v4270 = vlaneseq
    %v4271 = vshrl.u32 %v4270, 7
    %v4272 = vsub.s32 3, %v4271
    %v4273 = vrot.slane %v3744, %v4272
    %v4274 = vlaneseq
    %v4275 = vshrl.u32 %v4274, 7
    %v4276 = vsub.s32 4, %v4275
    %v4277 = vrot.slane %v3744, %v4276
    %v4278 = vlaneseq
    %v4279 = vshrl.u32 %v4278, 7
    %v4280 = vsub.s32 5, %v4279
    %v4281 = vrot.slane %v3744, %v4280
    %v4282 = vlaneseq
    %v4283 = vshrl.u32 %v4282, 7
    %v4284 = vsub.s32 6, %v4283
    %v4285 = vrot.slane %v3744, %v4284
    %v4286 = vlaneseq
    %v4287 = vshrl.u32 %v4286, 7
    %v4288 = vsub.s32 7, %v4287
    %v4289 = vrot.slane %v3744, %v4288
    %v4810 = vunpack.c.l.b16 %v3745
    %v4811 = vunpack.c.h.b16 %v3745
    %v4812 = vunpack.c.l.b16 %v3746
    %v4813 = vunpack.c.h.b16 %v3746
    %v4814 = vunpack.c.l.b16 %v3747
    %v4815 = vunpack.c.h.b16 %v3747
    %v4816 = vunpack.c.l.b16 %v3748
    %v4817 = vunpack.c.h.b16 %v3748
    %v4818 = vunpack.c.l.b16 %v3749
    %v4819 = vunpack.c.h.b16 %v3749
    %v4820 = vunpack.c.l.b16 %v3750
    %v4821 = vunpack.c.h.b16 %v3750
    %v4822 = vunpack.c.l.b16 %v3751
    %v4823 = vunpack.c.h.b16 %v3751
    %v4824 = vunpack.c.l.b16 %v3752
    %v4825 = vunpack.c.h.b16 %v3752
    %v4826 = vunpack.c.l.b16 %v3753
    %v4827 = vunpack.c.h.b16 %v3753
    %v4828 = vunpack.c.l.b16 %v3754
    %v4829 = vunpack.c.h.b16 %v3754
    %v4830 = vunpack.c.l.b16 %v3755
    %v4831 = vunpack.c.h.b16 %v3755
    %v4832 = vunpack.c.l.b16 %v3756
    %v4833 = vunpack.c.h.b16 %v3756
    %v4834 = vunpack.c.l.b16 %v3757
    %v4835 = vunpack.c.h.b16 %v3757
    %v4836 = vunpack.c.l.b16 %v3758
    %v4837 = vunpack.c.h.b16 %v3758
    %v4838 = vunpack.c.l.b16 %v3759
    %v4839 = vunpack.c.h.b16 %v3759
    %v4840 = vunpack.c.l.b16 %v3760
    %v4841 = vunpack.c.h.b16 %v3760
    %v4842 = vunpack.c.l.b16 %v3761
    %v4843 = vunpack.c.h.b16 %v3761
    %v4844 = vunpack.c.l.b16 %v3762
    %v4845 = vunpack.c.h.b16 %v3762
    %v4846 = vunpack.c.l.b16 %v3763
    %v4847 = vunpack.c.h.b16 %v3763
    %v4848 = vunpack.c.l.b16 %v3764
    %v4849 = vunpack.c.h.b16 %v3764
    %v4850 = vunpack.c.l.b16 %v3765
    %v4851 = vunpack.c.h.b16 %v3765
    %v4852 = vunpack.c.l.b16 %v3766
    %v4853 = vunpack.c.h.b16 %v3766
    %v4854 = vunpack.c.l.b16 %v3767
    %v4855 = vunpack.c.h.b16 %v3767
    %v4856 = vunpack.c.l.b16 %v3768
    %v4857 = vunpack.c.h.b16 %v3768
    %v4858 = vunpack.c.l.b16 %v3769
    %v4859 = vunpack.c.h.b16 %v3769
    %v4860 = vunpack.c.l.b16 %v3770
    %v4861 = vunpack.c.h.b16 %v3770
    %v4862 = vunpack.c.l.b16 %v3771
    %v4863 = vunpack.c.h.b16 %v3771
    %v4864 = vunpack.c.l.b16 %v3772
    %v4865 = vunpack.c.h.b16 %v3772
    %v4866 = vunpack.c.l.b16 %v3773
    %v4867 = vunpack.c.h.b16 %v3773
    %v4868 = vunpack.c.l.b16 %v3774
    %v4869 = vunpack.c.h.b16 %v3774
    %v4870 = vunpack.c.l.b16 %v3775
    %v4871 = vunpack.c.h.b16 %v3775
    %v4872 = vunpack.c.l.b16 %v3776
    %v4873 = vunpack.c.h.b16 %v3776
    %v4874 = vunpack.c.l.b16 %v3777
    %v4875 = vunpack.c.h.b16 %v3777
    %v4876 = vunpack.c.l.b16 %v3778
    %v4877 = vunpack.c.h.b16 %v3778
    %v4878 = vunpack.c.l.b16 %v3779
    %v4879 = vunpack.c.h.b16 %v3779
    %v4880 = vunpack.c.l.b16 %v3780
    %v4881 = vunpack.c.h.b16 %v3780
    %v4882 = vunpack.c.l.b16 %v3781
    %v4883 = vunpack.c.h.b16 %v3781
    %v4884 = vunpack.c.l.b16 %v3782
    %v4885 = vunpack.c.h.b16 %v3782
    %v4886 = vunpack.c.l.b16 %v3783
    %v4887 = vunpack.c.h.b16 %v3783
    %v4888 = vunpack.c.l.b16 %v3784
    %v4889 = vunpack.c.h.b16 %v3784
    %v4890 = vunpack.c.l.b16 %v3785
    %v4891 = vunpack.c.h.b16 %v3785
    %v4892 = vunpack.c.l.b16 %v3786
    %v4893 = vunpack.c.h.b16 %v3786
    %v4894 = vunpack.c.l.b16 %v3787
    %v4895 = vunpack.c.h.b16 %v3787
    %v4896 = vunpack.c.l.b16 %v3788
    %v4897 = vunpack.c.h.b16 %v3788
    %v4898 = vunpack.c.l.b16 %v3789
    %v4899 = vunpack.c.h.b16 %v3789
    %v4900 = vunpack.c.l.b16 %v3790
    %v4901 = vunpack.c.h.b16 %v3790
    %v4902 = vunpack.c.l.b16 %v3791
    %v4903 = vunpack.c.h.b16 %v3791
    %v4904 = vunpack.c.l.b16 %v3792
    %v4905 = vunpack.c.h.b16 %v3792
    %v4906 = vunpack.c.l.b16 %v3793
    %v4907 = vunpack.c.h.b16 %v3793
    %v4908 = vunpack.c.l.b16 %v3794
    %v4909 = vunpack.c.h.b16 %v3794
    %v4910 = vunpack.c.l.b16 %v3795
    %v4911 = vunpack.c.h.b16 %v3795
    %v4912 = vunpack.c.l.b16 %v3796
    %v4913 = vunpack.c.h.b16 %v3796
    %v4914 = vunpack.c.l.b16 %v3797
    %v4915 = vunpack.c.h.b16 %v3797
    %v4916 = vunpack.c.l.b16 %v3798
    %v4917 = vunpack.c.h.b16 %v3798
    %v4918 = vunpack.c.l.b16 %v3799
    %v4919 = vunpack.c.h.b16 %v3799
    %v4920 = vunpack.c.l.b16 %v3800
    %v4921 = vunpack.c.h.b16 %v3800
    %v4922 = vunpack.c.l.b16 %v3801
    %v4923 = vunpack.c.h.b16 %v3801
    %v4924 = vunpack.c.l.b16 %v3802
    %v4925 = vunpack.c.h.b16 %v3802
    %v4926 = vunpack.c.l.b16 %v3803
    %v4927 = vunpack.c.h.b16 %v3803
    %v4928 = vunpack.c.l.b16 %v3804
    %v4929 = vunpack.c.h.b16 %v3804
    %v4930 = vunpack.c.l.b16 %v3805
    %v4931 = vunpack.c.h.b16 %v3805
    %v4932 = vunpack.c.l.b16 %v3806
    %v4933 = vunpack.c.h.b16 %v3806
    %v4934 = vunpack.c.l.b16 %v3807
    %v4935 = vunpack.c.h.b16 %v3807
    %v4936 = vunpack.c.l.b16 %v3808
    %v4937 = vunpack.c.h.b16 %v3808
    %v4938 = vunpack.c.l.b16 %v3809
    %v4939 = vunpack.c.h.b16 %v3809
    %v4940 = vunpack.c.l.b16 %v3810
    %v4941 = vunpack.c.h.b16 %v3810
    %v4942 = vunpack.c.l.b16 %v3811
    %v4943 = vunpack.c.h.b16 %v3811
    %v4944 = vunpack.c.l.b16 %v3812
    %v4945 = vunpack.c.h.b16 %v3812
    %v4946 = vunpack.c.l.b16 %v3813
    %v4947 = vunpack.c.h.b16 %v3813
    %v4948 = vunpack.c.l.b16 %v3814
    %v4949 = vunpack.c.h.b16 %v3814
    %v4950 = vunpack.c.l.b16 %v3815
    %v4951 = vunpack.c.h.b16 %v3815
    %v4952 = vunpack.c.l.b16 %v3816
    %v4953 = vunpack.c.h.b16 %v3816
    %v4954 = vunpack.c.l.b16 %v3817
    %v4955 = vunpack.c.h.b16 %v3817
    %v4956 = vunpack.c.l.b16 %v3818
    %v4957 = vunpack.c.h.b16 %v3818
    %v4958 = vunpack.c.l.b16 %v3819
    %v4959 = vunpack.c.h.b16 %v3819
    %v4960 = vunpack.c.l.b16 %v3820
    %v4961 = vunpack.c.h.b16 %v3820
    %v4962 = vunpack.c.l.b16 %v3821
    %v4963 = vunpack.c.h.b16 %v3821
    %v4964 = vunpack.c.l.b16 %v3822
    %v4965 = vunpack.c.h.b16 %v3822
    %v4966 = vunpack.c.l.b16 %v3823
    %v4967 = vunpack.c.h.b16 %v3823
    %v4968 = vunpack.c.l.b16 %v3824
    %v4969 = vunpack.c.h.b16 %v3824
    %v4970 = vunpack.c.l.b16 %v3825
    %v4971 = vunpack.c.h.b16 %v3825
    %v4972 = vunpack.c.l.b16 %v3826
    %v4973 = vunpack.c.h.b16 %v3826
    %v4974 = vunpack.c.l.b16 %v3827
    %v4975 = vunpack.c.h.b16 %v3827
    %v4976 = vunpack.c.l.b16 %v3828
    %v4977 = vunpack.c.h.b16 %v3828
    %v4978 = vunpack.c.l.b16 %v3829
    %v4979 = vunpack.c.h.b16 %v3829
    %v4980 = vunpack.c.l.b16 %v3830
    %v4981 = vunpack.c.h.b16 %v3830
    %v4982 = vunpack.c.l.b16 %v3831
    %v4983 = vunpack.c.h.b16 %v3831
    %v4984 = vunpack.c.l.b16 %v3832
    %v4985 = vunpack.c.h.b16 %v3832
    %v4986 = vunpack.c.l.b16 %v3833
    %v4987 = vunpack.c.h.b16 %v3833
    %v4988 = vunpack.c.l.b16 %v3834
    %v4989 = vunpack.c.h.b16 %v3834
    %v4990 = vunpack.c.l.b16 %v3835
    %v4991 = vunpack.c.h.b16 %v3835
    %v4992 = vunpack.c.l.b16 %v3836
    %v4993 = vunpack.c.h.b16 %v3836
    %v4994 = vunpack.c.l.b16 %v3837
    %v4995 = vunpack.c.h.b16 %v3837
    %v4996 = vunpack.c.l.b16 %v3838
    %v4997 = vunpack.c.h.b16 %v3838
    %v4998 = vunpack.c.l.b16 %v3839
    %v4999 = vunpack.c.h.b16 %v3839
    %v5000 = vunpack.c.l.b16 %v3840
    %v5001 = vunpack.c.h.b16 %v3840
    %v5002 = vunpack.c.l.b16 %v3841
    %v5003 = vunpack.c.h.b16 %v3841
    %v5004 = vunpack.c.l.b16 %v3842
    %v5005 = vunpack.c.h.b16 %v3842
    %v5006 = vunpack.c.l.b16 %v3843
    %v5007 = vunpack.c.h.b16 %v3843
    %v5008 = vunpack.c.l.b16 %v3844
    %v5009 = vunpack.c.h.b16 %v3844
    %v5010 = vunpack.c.l.b16 %v3845
    %v5011 = vunpack.c.h.b16 %v3845
    %v5012 = vunpack.c.l.b16 %v3846
    %v5013 = vunpack.c.h.b16 %v3846
    %v5014 = vunpack.c.l.b16 %v3847
    %v5015 = vunpack.c.h.b16 %v3847
    %v5016 = vunpack.c.l.b16 %v3848
    %v5017 = vunpack.c.h.b16 %v3848
    %v5018 = vunpack.c.l.b16 %v3849
    %v5019 = vunpack.c.h.b16 %v3849
    %v5020 = vunpack.c.l.b16 %v3850
    %v5021 = vunpack.c.h.b16 %v3850
    %v5022 = vunpack.c.l.b16 %v3851
    %v5023 = vunpack.c.h.b16 %v3851
    %v5024 = vunpack.c.l.b16 %v3852
    %v5025 = vunpack.c.h.b16 %v3852
    %v5026 = vunpack.c.l.b16 %v3853
    %v5027 = vunpack.c.h.b16 %v3853
    %v5028 = vunpack.c.l.b16 %v3854
    %v5029 = vunpack.c.h.b16 %v3854
    %v5030 = vunpack.c.l.b16 %v3855
    %v5031 = vunpack.c.h.b16 %v3855
    %v5032 = vunpack.c.l.b16 %v3856
    %v5033 = vunpack.c.h.b16 %v3856
    %v5034 = vunpack.c.l.b16 %v3857
    %v5035 = vunpack.c.h.b16 %v3857
    %v5036 = vunpack.c.l.b16 %v3858
    %v5037 = vunpack.c.h.b16 %v3858
    %v5038 = vunpack.c.l.b16 %v3859
    %v5039 = vunpack.c.h.b16 %v3859
    %v5040 = vunpack.c.l.b16 %v3860
    %v5041 = vunpack.c.h.b16 %v3860
    %v5042 = vunpack.c.l.b16 %v3861
    %v5043 = vunpack.c.h.b16 %v3861
    %v5044 = vunpack.c.l.b16 %v3862
    %v5045 = vunpack.c.h.b16 %v3862
    %v5046 = vunpack.c.l.b16 %v3863
    %v5047 = vunpack.c.h.b16 %v3863
    %v5048 = vunpack.c.l.b16 %v3864
    %v5049 = vunpack.c.h.b16 %v3864
    %v5050 = vunpack.c.l.b16 %v3865
    %v5051 = vunpack.c.h.b16 %v3865
    %v5052 = vunpack.c.l.b16 %v3866
    %v5053 = vunpack.c.h.b16 %v3866
    %v5054 = vunpack.c.l.b16 %v3867
    %v5055 = vunpack.c.h.b16 %v3867
    %v5056 = vunpack.c.l.b16 %v3868
    %v5057 = vunpack.c.h.b16 %v3868
    %v5058 = vunpack.c.l.b16 %v3869
    %v5059 = vunpack.c.h.b16 %v3869
    %v5060 = vunpack.c.l.b16 %v3870
    %v5061 = vunpack.c.h.b16 %v3870
    %v5062 = vunpack.c.l.b16 %v3871
    %v5063 = vunpack.c.h.b16 %v3871
    %v5064 = vunpack.c.l.b16 %v3872
    %v5065 = vunpack.c.h.b16 %v3872
    %v5066 = vunpack.c.l.b16 %v3873
    %v5067 = vunpack.c.h.b16 %v3873
    %v5068 = vunpack.c.l.b16 %v3874
    %v5069 = vunpack.c.h.b16 %v3874
    %v5070 = vunpack.c.l.b16 %v3875
    %v5071 = vunpack.c.h.b16 %v3875
    %v5072 = vunpack.c.l.b16 %v3876
    %v5073 = vunpack.c.h.b16 %v3876
    %v5074 = vunpack.c.l.b16 %v3877
    %v5075 = vunpack.c.h.b16 %v3877
    %v5076 = vunpack.c.l.b16 %v3878
    %v5077 = vunpack.c.h.b16 %v3878
    %v5078 = vunpack.c.l.b16 %v3879
    %v5079 = vunpack.c.h.b16 %v3879
    %v5080 = vunpack.c.l.b16 %v3880
    %v5081 = vunpack.c.h.b16 %v3880
    %v5082 = vunpack.c.l.b16 %v3881
    %v5083 = vunpack.c.h.b16 %v3881
    %v5084 = vunpack.c.l.b16 %v3882
    %v5085 = vunpack.c.h.b16 %v3882
    %v5086 = vunpack.c.l.b16 %v3883
    %v5087 = vunpack.c.h.b16 %v3883
    %v5088 = vunpack.c.l.b16 %v3884
    %v5089 = vunpack.c.h.b16 %v3884
    %v5090 = vunpack.c.l.b16 %v3885
    %v5091 = vunpack.c.h.b16 %v3885
    %v5092 = vunpack.c.l.b16 %v3886
    %v5093 = vunpack.c.h.b16 %v3886
    %v5094 = vunpack.c.l.b16 %v3887
    %v5095 = vunpack.c.h.b16 %v3887
    %v5096 = vunpack.c.l.b16 %v3888
    %v5097 = vunpack.c.h.b16 %v3888
    %v5098 = vunpack.c.l.b16 %v3889
    %v5099 = vunpack.c.h.b16 %v3889
    %v5100 = vunpack.c.l.b16 %v3890
    %v5101 = vunpack.c.h.b16 %v3890
    %v5102 = vunpack.c.l.b16 %v3891
    %v5103 = vunpack.c.h.b16 %v3891
    %v5104 = vunpack.c.l.b16 %v3892
    %v5105 = vunpack.c.h.b16 %v3892
    %v5106 = vunpack.c.l.b16 %v3893
    %v5107 = vunpack.c.h.b16 %v3893
    %v5108 = vunpack.c.l.b16 %v3894
    %v5109 = vunpack.c.h.b16 %v3894
    %v5110 = vunpack.c.l.b16 %v3895
    %v5111 = vunpack.c.h.b16 %v3895
    %v5112 = vunpack.c.l.b16 %v3896
    %v5113 = vunpack.c.h.b16 %v3896
    %v5114 = vunpack.c.l.b16 %v3897
    %v5115 = vunpack.c.h.b16 %v3897
    %v5116 = vunpack.c.l.b16 %v3898
    %v5117 = vunpack.c.h.b16 %v3898
    %v5118 = vunpack.c.l.b16 %v3899
    %v5119 = vunpack.c.h.b16 %v3899
    %v5120 = vunpack.c.l.b16 %v3900
    %v5121 = vunpack.c.h.b16 %v3900
    %v5122 = vunpack.c.l.b16 %v3901
    %v5123 = vunpack.c.h.b16 %v3901
    %v5124 = vunpack.c.l.b16 %v3902
    %v5125 = vunpack.c.h.b16 %v3902
    %v5126 = vunpack.c.l.b16 %v3903
    %v5127 = vunpack.c.h.b16 %v3903
    %v5128 = vunpack.c.l.b16 %v3904
    %v5129 = vunpack.c.h.b16 %v3904
    %v5130 = vunpack.c.l.b16 %v3905
    %v5131 = vunpack.c.h.b16 %v3905
    %v5132 = vunpack.c.l.b16 %v3906
    %v5133 = vunpack.c.h.b16 %v3906
    %v5134 = vunpack.c.l.b16 %v3907
    %v5135 = vunpack.c.h.b16 %v3907
    %v5136 = vunpack.c.l.b16 %v3908
    %v5137 = vunpack.c.h.b16 %v3908
    %v5138 = vunpack.c.l.b16 %v3909
    %v5139 = vunpack.c.h.b16 %v3909
    %v5140 = vunpack.c.l.b16 %v3910
    %v5141 = vunpack.c.h.b16 %v3910
    %v5142 = vunpack.c.l.b16 %v3911
    %v5143 = vunpack.c.h.b16 %v3911
    %v5144 = vunpack.c.l.b16 %v3912
    %v5145 = vunpack.c.h.b16 %v3912
    %v5146 = vunpack.c.l.b16 %v3913
    %v5147 = vunpack.c.h.b16 %v3913
    %v5148 = vunpack.c.l.b16 %v3914
    %v5149 = vunpack.c.h.b16 %v3914
    %v5150 = vunpack.c.l.b16 %v3915
    %v5151 = vunpack.c.h.b16 %v3915
    %v5152 = vunpack.c.l.b16 %v3916
    %v5153 = vunpack.c.h.b16 %v3916
    %v5154 = vunpack.c.l.b16 %v3917
    %v5155 = vunpack.c.h.b16 %v3917
    %v5156 = vunpack.c.l.b16 %v3918
    %v5157 = vunpack.c.h.b16 %v3918
    %v5158 = vunpack.c.l.b16 %v3919
    %v5159 = vunpack.c.h.b16 %v3919
    %v5160 = vunpack.c.l.b16 %v3920
    %v5161 = vunpack.c.h.b16 %v3920
    %v5162 = vunpack.c.l.b16 %v3921
    %v5163 = vunpack.c.h.b16 %v3921
    %v5164 = vunpack.c.l.b16 %v3922
    %v5165 = vunpack.c.h.b16 %v3922
    %v5166 = vunpack.c.l.b16 %v3923
    %v5167 = vunpack.c.h.b16 %v3923
    %v5168 = vunpack.c.l.b16 %v3924
    %v5169 = vunpack.c.h.b16 %v3924
    %v5170 = vunpack.c.l.b16 %v3925
    %v5171 = vunpack.c.h.b16 %v3925
    %v5172 = vunpack.c.l.b16 %v3926
    %v5173 = vunpack.c.h.b16 %v3926
    %v5174 = vunpack.c.l.b16 %v3927
    %v5175 = vunpack.c.h.b16 %v3927
    %v5176 = vunpack.c.l.b16 %v3928
    %v5177 = vunpack.c.h.b16 %v3928
    %v5178 = vunpack.c.l.b16 %v3929
    %v5179 = vunpack.c.h.b16 %v3929
    %v5180 = vunpack.c.l.b16 %v3930
    %v5181 = vunpack.c.h.b16 %v3930
    %v5182 = vunpack.c.l.b16 %v3931
    %v5183 = vunpack.c.h.b16 %v3931
    %v5184 = vunpack.c.l.b16 %v3932
    %v5185 = vunpack.c.h.b16 %v3932
    %v5186 = vunpack.c.l.b16 %v3933
    %v5187 = vunpack.c.h.b16 %v3933
    %v5188 = vunpack.c.l.b16 %v3934
    %v5189 = vunpack.c.h.b16 %v3934
    %v5190 = vunpack.c.l.b16 %v3935
    %v5191 = vunpack.c.h.b16 %v3935
    %v5192 = vunpack.c.l.b16 %v3936
    %v5193 = vunpack.c.h.b16 %v3936
    %v5194 = vunpack.c.l.b16 %v3937
    %v5195 = vunpack.c.h.b16 %v3937
    %v5196 = vunpack.c.l.b16 %v3938
    %v5197 = vunpack.c.h.b16 %v3938
    %v5198 = vunpack.c.l.b16 %v3939
    %v5199 = vunpack.c.h.b16 %v3939
    %v5200 = vunpack.c.l.b16 %v3940
    %v5201 = vunpack.c.h.b16 %v3940
    %v5202 = vunpack.c.l.b16 %v3941
    %v5203 = vunpack.c.h.b16 %v3941
    %v5204 = vunpack.c.l.b16 %v3942
    %v5205 = vunpack.c.h.b16 %v3942
    %v5206 = vunpack.c.l.b16 %v3943
    %v5207 = vunpack.c.h.b16 %v3943
    %v5208 = vunpack.c.l.b16 %v3944
    %v5209 = vunpack.c.h.b16 %v3944
    %v5210 = vunpack.c.l.b16 %v3945
    %v5211 = vunpack.c.h.b16 %v3945
    %v5212 = vunpack.c.l.b16 %v3946
    %v5213 = vunpack.c.h.b16 %v3946
    %v5214 = vunpack.c.l.b16 %v3947
    %v5215 = vunpack.c.h.b16 %v3947
    %v5216 = vunpack.c.l.b16 %v3948
    %v5217 = vunpack.c.h.b16 %v3948
    %v5218 = vunpack.c.l.b16 %v3949
    %v5219 = vunpack.c.h.b16 %v3949
    %v5220 = vunpack.c.l.b16 %v3950
    %v5221 = vunpack.c.h.b16 %v3950
    %v5222 = vunpack.c.l.b16 %v3951
    %v5223 = vunpack.c.h.b16 %v3951
    %v5224 = vunpack.c.l.b16 %v3952
    %v5225 = vunpack.c.h.b16 %v3952
    %v5226 = vunpack.c.l.b16 %v3953
    %v5227 = vunpack.c.h.b16 %v3953
    %v5228 = vunpack.c.l.b16 %v3954
    %v5229 = vunpack.c.h.b16 %v3954
    %v5230 = vunpack.c.l.b16 %v3955
    %v5231 = vunpack.c.h.b16 %v3955
    %v5232 = vunpack.c.l.b16 %v3956
    %v5233 = vunpack.c.h.b16 %v3956
    %v5234 = vunpack.c.l.b16 %v3957
    %v5235 = vunpack.c.h.b16 %v3957
    %v5236 = vunpack.c.l.b16 %v3958
    %v5237 = vunpack.c.h.b16 %v3958
    %v5238 = vunpack.c.l.b16 %v3959
    %v5239 = vunpack.c.h.b16 %v3959
    %v5240 = vunpack.c.l.b16 %v3960
    %v5241 = vunpack.c.h.b16 %v3960
    %v5242 = vunpack.c.l.b16 %v3961
    %v5243 = vunpack.c.h.b16 %v3961
    %v5244 = vunpack.c.l.b16 %v3962
    %v5245 = vunpack.c.h.b16 %v3962
    %v5246 = vunpack.c.l.b16 %v3963
    %v5247 = vunpack.c.h.b16 %v3963
    %v5248 = vunpack.c.l.b16 %v3964
    %v5249 = vunpack.c.h.b16 %v3964
    %v5250 = vunpack.c.l.b16 %v3965
    %v5251 = vunpack.c.h.b16 %v3965
    %v5252 = vunpack.c.l.b16 %v3966
    %v5253 = vunpack.c.h.b16 %v3966
    %v5254 = vunpack.c.l.b16 %v3967
    %v5255 = vunpack.c.h.b16 %v3967
    %v5256 = vunpack.c.l.b16 %v3968
    %v5257 = vunpack.c.h.b16 %v3968
    %v5258 = vunpack.c.l.b16 %v3969
    %v5259 = vunpack.c.h.b16 %v3969
    %v5260 = vunpack.c.l.b16 %v3970
    %v5261 = vunpack.c.h.b16 %v3970
    %v5262 = vunpack.c.l.b16 %v3971
    %v5263 = vunpack.c.h.b16 %v3971
    %v5264 = vunpack.c.l.b16 %v3972
    %v5265 = vunpack.c.h.b16 %v3972
    %v5266 = vunpack.c.l.b16 %v3973
    %v5267 = vunpack.c.h.b16 %v3973
    %v5268 = vunpack.c.l.b16 %v3974
    %v5269 = vunpack.c.h.b16 %v3974
    %v5270 = vunpack.c.l.b16 %v3975
    %v5271 = vunpack.c.h.b16 %v3975
    %v5272 = vunpack.c.l.b16 %v3976
    %v5273 = vunpack.c.h.b16 %v3976
    %v5274 = vunpack.c.l.b16 %v3977
    %v5275 = vunpack.c.h.b16 %v3977
    %v5276 = vunpack.c.l.b16 %v3978
    %v5277 = vunpack.c.h.b16 %v3978
    %v5278 = vunpack.c.l.b16 %v3979
    %v5279 = vunpack.c.h.b16 %v3979
    %v5280 = vunpack.c.l.b16 %v3980
    %v5281 = vunpack.c.h.b16 %v3980
    %v5282 = vunpack.c.l.b16 %v3981
    %v5283 = vunpack.c.h.b16 %v3981
    %v5284 = vunpack.c.l.b16 %v3982
    %v5285 = vunpack.c.h.b16 %v3982
    %v5286 = vunpack.c.l.b16 %v3983
    %v5287 = vunpack.c.h.b16 %v3983
    %v5288 = vunpack.c.l.b16 %v3984
    %v5289 = vunpack.c.h.b16 %v3984
    %v5290 = vunpack.c.l.b16 %v3985
    %v5291 = vunpack.c.h.b16 %v3985
    %v5292 = vunpack.c.l.b16 %v3986
    %v5293 = vunpack.c.h.b16 %v3986
    %v5294 = vunpack.c.l.b16 %v3987
    %v5295 = vunpack.c.h.b16 %v3987
    %v5296 = vunpack.c.l.b16 %v3988
    %v5297 = vunpack.c.h.b16 %v3988
    %v5298 = vunpack.c.l.b16 %v3989
    %v5299 = vunpack.c.h.b16 %v3989
    %v5300 = vunpack.c.l.b16 %v3990
    %v5301 = vunpack.c.h.b16 %v3990
    %v5302 = vunpack.c.l.b16 %v3991
    %v5303 = vunpack.c.h.b16 %v3991
    %v5304 = vunpack.c.l.b16 %v3992
    %v5305 = vunpack.c.h.b16 %v3992
    %v5306 = vunpack.c.l.b16 %v3993
    %v5307 = vunpack.c.h.b16 %v3993
    %v5308 = vunpack.c.l.b16 %v3994
    %v5309 = vunpack.c.h.b16 %v3994
    %v5310 = vunpack.c.l.b16 %v3995
    %v5311 = vunpack.c.h.b16 %v3995
    %v5312 = vunpack.c.l.b16 %v3996
    %v5313 = vunpack.c.h.b16 %v3996
    %v5314 = vunpack.c.l.b16 %v3997
    %v5315 = vunpack.c.h.b16 %v3997
    %v5316 = vunpack.c.l.b16 %v3998
    %v5317 = vunpack.c.h.b16 %v3998
    %v5318 = vunpack.c.l.b16 %v3999
    %v5319 = vunpack.c.h.b16 %v3999
    %v5320 = vunpack.c.l.b16 %v4000
    %v5321 = vunpack.c.h.b16 %v4000
    %v5322 = vunpack.c.l.b16 %v4001
    %v5323 = vunpack.c.h.b16 %v4001
    %v5324 = vunpack.c.l.b16 %v4002
    %v5325 = vunpack.c.h.b16 %v4002
    %v5326 = vunpack.c.l.b16 %v4003
    %v5327 = vunpack.c.h.b16 %v4003
    %v5328 = vunpack.c.l.b16 %v4004
    %v5329 = vunpack.c.h.b16 %v4004
    %v5330 = vunpack.c.l.b16 %v4005
    %v5331 = vunpack.c.h.b16 %v4005
    %v5332 = vunpack.c.l.b16 %v4006
    %v5333 = vunpack.c.h.b16 %v4006
    %v5334 = vunpack.c.l.b16 %v4007
    %v5335 = vunpack.c.h.b16 %v4007
    %v5336 = vunpack.c.l.b16 %v4008
    %v5337 = vunpack.c.h.b16 %v4008
    %v5338 = vunpack.c.l.b16 %v4009
    %v5339 = vunpack.c.h.b16 %v4009
    %v5340 = vunpack.c.l.b16 %v4010
    %v5341 = vunpack.c.h.b16 %v4010
    %v5342 = vunpack.c.l.b16 %v4011
    %v5343 = vunpack.c.h.b16 %v4011
    %v5344 = vunpack.c.l.b16 %v4012
    %v5345 = vunpack.c.h.b16 %v4012
    %v5346 = vunpack.c.l.b16 %v4013
    %v5347 = vunpack.c.h.b16 %v4013
    %v5348 = vunpack.c.l.b16 %v4014
    %v5349 = vunpack.c.h.b16 %v4014
    %v5350 = vunpack.c.l.b16 %v4015
    %v5351 = vunpack.c.h.b16 %v4015
    %v5352 = vunpack.c.l.b16 %v4016
    %v5353 = vunpack.c.h.b16 %v4016
    %v5354 = vunpack.c.l.b16 %v4017
    %v5355 = vunpack.c.h.b16 %v4017
    %v5356 = vunpack.c.l.b16 %v4018
    %v5357 = vunpack.c.h.b16 %v4018
    %v5358 = vunpack.c.l.b16 %v4019
    %v5359 = vunpack.c.h.b16 %v4019
    %v5360 = vunpack.c.l.b16 %v4020
    %v5361 = vunpack.c.h.b16 %v4020
    %v5362 = vunpack.c.l.b16 %v4021
    %v5363 = vunpack.c.h.b16 %v4021
    %v5364 = vunpack.c.l.b16 %v4022
    %v5365 = vunpack.c.h.b16 %v4022
    %v5366 = vunpack.c.l.b16 %v4023
    %v5367 = vunpack.c.h.b16 %v4023
    %v5368 = vunpack.c.l.b16 %v4024
    %v5369 = vunpack.c.h.b16 %v4024
    %v5370 = vunpack.c.l.b16 %v4025
    %v5371 = vunpack.c.h.b16 %v4025
    %v5372 = vunpack.c.l.b16 %v4026
    %v5373 = vunpack.c.h.b16 %v4026
    %v5374 = vunpack.c.l.b16 %v4027
    %v5375 = vunpack.c.h.b16 %v4027
    %v5376 = vunpack.c.l.b16 %v4028
    %v5377 = vunpack.c.h.b16 %v4028
    %v5378 = vunpack.c.l.b16 %v4029
    %v5379 = vunpack.c.h.b16 %v4029
    %v5380 = vunpack.c.l.b16 %v4030
    %v5381 = vunpack.c.h.b16 %v4030
    %v5382 = vunpack.c.l.b16 %v4031
    %v5383 = vunpack.c.h.b16 %v4031
    %v5384 = vunpack.c.l.b16 %v4032
    %v5385 = vunpack.c.h.b16 %v4032
    %v5386 = vunpack.c.l.b16 %v4033
    %v5387 = vunpack.c.h.b16 %v4033
    %v5388 = vunpack.c.l.b16 %v4034
    %v5389 = vunpack.c.h.b16 %v4034
    %v5390 = vunpack.c.l.b16 %v4035
    %v5391 = vunpack.c.h.b16 %v4035
    %v5392 = vunpack.c.l.b16 %v4036
    %v5393 = vunpack.c.h.b16 %v4036
    %v5394 = vunpack.c.l.b16 %v4037
    %v5395 = vunpack.c.h.b16 %v4037
    %v5396 = vunpack.c.l.b16 %v4038
    %v5397 = vunpack.c.h.b16 %v4038
    %v5398 = vunpack.c.l.b16 %v4039
    %v5399 = vunpack.c.h.b16 %v4039
    %v5400 = vunpack.c.l.b16 %v4040
    %v5401 = vunpack.c.h.b16 %v4040
    %v5402 = vunpack.c.l.b16 %v4041
    %v5403 = vunpack.c.h.b16 %v4041
    %v5404 = vunpack.c.l.b16 %v4042
    %v5405 = vunpack.c.h.b16 %v4042
    %v5406 = vunpack.c.l.b16 %v4043
    %v5407 = vunpack.c.h.b16 %v4043
    %v5408 = vunpack.c.l.b16 %v4044
    %v5409 = vunpack.c.h.b16 %v4044
    %v5410 = vunpack.c.l.b16 %v4045
    %v5411 = vunpack.c.h.b16 %v4045
    %v5412 = vunpack.c.l.b16 %v4046
    %v5413 = vunpack.c.h.b16 %v4046
    %v5414 = vunpack.c.l.b16 %v4047
    %v5415 = vunpack.c.h.b16 %v4047
    %v5416 = vunpack.c.l.b16 %v4048
    %v5417 = vunpack.c.h.b16 %v4048
    %v5418 = vunpack.c.l.b16 %v4049
    %v5419 = vunpack.c.h.b16 %v4049
    %v5420 = vunpack.c.l.b16 %v4050
    %v5421 = vunpack.c.h.b16 %v4050
    %v5422 = vunpack.c.l.b16 %v4051
    %v5423 = vunpack.c.h.b16 %v4051
    %v5424 = vunpack.c.l.b16 %v4052
    %v5425 = vunpack.c.h.b16 %v4052
    %v5426 = vunpack.c.l.b16 %v4053
    %v5427 = vunpack.c.h.b16 %v4053
    %v5428 = vunpack.c.l.b16 %v4054
    %v5429 = vunpack.c.h.b16 %v4054
    %v5430 = vunpack.c.l.b16 %v4055
    %v5431 = vunpack.c.h.b16 %v4055
    %v5432 = vunpack.c.l.b16 %v4056
    %v5433 = vunpack.c.h.b16 %v4056
    %v5434 = vunpack.c.l.b16 %v4057
    %v5435 = vunpack.c.h.b16 %v4057
    %v5436 = vunpack.c.l.b16 %v4058
    %v5437 = vunpack.c.h.b16 %v4058
    %v5438 = vunpack.c.l.b16 %v4059
    %v5439 = vunpack.c.h.b16 %v4059
    %v5440 = vunpack.c.l.b16 %v4060
    %v5441 = vunpack.c.h.b16 %v4060
    %v5442 = vunpack.c.l.b16 %v4061
    %v5443 = vunpack.c.h.b16 %v4061
    %v5444 = vunpack.c.l.b16 %v4062
    %v5445 = vunpack.c.h.b16 %v4062
    %v5446 = vunpack.c.l.b16 %v4063
    %v5447 = vunpack.c.h.b16 %v4063
    %v5448 = vunpack.c.l.b16 %v4064
    %v5449 = vunpack.c.h.b16 %v4064
    %v5450 = vunpack.c.l.b16 %v4065
    %v5451 = vunpack.c.h.b16 %v4065
    %v5452 = vunpack.c.l.b16 %v4066
    %v5453 = vunpack.c.h.b16 %v4066
    %v5454 = vunpack.c.l.b16 %v4067
    %v5455 = vunpack.c.h.b16 %v4067
    %v5456 = vunpack.c.l.b16 %v4068
    %v5457 = vunpack.c.h.b16 %v4068
    %v5458 = vunpack.c.l.b16 %v4069
    %v5459 = vunpack.c.h.b16 %v4069
    %v5460 = vunpack.c.l.b16 %v4070
    %v5461 = vunpack.c.h.b16 %v4070
    %v5462 = vunpack.c.l.b16 %v4071
    %v5463 = vunpack.c.h.b16 %v4071
    %v5464 = vunpack.c.l.b16 %v4072
    %v5465 = vunpack.c.h.b16 %v4072
    %v5466 = vunpack.c.l.b16 %v4073
    %v5467 = vunpack.c.h.b16 %v4073
    %v5468 = vunpack.c.l.b16 %v4074
    %v5469 = vunpack.c.h.b16 %v4074
    %v5470 = vunpack.c.l.b16 %v4075
    %v5471 = vunpack.c.h.b16 %v4075
    %v5472 = vunpack.c.l.b16 %v4076
    %v5473 = vunpack.c.h.b16 %v4076
    %v5474 = vunpack.c.l.b16 %v4077
    %v5475 = vunpack.c.h.b16 %v4077
    %v5476 = vunpack.c.l.b16 %v4078
    %v5477 = vunpack.c.h.b16 %v4078
    %v5478 = vunpack.c.l.b16 %v4079
    %v5479 = vunpack.c.h.b16 %v4079
    %v5480 = vunpack.c.l.b16 %v4080
    %v5481 = vunpack.c.h.b16 %v4080
    %v5482 = vunpack.c.l.b16 %v4081
    %v5483 = vunpack.c.h.b16 %v4081
    %v5484 = vunpack.c.l.b16 %v4082
    %v5485 = vunpack.c.h.b16 %v4082
    %v5486 = vunpack.c.l.b16 %v4083
    %v5487 = vunpack.c.h.b16 %v4083
    %v5488 = vunpack.c.l.b16 %v4084
    %v5489 = vunpack.c.h.b16 %v4084
    %v5490 = vunpack.c.l.b16 %v4085
    %v5491 = vunpack.c.h.b16 %v4085
    %v5492 = vunpack.c.l.b16 %v4086
    %v5493 = vunpack.c.h.b16 %v4086
    %v5494 = vunpack.c.l.b16 %v4087
    %v5495 = vunpack.c.h.b16 %v4087
    %v5496 = vunpack.c.l.b16 %v4088
    %v5497 = vunpack.c.h.b16 %v4088
    %v5498 = vunpack.c.l.b16 %v4089
    %v5499 = vunpack.c.h.b16 %v4089
    %v5500 = vunpack.c.l.b16 %v4090
    %v5501 = vunpack.c.h.b16 %v4090
    %v5502 = vunpack.c.l.b16 %v4091
    %v5503 = vunpack.c.h.b16 %v4091
    %v5504 = vunpack.c.l.b16 %v4092
    %v5505 = vunpack.c.h.b16 %v4092
    %v5506 = vunpack.c.l.b16 %v4093
    %v5507 = vunpack.c.h.b16 %v4093
    %v5508 = vunpack.c.l.b16 %v4094
    %v5509 = vunpack.c.h.b16 %v4094
    %v5510 = vunpack.c.l.b16 %v4095
    %v5511 = vunpack.c.h.b16 %v4095
    %v5512 = vunpack.c.l.b16 %v4096
    %v5513 = vunpack.c.h.b16 %v4096
    %v5514 = vunpack.c.l.b16 %v4097
    %v5515 = vunpack.c.h.b16 %v4097
    %v5516 = vunpack.c.l.b16 %v4098
    %v5517 = vunpack.c.h.b16 %v4098
    %v5518 = vunpack.c.l.b16 %v4099
    %v5519 = vunpack.c.h.b16 %v4099
    %v5520 = vunpack.c.l.b16 %v4100
    %v5521 = vunpack.c.h.b16 %v4100
    %v5522 = vunpack.c.l.b16 %v4101
    %v5523 = vunpack.c.h.b16 %v4101
    %v5524 = vunpack.c.l.b16 %v4102
    %v5525 = vunpack.c.h.b16 %v4102
    %v5526 = vunpack.c.l.b16 %v4103
    %v5527 = vunpack.c.h.b16 %v4103
    %v5528 = vunpack.c.l.b16 %v4104
    %v5529 = vunpack.c.h.b16 %v4104
    %v5530 = vunpack.c.l.b16 %v4105
    %v5531 = vunpack.c.h.b16 %v4105
    %v5532 = vunpack.c.l.b16 %v4106
    %v5533 = vunpack.c.h.b16 %v4106
    %v5534 = vunpack.c.l.b16 %v4107
    %v5535 = vunpack.c.h.b16 %v4107
    %v5536 = vunpack.c.l.b16 %v4108
    %v5537 = vunpack.c.h.b16 %v4108
    %v5538 = vunpack.c.l.b16 %v4109
    %v5539 = vunpack.c.h.b16 %v4109
    %v5540 = vunpack.c.l.b16 %v4110
    %v5541 = vunpack.c.h.b16 %v4110
    %v5542 = vunpack.c.l.b16 %v4111
    %v5543 = vunpack.c.h.b16 %v4111
    %v5544 = vunpack.c.l.b16 %v4112
    %v5545 = vunpack.c.h.b16 %v4112
    %v5546 = vunpack.c.l.b16 %v4113
    %v5547 = vunpack.c.h.b16 %v4113
    %v5548 = vunpack.c.l.b16 %v4114
    %v5549 = vunpack.c.h.b16 %v4114
    %v5550 = vunpack.c.l.b16 %v4115
    %v5551 = vunpack.c.h.b16 %v4115
    %v5552 = vunpack.c.l.b16 %v4116
    %v5553 = vunpack.c.h.b16 %v4116
    %v5554 = vunpack.c.l.b16 %v4117
    %v5555 = vunpack.c.h.b16 %v4117
    %v5556 = vunpack.c.l.b16 %v4118
    %v5557 = vunpack.c.h.b16 %v4118
    %v5558 = vunpack.c.l.b16 %v4119
    %v5559 = vunpack.c.h.b16 %v4119
    %v5560 = vunpack.c.l.b16 %v4120
    %v5561 = vunpack.c.h.b16 %v4120
    %v5562 = vunpack.c.l.b16 %v4121
    %v5563 = vunpack.c.h.b16 %v4121
    %v5564 = vunpack.c.l.b16 %v4122
    %v5565 = vunpack.c.h.b16 %v4122
    %v5566 = vunpack.c.l.b16 %v4123
    %v5567 = vunpack.c.h.b16 %v4123
    %v5568 = vunpack.c.l.b16 %v4124
    %v5569 = vunpack.c.h.b16 %v4124
    %v5570 = vunpack.c.l.b16 %v4125
    %v5571 = vunpack.c.h.b16 %v4125
    %v5572 = vunpack.c.l.b16 %v4126
    %v5573 = vunpack.c.h.b16 %v4126
    %v5574 = vunpack.c.l.b16 %v4127
    %v5575 = vunpack.c.h.b16 %v4127
    %v5576 = vunpack.c.l.b16 %v4128
    %v5577 = vunpack.c.h.b16 %v4128
    %v5578 = vunpack.c.l.b16 %v4129
    %v5579 = vunpack.c.h.b16 %v4129
    %v5580 = vunpack.c.l.b16 %v4130
    %v5581 = vunpack.c.h.b16 %v4130
    %v5582 = vunpack.c.l.b16 %v4131
    %v5583 = vunpack.c.h.b16 %v4131
    %v5584 = vunpack.c.l.b16 %v4132
    %v5585 = vunpack.c.h.b16 %v4132
    %v5586 = vunpack.c.l.b16 %v4133
    %v5587 = vunpack.c.h.b16 %v4133
    %v5588 = vunpack.c.l.b16 %v4134
    %v5589 = vunpack.c.h.b16 %v4134
    %v5590 = vunpack.c.l.b16 %v4135
    %v5591 = vunpack.c.h.b16 %v4135
    %v5592 = vunpack.c.l.b16 %v4136
    %v5593 = vunpack.c.h.b16 %v4136
    %v5594 = vunpack.c.l.b16 %v4137
    %v5595 = vunpack.c.h.b16 %v4137
    %v5596 = vunpack.c.l.b16 %v4138
    %v5597 = vunpack.c.h.b16 %v4138
    %v5598 = vunpack.c.l.b16 %v4139
    %v5599 = vunpack.c.h.b16 %v4139
    %v5600 = vunpack.c.l.b16 %v4140
    %v5601 = vunpack.c.h.b16 %v4140
    %v5602 = vunpack.c.l.b16 %v4141
    %v5603 = vunpack.c.h.b16 %v4141
    %v5604 = vunpack.c.l.b16 %v4142
    %v5605 = vunpack.c.h.b16 %v4142
    %v5606 = vunpack.c.l.b16 %v4143
    %v5607 = vunpack.c.h.b16 %v4143
    %v5608 = vunpack.c.l.b16 %v4144
    %v5609 = vunpack.c.h.b16 %v4144
    %v5610 = vunpack.c.l.b16 %v4145
    %v5611 = vunpack.c.h.b16 %v4145
    %v5612 = vunpack.c.l.b16 %v4146
    %v5613 = vunpack.c.h.b16 %v4146
    %v5614 = vunpack.c.l.b16 %v4147
    %v5615 = vunpack.c.h.b16 %v4147
    %v5616 = vunpack.c.l.b16 %v4148
    %v5617 = vunpack.c.h.b16 %v4148
    %v5618 = vunpack.c.l.b16 %v4149
    %v5619 = vunpack.c.h.b16 %v4149
    %v5620 = vunpack.c.l.b16 %v4150
    %v5621 = vunpack.c.h.b16 %v4150
    %v5622 = vunpack.c.l.b16 %v4151
    %v5623 = vunpack.c.h.b16 %v4151
    %v5624 = vunpack.c.l.b16 %v4152
    %v5625 = vunpack.c.h.b16 %v4152
    %v5626 = vunpack.c.l.b16 %v4153
    %v5627 = vunpack.c.h.b16 %v4153
    %v5628 = vunpack.c.l.b16 %v4154
    %v5629 = vunpack.c.h.b16 %v4154
    %v5630 = vunpack.c.l.b16 %v4155
    %v5631 = vunpack.c.h.b16 %v4155
    %v5632 = vunpack.c.l.b16 %v4156
    %v5633 = vunpack.c.h.b16 %v4156
    %v5634 = vunpack.c.l.b16 %v4157
    %v5635 = vunpack.c.h.b16 %v4157
    %v5636 = vunpack.c.l.b16 %v4158
    %v5637 = vunpack.c.h.b16 %v4158
    %v5638 = vunpack.c.l.b16 %v4159
    %v5639 = vunpack.c.h.b16 %v4159
    %v5640 = vunpack.c.l.b16 %v4160
    %v5641 = vunpack.c.h.b16 %v4160
    %v5642 = vunpack.c.l.b16 %v4161
    %v5643 = vunpack.c.h.b16 %v4161
    %v5644 = vunpack.c.l.b16 %v4162
    %v5645 = vunpack.c.h.b16 %v4162
    %v5646 = vunpack.c.l.b16 %v4163
    %v5647 = vunpack.c.h.b16 %v4163
    %v5648 = vunpack.c.l.b16 %v4164
    %v5649 = vunpack.c.h.b16 %v4164
    %v5650 = vunpack.c.l.b16 %v4165
    %v5651 = vunpack.c.h.b16 %v4165
    %v5652 = vunpack.c.l.b16 %v4166
    %v5653 = vunpack.c.h.b16 %v4166
    %v5654 = vunpack.c.l.b16 %v4167
    %v5655 = vunpack.c.h.b16 %v4167
    %v5656 = vunpack.c.l.b16 %v4168
    %v5657 = vunpack.c.h.b16 %v4168
    %v5658 = vunpack.c.l.b16 %v4169
    %v5659 = vunpack.c.h.b16 %v4169
    %v5660 = vunpack.c.l.b16 %v4170
    %v5661 = vunpack.c.h.b16 %v4170
    %v5662 = vunpack.c.l.b16 %v4171
    %v5663 = vunpack.c.h.b16 %v4171
    %v5664 = vunpack.c.l.b16 %v4172
    %v5665 = vunpack.c.h.b16 %v4172
    %v5666 = vunpack.c.l.b16 %v4173
    %v5667 = vunpack.c.h.b16 %v4173
    %v5668 = vunpack.c.l.b16 %v4174
    %v5669 = vunpack.c.h.b16 %v4174
    %v5670 = vunpack.c.l.b16 %v4175
    %v5671 = vunpack.c.h.b16 %v4175
    %v5672 = vunpack.c.l.b16 %v4176
    %v5673 = vunpack.c.h.b16 %v4176
    %v5674 = vunpack.c.l.b16 %v4177
    %v5675 = vunpack.c.h.b16 %v4177
    %v5676 = vunpack.c.l.b16 %v4178
    %v5677 = vunpack.c.h.b16 %v4178
    %v5678 = vunpack.c.l.b16 %v4179
    %v5679 = vunpack.c.h.b16 %v4179
    %v5680 = vunpack.c.l.b16 %v4180
    %v5681 = vunpack.c.h.b16 %v4180
    %v5682 = vunpack.c.l.b16 %v4181
    %v5683 = vunpack.c.h.b16 %v4181
    %v5684 = vunpack.c.l.b16 %v4182
    %v5685 = vunpack.c.h.b16 %v4182
    %v5686 = vunpack.c.l.b16 %v4183
    %v5687 = vunpack.c.h.b16 %v4183
    %v5688 = vunpack.c.l.b16 %v4184
    %v5689 = vunpack.c.h.b16 %v4184
    %v5690 = vunpack.c.l.b16 %v4185
    %v5691 = vunpack.c.h.b16 %v4185
    %v5692 = vunpack.c.l.b16 %v4186
    %v5693 = vunpack.c.h.b16 %v4186
    %v5694 = vunpack.c.l.b16 %v4187
    %v5695 = vunpack.c.h.b16 %v4187
    %v5696 = vunpack.c.l.b16 %v4188
    %v5697 = vunpack.c.h.b16 %v4188
    %v5698 = vunpack.c.l.b16 %v4189
    %v5699 = vunpack.c.h.b16 %v4189
    %v5700 = vunpack.c.l.b16 %v4190
    %v5701 = vunpack.c.h.b16 %v4190
    %v5702 = vunpack.c.l.b16 %v4191
    %v5703 = vunpack.c.h.b16 %v4191
    %v5704 = vunpack.c.l.b16 %v4192
    %v5705 = vunpack.c.h.b16 %v4192
    %v5706 = vunpack.c.l.b16 %v4193
    %v5707 = vunpack.c.h.b16 %v4193
    %v5708 = vunpack.c.l.b16 %v4194
    %v5709 = vunpack.c.h.b16 %v4194
    %v5710 = vunpack.c.l.b16 %v4195
    %v5711 = vunpack.c.h.b16 %v4195
    %v5712 = vunpack.c.l.b16 %v4196
    %v5713 = vunpack.c.h.b16 %v4196
    %v5714 = vunpack.c.l.b16 %v4197
    %v5715 = vunpack.c.h.b16 %v4197
    %v5716 = vunpack.c.l.b16 %v4198
    %v5717 = vunpack.c.h.b16 %v4198
    %v5718 = vunpack.c.l.b16 %v4199
    %v5719 = vunpack.c.h.b16 %v4199
    %v5720 = vunpack.c.l.b16 %v4200
    %v5721 = vunpack.c.h.b16 %v4200
    %v5722 = vunpack.c.l.b16 %v4201
    %v5723 = vunpack.c.h.b16 %v4201
    %v5724 = vunpack.c.l.b16 %v4202
    %v5725 = vunpack.c.h.b16 %v4202
    %v5726 = vunpack.c.l.b16 %v4203
    %v5727 = vunpack.c.h.b16 %v4203
    %v5728 = vunpack.c.l.b16 %v4204
    %v5729 = vunpack.c.h.b16 %v4204
    %v5730 = vunpack.c.l.b16 %v4205
    %v5731 = vunpack.c.h.b16 %v4205
    %v5732 = vunpack.c.l.b16 %v4206
    %v5733 = vunpack.c.h.b16 %v4206
    %v5734 = vunpack.c.l.b16 %v4207
    %v5735 = vunpack.c.h.b16 %v4207
    %v5736 = vunpack.c.l.b16 %v4208
    %v5737 = vunpack.c.h.b16 %v4208
    %v5738 = vunpack.c.l.b16 %v4209
    %v5739 = vunpack.c.h.b16 %v4209
    %v5740 = vunpack.c.l.b16 %v4210
    %v5741 = vunpack.c.h.b16 %v4210
    %v5742 = vunpack.c.l.b16 %v4211
    %v5743 = vunpack.c.h.b16 %v4211
    %v5744 = vunpack.c.l.b16 %v4212
    %v5745 = vunpack.c.h.b16 %v4212
    %v5746 = vunpack.c.l.b16 %v4213
    %v5747 = vunpack.c.h.b16 %v4213
    %v5748 = vunpack.c.l.b16 %v4214
    %v5749 = vunpack.c.h.b16 %v4214
    %v5750 = vunpack.c.l.b16 %v4215
    %v5751 = vunpack.c.h.b16 %v4215
    %v5752 = vunpack.c.l.b16 %v4216
    %v5753 = vunpack.c.h.b16 %v4216
    %v5754 = vunpack.c.l.b16 %v4217
    %v5755 = vunpack.c.h.b16 %v4217
    %v5756 = vunpack.c.l.b16 %v4218
    %v5757 = vunpack.c.h.b16 %v4218
    %v5758 = vunpack.c.l.b16 %v4219
    %v5759 = vunpack.c.h.b16 %v4219
    %v5760 = vunpack.c.l.b16 %v4220
    %v5761 = vunpack.c.h.b16 %v4220
    %v5762 = vunpack.c.l.b16 %v4221
    %v5763 = vunpack.c.h.b16 %v4221
    %v5764 = vunpack.c.l.b16 %v4222
    %v5765 = vunpack.c.h.b16 %v4222
    %v5766 = vunpack.c.l.b16 %v4223
    %v5767 = vunpack.c.h.b16 %v4223
    %v5768 = vunpack.c.l.b16 %v4224
    %v5769 = vunpack.c.h.b16 %v4224
    %v5770 = vunpack.c.l.b16 %v4225
    %v5771 = vunpack.c.h.b16 %v4225
    %v5772 = vunpack.c.l.b16 %v4226
    %v5773 = vunpack.c.h.b16 %v4226
    %v5774 = vunpack.c.l.b16 %v4227
    %v5775 = vunpack.c.h.b16 %v4227
    %v5776 = vunpack.c.l.b16 %v4228
    %v5777 = vunpack.c.h.b16 %v4228
    %v5778 = vunpack.c.l.b16 %v4229
    %v5779 = vunpack.c.h.b16 %v4229
    %v5780 = vunpack.c.l.b16 %v4230
    %v5781 = vunpack.c.h.b16 %v4230
    %v5782 = vunpack.c.l.b16 %v4231
    %v5783 = vunpack.c.h.b16 %v4231
    %v5784 = vunpack.c.l.b16 %v4232
    %v5785 = vunpack.c.h.b16 %v4232
    %v5786 = vunpack.c.l.b16 %v4233
    %v5787 = vunpack.c.h.b16 %v4233
    %v5788 = vunpack.c.l.b16 %v4234
    %v5789 = vunpack.c.h.b16 %v4234
    %v5790 = vunpack.c.l.b16 %v4235
    %v5791 = vunpack.c.h.b16 %v4235
    %v5792 = vunpack.c.l.b16 %v4236
    %v5793 = vunpack.c.h.b16 %v4236
    %v5794 = vunpack.c.l.b16 %v4237
    %v5795 = vunpack.c.h.b16 %v4237
    %v5796 = vunpack.c.l.b16 %v4238
    %v5797 = vunpack.c.h.b16 %v4238
    %v5798 = vunpack.c.l.b16 %v4239
    %v5799 = vunpack.c.h.b16 %v4239
    %v5800 = vunpack.c.l.b16 %v4240
    %v5801 = vunpack.c.h.b16 %v4240
    %v5802 = vunpack.c.l.b16 %v4241
    %v5803 = vunpack.c.h.b16 %v4241
    %v5804 = vunpack.c.l.b16 %v4242
    %v5805 = vunpack.c.h.b16 %v4242
    %v5806 = vunpack.c.l.b16 %v4243
    %v5807 = vunpack.c.h.b16 %v4243
    %v5808 = vunpack.c.l.b16 %v4244
    %v5809 = vunpack.c.h.b16 %v4244
    %v5810 = vunpack.c.l.b16 %v4245
    %v5811 = vunpack.c.h.b16 %v4245
    %v5812 = vunpack.c.l.b16 %v4246
    %v5813 = vunpack.c.h.b16 %v4246
    %v5814 = vunpack.c.l.b16 %v4247
    %v5815 = vunpack.c.h.b16 %v4247
    %v5816 = vunpack.c.l.b16 %v4248
    %v5817 = vunpack.c.h.b16 %v4248
    %v5818 = vunpack.c.l.b16 %v4249
    %v5819 = vunpack.c.h.b16 %v4249
    %v5820 = vunpack.c.l.b16 %v4250
    %v5821 = vunpack.c.h.b16 %v4250
    %v5822 = vunpack.c.l.b16 %v4251
    %v5823 = vunpack.c.h.b16 %v4251
    %v5824 = vunpack.c.l.b16 %v4252
    %v5825 = vunpack.c.h.b16 %v4252
    %v5826 = vunpack.c.l.b16 %v4253
    %v5827 = vunpack.c.h.b16 %v4253
    %v5828 = vunpack.c.l.b16 %v4254
    %v5829 = vunpack.c.h.b16 %v4254
    %v5830 = vunpack.c.l.b16 %v4255
    %v5831 = vunpack.c.h.b16 %v4255
    %v5832 = vunpack.c.l.b16 %v4256
    %v5833 = vunpack.c.h.b16 %v4256
    %v5834 = vpack.c.b16 %v4818, %v4810
    %v5835 = vpack.c.b16 %v4819, %v4811
    %v5836 = vpack.c.b16 %v4820, %v4812
    %v5837 = vpack.c.b16 %v4821, %v4813
    %v5838 = vpack.c.b16 %v4822, %v4814
    %v5839 = vpack.c.b16 %v4823, %v4815
    %v5840 = vpack.c.b16 %v4824, %v4816
    %v5841 = vpack.c.b16 %v4825, %v4817
    %v5842 = vpack.c.b16 %v4834, %v4826
    %v5843 = vpack.c.b16 %v4835, %v4827
    %v5844 = vpack.c.b16 %v4836, %v4828
    %v5845 = vpack.c.b16 %v4837, %v4829
    %v5846 = vpack.c.b16 %v4838, %v4830
    %v5847 = vpack.c.b16 %v4839, %v4831
    %v5848 = vpack.c.b16 %v4840, %v4832
    %v5849 = vpack.c.b16 %v4841, %v4833
    %v5850 = vpack.c.b16 %v4850, %v4842
    %v5851 = vpack.c.b16 %v4851, %v4843
    %v5852 = vpack.c.b16 %v4852, %v4844
    %v5853 = vpack.c.b16 %v4853, %v4845
    %v5854 = vpack.c.b16 %v4854, %v4846
    %v5855 = vpack.c.b16 %v4855, %v4847
    %v5856 = vpack.c.b16 %v4856, %v4848
    %v5857 = vpack.c.b16 %v4857, %v4849
    %v5858 = vpack.c.b16 %v4866, %v4858
    %v5859 = vpack.c.b16 %v4867, %v4859
    %v5860 = vpack.c.b16 %v4868, %v4860
    %v5861 = vpack.c.b16 %v4869, %v4861
    %v5862 = vpack.c.b16 %v4870, %v4862
    %v5863 = vpack.c.b16 %v4871, %v4863
    %v5864 = vpack.c.b16 %v4872, %v4864
    %v5865 = vpack.c.b16 %v4873, %v4865
    %v5866 = vpack.c.b16 %v4882, %v4874
    %v5867 = vpack.c.b16 %v4883, %v4875
    %v5868 = vpack.c.b16 %v4884, %v4876
    %v5869 = vpack.c.b16 %v4885, %v4877
    %v5870 = vpack.c.b16 %v4886, %v4878
    %v5871 = vpack.c.b16 %v4887, %v4879
    %v5872 = vpack.c.b16 %v4888, %v4880
    %v5873 = vpack.c.b16 %v4889, %v4881
    %v5874 = vpack.c.b16 %v4898, %v4890
    %v5875 = vpack.c.b16 %v4899, %v4891
    %v5876 = vpack.c.b16 %v4900, %v4892
    %v5877 = vpack.c.b16 %v4901, %v4893
    %v5878 = vpack.c.b16 %v4902, %v4894
    %v5879 = vpack.c.b16 %v4903, %v4895
    %v5880 = vpack.c.b16 %v4904, %v4896
    %v5881 = vpack.c.b16 %v4905, %v4897
    %v5882 = vpack.c.b16 %v4914, %v4906
    %v5883 = vpack.c.b16 %v4915, %v4907
    %v5884 = vpack.c.b16 %v4916, %v4908
    %v5885 = vpack.c.b16 %v4917, %v4909
    %v5886 = vpack.c.b16 %v4918, %v4910
    %v5887 = vpack.c.b16 %v4919, %v4911
    %v5888 = vpack.c.b16 %v4920, %v4912
    %v5889 = vpack.c.b16 %v4921, %v4913
    %v5890 = vpack.c.b16 %v4930, %v4922
    %v5891 = vpack.c.b16 %v4931, %v4923
    %v5892 = vpack.c.b16 %v4932, %v4924
    %v5893 = vpack.c.b16 %v4933, %v4925
    %v5894 = vpack.c.b16 %v4934, %v4926
    %v5895 = vpack.c.b16 %v4935, %v4927
    %v5896 = vpack.c.b16 %v4936, %v4928
    %v5897 = vpack.c.b16 %v4937, %v4929
    %v5898 = vpack.c.b16 %v4946, %v4938
    %v5899 = vpack.c.b16 %v4947, %v4939
    %v5900 = vpack.c.b16 %v4948, %v4940
    %v5901 = vpack.c.b16 %v4949, %v4941
    %v5902 = vpack.c.b16 %v4950, %v4942
    %v5903 = vpack.c.b16 %v4951, %v4943
    %v5904 = vpack.c.b16 %v4952, %v4944
    %v5905 = vpack.c.b16 %v4953, %v4945
    %v5906 = vpack.c.b16 %v4962, %v4954
    %v5907 = vpack.c.b16 %v4963, %v4955
    %v5908 = vpack.c.b16 %v4964, %v4956
    %v5909 = vpack.c.b16 %v4965, %v4957
    %v5910 = vpack.c.b16 %v4966, %v4958
    %v5911 = vpack.c.b16 %v4967, %v4959
    %v5912 = vpack.c.b16 %v4968, %v4960
    %v5913 = vpack.c.b16 %v4969, %v4961
    %v5914 = vpack.c.b16 %v4978, %v4970
    %v5915 = vpack.c.b16 %v4979, %v4971
    %v5916 = vpack.c.b16 %v4980, %v4972
    %v5917 = vpack.c.b16 %v4981, %v4973
    %v5918 = vpack.c.b16 %v4982, %v4974
    %v5919 = vpack.c.b16 %v4983, %v4975
    %v5920 = vpack.c.b16 %v4984, %v4976
    %v5921 = vpack.c.b16 %v4985, %v4977
    %v5922 = vpack.c.b16 %v4994, %v4986
    %v5923 = vpack.c.b16 %v4995, %v4987
    %v5924 = vpack.c.b16 %v4996, %v4988
    %v5925 = vpack.c.b16 %v4997, %v4989
    %v5926 = vpack.c.b16 %v4998, %v4990
    %v5927 = vpack.c.b16 %v4999, %v4991
    %v5928 = vpack.c.b16 %v5000, %v4992
    %v5929 = vpack.c.b16 %v5001, %v4993
    %v5930 = vpack.c.b16 %v5010, %v5002
    %v5931 = vpack.c.b16 %v5011, %v5003
    %v5932 = vpack.c.b16 %v5012, %v5004
    %v5933 = vpack.c.b16 %v5013, %v5005
    %v5934 = vpack.c.b16 %v5014, %v5006
    %v5935 = vpack.c.b16 %v5015, %v5007
    %v5936 = vpack.c.b16 %v5016, %v5008
    %v5937 = vpack.c.b16 %v5017, %v5009
    %v5938 = vpack.c.b16 %v5026, %v5018
    %v5939 = vpack.c.b16 %v5027, %v5019
    %v5940 = vpack.c.b16 %v5028, %v5020
    %v5941 = vpack.c.b16 %v5029, %v5021
    %v5942 = vpack.c.b16 %v5030, %v5022
    %v5943 = vpack.c.b16 %v5031, %v5023
    %v5944 = vpack.c.b16 %v5032, %v5024
    %v5945 = vpack.c.b16 %v5033, %v5025
    %v5946 = vpack.c.b16 %v5042, %v5034
    %v5947 = vpack.c.b16 %v5043, %v5035
    %v5948 = vpack.c.b16 %v5044, %v5036
    %v5949 = vpack.c.b16 %v5045, %v5037
    %v5950 = vpack.c.b16 %v5046, %v5038
    %v5951 = vpack.c.b16 %v5047, %v5039
    %v5952 = vpack.c.b16 %v5048, %v5040
    %v5953 = vpack.c.b16 %v5049, %v5041
    %v5954 = vpack.c.b16 %v5058, %v5050
    %v5955 = vpack.c.b16 %v5059, %v5051
    %v5956 = vpack.c.b16 %v5060, %v5052
    %v5957 = vpack.c.b16 %v5061, %v5053
    %v5958 = vpack.c.b16 %v5062, %v5054
    %v5959 = vpack.c.b16 %v5063, %v5055
    %v5960 = vpack.c.b16 %v5064, %v5056
    %v5961 = vpack.c.b16 %v5065, %v5057
    %v5962 = vpack.c.b16 %v5074, %v5066
    %v5963 = vpack.c.b16 %v5075, %v5067
    %v5964 = vpack.c.b16 %v5076, %v5068
    %v5965 = vpack.c.b16 %v5077, %v5069
    %v5966 = vpack.c.b16 %v5078, %v5070
    %v5967 = vpack.c.b16 %v5079, %v5071
    %v5968 = vpack.c.b16 %v5080, %v5072
    %v5969 = vpack.c.b16 %v5081, %v5073
    %v5970 = vpack.c.b16 %v5090, %v5082
    %v5971 = vpack.c.b16 %v5091, %v5083
    %v5972 = vpack.c.b16 %v5092, %v5084
    %v5973 = vpack.c.b16 %v5093, %v5085
    %v5974 = vpack.c.b16 %v5094, %v5086
    %v5975 = vpack.c.b16 %v5095, %v5087
    %v5976 = vpack.c.b16 %v5096, %v5088
    %v5977 = vpack.c.b16 %v5097, %v5089
    %v5978 = vpack.c.b16 %v5106, %v5098
    %v5979 = vpack.c.b16 %v5107, %v5099
    %v5980 = vpack.c.b16 %v5108, %v5100
    %v5981 = vpack.c.b16 %v5109, %v5101
    %v5982 = vpack.c.b16 %v5110, %v5102
    %v5983 = vpack.c.b16 %v5111, %v5103
    %v5984 = vpack.c.b16 %v5112, %v5104
    %v5985 = vpack.c.b16 %v5113, %v5105
    %v5986 = vpack.c.b16 %v5122, %v5114
    %v5987 = vpack.c.b16 %v5123, %v5115
    %v5988 = vpack.c.b16 %v5124, %v5116
    %v5989 = vpack.c.b16 %v5125, %v5117
    %v5990 = vpack.c.b16 %v5126, %v5118
    %v5991 = vpack.c.b16 %v5127, %v5119
    %v5992 = vpack.c.b16 %v5128, %v5120
    %v5993 = vpack.c.b16 %v5129, %v5121
    %v5994 = vpack.c.b16 %v5138, %v5130
    %v5995 = vpack.c.b16 %v5139, %v5131
    %v5996 = vpack.c.b16 %v5140, %v5132
    %v5997 = vpack.c.b16 %v5141, %v5133
    %v5998 = vpack.c.b16 %v5142, %v5134
    %v5999 = vpack.c.b16 %v5143, %v5135
    %v6000 = vpack.c.b16 %v5144, %v5136
    %v6001 = vpack.c.b16 %v5145, %v5137
    %v6002 = vpack.c.b16 %v5154, %v5146
    %v6003 = vpack.c.b16 %v5155, %v5147
    %v6004 = vpack.c.b16 %v5156, %v5148
    %v6005 = vpack.c.b16 %v5157, %v5149
    %v6006 = vpack.c.b16 %v5158, %v5150
    %v6007 = vpack.c.b16 %v5159, %v5151
    %v6008 = vpack.c.b16 %v5160, %v5152
    %v6009 = vpack.c.b16 %v5161, %v5153
    %v6010 = vpack.c.b16 %v5170, %v5162
    %v6011 = vpack.c.b16 %v5171, %v5163
    %v6012 = vpack.c.b16 %v5172, %v5164
    %v6013 = vpack.c.b16 %v5173, %v5165
    %v6014 = vpack.c.b16 %v5174, %v5166
    %v6015 = vpack.c.b16 %v5175, %v5167
    %v6016 = vpack.c.b16 %v5176, %v5168
    %v6017 = vpack.c.b16 %v5177, %v5169
    %v6018 = vpack.c.b16 %v5186, %v5178
    %v6019 = vpack.c.b16 %v5187, %v5179
    %v6020 = vpack.c.b16 %v5188, %v5180
    %v6021 = vpack.c.b16 %v5189, %v5181
    %v6022 = vpack.c.b16 %v5190, %v5182
    %v6023 = vpack.c.b16 %v5191, %v5183
    %v6024 = vpack.c.b16 %v5192, %v5184
    %v6025 = vpack.c.b16 %v5193, %v5185
    %v6026 = vpack.c.b16 %v5202, %v5194
    %v6027 = vpack.c.b16 %v5203, %v5195
    %v6028 = vpack.c.b16 %v5204, %v5196
    %v6029 = vpack.c.b16 %v5205, %v5197
    %v6030 = vpack.c.b16 %v5206, %v5198
    %v6031 = vpack.c.b16 %v5207, %v5199
    %v6032 = vpack.c.b16 %v5208, %v5200
    %v6033 = vpack.c.b16 %v5209, %v5201
    %v6034 = vpack.c.b16 %v5218, %v5210
    %v6035 = vpack.c.b16 %v5219, %v5211
    %v6036 = vpack.c.b16 %v5220, %v5212
    %v6037 = vpack.c.b16 %v5221, %v5213
    %v6038 = vpack.c.b16 %v5222, %v5214
    %v6039 = vpack.c.b16 %v5223, %v5215
    %v6040 = vpack.c.b16 %v5224, %v5216
    %v6041 = vpack.c.b16 %v5225, %v5217
    %v6042 = vpack.c.b16 %v5234, %v5226
    %v6043 = vpack.c.b16 %v5235, %v5227
    %v6044 = vpack.c.b16 %v5236, %v5228
    %v6045 = vpack.c.b16 %v5237, %v5229
    %v6046 = vpack.c.b16 %v5238, %v5230
    %v6047 = vpack.c.b16 %v5239, %v5231
    %v6048 = vpack.c.b16 %v5240, %v5232
    %v6049 = vpack.c.b16 %v5241, %v5233
    %v6050 = vpack.c.b16 %v5250, %v5242
    %v6051 = vpack.c.b16 %v5251, %v5243
    %v6052 = vpack.c.b16 %v5252, %v5244
    %v6053 = vpack.c.b16 %v5253, %v5245
    %v6054 = vpack.c.b16 %v5254, %v5246
    %v6055 = vpack.c.b16 %v5255, %v5247
    %v6056 = vpack.c.b16 %v5256, %v5248
    %v6057 = vpack.c.b16 %v5257, %v5249
    %v6058 = vpack.c.b16 %v5266, %v5258
    %v6059 = vpack.c.b16 %v5267, %v5259
    %v6060 = vpack.c.b16 %v5268, %v5260
    %v6061 = vpack.c.b16 %v5269, %v5261
    %v6062 = vpack.c.b16 %v5270, %v5262
    %v6063 = vpack.c.b16 %v5271, %v5263
    %v6064 = vpack.c.b16 %v5272, %v5264
    %v6065 = vpack.c.b16 %v5273, %v5265
    %v6066 = vpack.c.b16 %v5282, %v5274
    %v6067 = vpack.c.b16 %v5283, %v5275
    %v6068 = vpack.c.b16 %v5284, %v5276
    %v6069 = vpack.c.b16 %v5285, %v5277
    %v6070 = vpack.c.b16 %v5286, %v5278
    %v6071 = vpack.c.b16 %v5287, %v5279
    %v6072 = vpack.c.b16 %v5288, %v5280
    %v6073 = vpack.c.b16 %v5289, %v5281
    %v6074 = vpack.c.b16 %v5298, %v5290
    %v6075 = vpack.c.b16 %v5299, %v5291
    %v6076 = vpack.c.b16 %v5300, %v5292
    %v6077 = vpack.c.b16 %v5301, %v5293
    %v6078 = vpack.c.b16 %v5302, %v5294
    %v6079 = vpack.c.b16 %v5303, %v5295
    %v6080 = vpack.c.b16 %v5304, %v5296
    %v6081 = vpack.c.b16 %v5305, %v5297
    %v6082 = vpack.c.b16 %v5314, %v5306
    %v6083 = vpack.c.b16 %v5315, %v5307
    %v6084 = vpack.c.b16 %v5316, %v5308
    %v6085 = vpack.c.b16 %v5317, %v5309
    %v6086 = vpack.c.b16 %v5318, %v5310
    %v6087 = vpack.c.b16 %v5319, %v5311
    %v6088 = vpack.c.b16 %v5320, %v5312
    %v6089 = vpack.c.b16 %v5321, %v5313
    %v6090 = vpack.c.b16 %v5330, %v5322
    %v6091 = vpack.c.b16 %v5331, %v5323
    %v6092 = vpack.c.b16 %v5332, %v5324
    %v6093 = vpack.c.b16 %v5333, %v5325
    %v6094 = vpack.c.b16 %v5334, %v5326
    %v6095 = vpack.c.b16 %v5335, %v5327
    %v6096 = vpack.c.b16 %v5336, %v5328
    %v6097 = vpack.c.b16 %v5337, %v5329
    %v6098 = vpack.c.b16 %v5346, %v5338
    %v6099 = vpack.c.b16 %v5347, %v5339
    %v6100 = vpack.c.b16 %v5348, %v5340
    %v6101 = vpack.c.b16 %v5349, %v5341
    %v6102 = vpack.c.b16 %v5350, %v5342
    %v6103 = vpack.c.b16 %v5351, %v5343
    %v6104 = vpack.c.b16 %v5352, %v5344
    %v6105 = vpack.c.b16 %v5353, %v5345
    %v6106 = vpack.c.b16 %v5362, %v5354
    %v6107 = vpack.c.b16 %v5363, %v5355
    %v6108 = vpack.c.b16 %v5364, %v5356
    %v6109 = vpack.c.b16 %v5365, %v5357
    %v6110 = vpack.c.b16 %v5366, %v5358
    %v6111 = vpack.c.b16 %v5367, %v5359
    %v6112 = vpack.c.b16 %v5368, %v5360
    %v6113 = vpack.c.b16 %v5369, %v5361
    %v6114 = vpack.c.b16 %v5378, %v5370
    %v6115 = vpack.c.b16 %v5379, %v5371
    %v6116 = vpack.c.b16 %v5380, %v5372
    %v6117 = vpack.c.b16 %v5381, %v5373
    %v6118 = vpack.c.b16 %v5382, %v5374
    %v6119 = vpack.c.b16 %v5383, %v5375
    %v6120 = vpack.c.b16 %v5384, %v5376
    %v6121 = vpack.c.b16 %v5385, %v5377
    %v6122 = vpack.c.b16 %v5394, %v5386
    %v6123 = vpack.c.b16 %v5395, %v5387
    %v6124 = vpack.c.b16 %v5396, %v5388
    %v6125 = vpack.c.b16 %v5397, %v5389
    %v6126 = vpack.c.b16 %v5398, %v5390
    %v6127 = vpack.c.b16 %v5399, %v5391
    %v6128 = vpack.c.b16 %v5400, %v5392
    %v6129 = vpack.c.b16 %v5401, %v5393
    %v6130 = vpack.c.b16 %v5410, %v5402
    %v6131 = vpack.c.b16 %v5411, %v5403
    %v6132 = vpack.c.b16 %v5412, %v5404
    %v6133 = vpack.c.b16 %v5413, %v5405
    %v6134 = vpack.c.b16 %v5414, %v5406
    %v6135 = vpack.c.b16 %v5415, %v5407
    %v6136 = vpack.c.b16 %v5416, %v5408
    %v6137 = vpack.c.b16 %v5417, %v5409
    %v6138 = vpack.c.b16 %v5426, %v5418
    %v6139 = vpack.c.b16 %v5427, %v5419
    %v6140 = vpack.c.b16 %v5428, %v5420
    %v6141 = vpack.c.b16 %v5429, %v5421
    %v6142 = vpack.c.b16 %v5430, %v5422
    %v6143 = vpack.c.b16 %v5431, %v5423
    %v6144 = vpack.c.b16 %v5432, %v5424
    %v6145 = vpack.c.b16 %v5433, %v5425
    %v6146 = vpack.c.b16 %v5442, %v5434
    %v6147 = vpack.c.b16 %v5443, %v5435
    %v6148 = vpack.c.b16 %v5444, %v5436
    %v6149 = vpack.c.b16 %v5445, %v5437
    %v6150 = vpack.c.b16 %v5446, %v5438
    %v6151 = vpack.c.b16 %v5447, %v5439
    %v6152 = vpack.c.b16 %v5448, %v5440
    %v6153 = vpack.c.b16 %v5449, %v5441
    %v6154 = vpack.c.b16 %v5458, %v5450
    %v6155 = vpack.c.b16 %v5459, %v5451
    %v6156 = vpack.c.b16 %v5460, %v5452
    %v6157 = vpack.c.b16 %v5461, %v5453
    %v6158 = vpack.c.b16 %v5462, %v5454
    %v6159 = vpack.c.b16 %v5463, %v5455
    %v6160 = vpack.c.b16 %v5464, %v5456
    %v6161 = vpack.c.b16 %v5465, %v5457
    %v6162 = vpack.c.b16 %v5474, %v5466
    %v6163 = vpack.c.b16 %v5475, %v5467
    %v6164 = vpack.c.b16 %v5476, %v5468
    %v6165 = vpack.c.b16 %v5477, %v5469
    %v6166 = vpack.c.b16 %v5478, %v5470
    %v6167 = vpack.c.b16 %v5479, %v5471
    %v6168 = vpack.c.b16 %v5480, %v5472
    %v6169 = vpack.c.b16 %v5481, %v5473
    %v6170 = vpack.c.b16 %v5490, %v5482
    %v6171 = vpack.c.b16 %v5491, %v5483
    %v6172 = vpack.c.b16 %v5492, %v5484
    %v6173 = vpack.c.b16 %v5493, %v5485
    %v6174 = vpack.c.b16 %v5494, %v5486
    %v6175 = vpack.c.b16 %v5495, %v5487
    %v6176 = vpack.c.b16 %v5496, %v5488
    %v6177 = vpack.c.b16 %v5497, %v5489
    %v6178 = vpack.c.b16 %v5506, %v5498
    %v6179 = vpack.c.b16 %v5507, %v5499
    %v6180 = vpack.c.b16 %v5508, %v5500
    %v6181 = vpack.c.b16 %v5509, %v5501
    %v6182 = vpack.c.b16 %v5510, %v5502
    %v6183 = vpack.c.b16 %v5511, %v5503
    %v6184 = vpack.c.b16 %v5512, %v5504
    %v6185 = vpack.c.b16 %v5513, %v5505
    %v6186 = vpack.c.b16 %v5522, %v5514
    %v6187 = vpack.c.b16 %v5523, %v5515
    %v6188 = vpack.c.b16 %v5524, %v5516
    %v6189 = vpack.c.b16 %v5525, %v5517
    %v6190 = vpack.c.b16 %v5526, %v5518
    %v6191 = vpack.c.b16 %v5527, %v5519
    %v6192 = vpack.c.b16 %v5528, %v5520
    %v6193 = vpack.c.b16 %v5529, %v5521
    %v6194 = vpack.c.b16 %v5538, %v5530
    %v6195 = vpack.c.b16 %v5539, %v5531
    %v6196 = vpack.c.b16 %v5540, %v5532
    %v6197 = vpack.c.b16 %v5541, %v5533
    %v6198 = vpack.c.b16 %v5542, %v5534
    %v6199 = vpack.c.b16 %v5543, %v5535
    %v6200 = vpack.c.b16 %v5544, %v5536
    %v6201 = vpack.c.b16 %v5545, %v5537
    %v6202 = vpack.c.b16 %v5554, %v5546
    %v6203 = vpack.c.b16 %v5555, %v5547
    %v6204 = vpack.c.b16 %v5556, %v5548
    %v6205 = vpack.c.b16 %v5557, %v5549
    %v6206 = vpack.c.b16 %v5558, %v5550
    %v6207 = vpack.c.b16 %v5559, %v5551
    %v6208 = vpack.c.b16 %v5560, %v5552
    %v6209 = vpack.c.b16 %v5561, %v5553
    %v6210 = vpack.c.b16 %v5570, %v5562
    %v6211 = vpack.c.b16 %v5571, %v5563
    %v6212 = vpack.c.b16 %v5572, %v5564
    %v6213 = vpack.c.b16 %v5573, %v5565
    %v6214 = vpack.c.b16 %v5574, %v5566
    %v6215 = vpack.c.b16 %v5575, %v5567
    %v6216 = vpack.c.b16 %v5576, %v5568
    %v6217 = vpack.c.b16 %v5577, %v5569
    %v6218 = vpack.c.b16 %v5586, %v5578
    %v6219 = vpack.c.b16 %v5587, %v5579
    %v6220 = vpack.c.b16 %v5588, %v5580
    %v6221 = vpack.c.b16 %v5589, %v5581
    %v6222 = vpack.c.b16 %v5590, %v5582
    %v6223 = vpack.c.b16 %v5591, %v5583
    %v6224 = vpack.c.b16 %v5592, %v5584
    %v6225 = vpack.c.b16 %v5593, %v5585
    %v6226 = vpack.c.b16 %v5602, %v5594
    %v6227 = vpack.c.b16 %v5603, %v5595
    %v6228 = vpack.c.b16 %v5604, %v5596
    %v6229 = vpack.c.b16 %v5605, %v5597
    %v6230 = vpack.c.b16 %v5606, %v5598
    %v6231 = vpack.c.b16 %v5607, %v5599
    %v6232 = vpack.c.b16 %v5608, %v5600
    %v6233 = vpack.c.b16 %v5609, %v5601
    %v6234 = vpack.c.b16 %v5618, %v5610
    %v6235 = vpack.c.b16 %v5619, %v5611
    %v6236 = vpack.c.b16 %v5620, %v5612
    %v6237 = vpack.c.b16 %v5621, %v5613
    %v6238 = vpack.c.b16 %v5622, %v5614
    %v6239 = vpack.c.b16 %v5623, %v5615
    %v6240 = vpack.c.b16 %v5624, %v5616
    %v6241 = vpack.c.b16 %v5625, %v5617
    %v6242 = vpack.c.b16 %v5634, %v5626
    %v6243 = vpack.c.b16 %v5635, %v5627
    %v6244 = vpack.c.b16 %v5636, %v5628
    %v6245 = vpack.c.b16 %v5637, %v5629
    %v6246 = vpack.c.b16 %v5638, %v5630
    %v6247 = vpack.c.b16 %v5639, %v5631
    %v6248 = vpack.c.b16 %v5640, %v5632
    %v6249 = vpack.c.b16 %v5641, %v5633
    %v6250 = vpack.c.b16 %v5650, %v5642
    %v6251 = vpack.c.b16 %v5651, %v5643
    %v6252 = vpack.c.b16 %v5652, %v5644
    %v6253 = vpack.c.b16 %v5653, %v5645
    %v6254 = vpack.c.b16 %v5654, %v5646
    %v6255 = vpack.c.b16 %v5655, %v5647
    %v6256 = vpack.c.b16 %v5656, %v5648
    %v6257 = vpack.c.b16 %v5657, %v5649
    %v6258 = vpack.c.b16 %v5666, %v5658
    %v6259 = vpack.c.b16 %v5667, %v5659
    %v6260 = vpack.c.b16 %v5668, %v5660
    %v6261 = vpack.c.b16 %v5669, %v5661
    %v6262 = vpack.c.b16 %v5670, %v5662
    %v6263 = vpack.c.b16 %v5671, %v5663
    %v6264 = vpack.c.b16 %v5672, %v5664
    %v6265 = vpack.c.b16 %v5673, %v5665
    %v6266 = vpack.c.b16 %v5682, %v5674
    %v6267 = vpack.c.b16 %v5683, %v5675
    %v6268 = vpack.c.b16 %v5684, %v5676
    %v6269 = vpack.c.b16 %v5685, %v5677
    %v6270 = vpack.c.b16 %v5686, %v5678
    %v6271 = vpack.c.b16 %v5687, %v5679
    %v6272 = vpack.c.b16 %v5688, %v5680
    %v6273 = vpack.c.b16 %v5689, %v5681
    %v6274 = vpack.c.b16 %v5698, %v5690
    %v6275 = vpack.c.b16 %v5699, %v5691
    %v6276 = vpack.c.b16 %v5700, %v5692
    %v6277 = vpack.c.b16 %v5701, %v5693
    %v6278 = vpack.c.b16 %v5702, %v5694
    %v6279 = vpack.c.b16 %v5703, %v5695
    %v6280 = vpack.c.b16 %v5704, %v5696
    %v6281 = vpack.c.b16 %v5705, %v5697
    %v6282 = vpack.c.b16 %v5714, %v5706
    %v6283 = vpack.c.b16 %v5715, %v5707
    %v6284 = vpack.c.b16 %v5716, %v5708
    %v6285 = vpack.c.b16 %v5717, %v5709
    %v6286 = vpack.c.b16 %v5718, %v5710
    %v6287 = vpack.c.b16 %v5719, %v5711
    %v6288 = vpack.c.b16 %v5720, %v5712
    %v6289 = vpack.c.b16 %v5721, %v5713
    %v6290 = vpack.c.b16 %v5730, %v5722
    %v6291 = vpack.c.b16 %v5731, %v5723
    %v6292 = vpack.c.b16 %v5732, %v5724
    %v6293 = vpack.c.b16 %v5733, %v5725
    %v6294 = vpack.c.b16 %v5734, %v5726
    %v6295 = vpack.c.b16 %v5735, %v5727
    %v6296 = vpack.c.b16 %v5736, %v5728
    %v6297 = vpack.c.b16 %v5737, %v5729
    %v6298 = vpack.c.b16 %v5746, %v5738
    %v6299 = vpack.c.b16 %v5747, %v5739
    %v6300 = vpack.c.b16 %v5748, %v5740
    %v6301 = vpack.c.b16 %v5749, %v5741
    %v6302 = vpack.c.b16 %v5750, %v5742
    %v6303 = vpack.c.b16 %v5751, %v5743
    %v6304 = vpack.c.b16 %v5752, %v5744
    %v6305 = vpack.c.b16 %v5753, %v5745
    %v6306 = vpack.c.b16 %v5762, %v5754
    %v6307 = vpack.c.b16 %v5763, %v5755
    %v6308 = vpack.c.b16 %v5764, %v5756
    %v6309 = vpack.c.b16 %v5765, %v5757
    %v6310 = vpack.c.b16 %v5766, %v5758
    %v6311 = vpack.c.b16 %v5767, %v5759
    %v6312 = vpack.c.b16 %v5768, %v5760
    %v6313 = vpack.c.b16 %v5769, %v5761
    %v6314 = vpack.c.b16 %v5778, %v5770
    %v6315 = vpack.c.b16 %v5779, %v5771
    %v6316 = vpack.c.b16 %v5780, %v5772
    %v6317 = vpack.c.b16 %v5781, %v5773
    %v6318 = vpack.c.b16 %v5782, %v5774
    %v6319 = vpack.c.b16 %v5783, %v5775
    %v6320 = vpack.c.b16 %v5784, %v5776
    %v6321 = vpack.c.b16 %v5785, %v5777
    %v6322 = vpack.c.b16 %v5794, %v5786
    %v6323 = vpack.c.b16 %v5795, %v5787
    %v6324 = vpack.c.b16 %v5796, %v5788
    %v6325 = vpack.c.b16 %v5797, %v5789
    %v6326 = vpack.c.b16 %v5798, %v5790
    %v6327 = vpack.c.b16 %v5799, %v5791
    %v6328 = vpack.c.b16 %v5800, %v5792
    %v6329 = vpack.c.b16 %v5801, %v5793
    %v6330 = vpack.c.b16 %v5810, %v5802
    %v6331 = vpack.c.b16 %v5811, %v5803
    %v6332 = vpack.c.b16 %v5812, %v5804
    %v6333 = vpack.c.b16 %v5813, %v5805
    %v6334 = vpack.c.b16 %v5814, %v5806
    %v6335 = vpack.c.b16 %v5815, %v5807
    %v6336 = vpack.c.b16 %v5816, %v5808
    %v6337 = vpack.c.b16 %v5817, %v5809
    %v6338 = vpack.c.b16 %v5826, %v5818
    %v6339 = vpack.c.b16 %v5827, %v5819
    %v6340 = vpack.c.b16 %v5828, %v5820
    %v6341 = vpack.c.b16 %v5829, %v5821
    %v6342 = vpack.c.b16 %v5830, %v5822
    %v6343 = vpack.c.b16 %v5831, %v5823
    %v6344 = vpack.c.b16 %v5832, %v5824
    %v6345 = vpack.c.b16 %v5833, %v5825
    %6858 = vmatprep.subr.bf16.mxu0 %v5891
    %6859 = vmatpush1.bf16.msra.mxu0 %v5890
    %6860 = vmatprep.subr.bf16.mxu0 %v5883
    %6861 = vmatpush1.bf16.msra.mxu0 %v5882
    %6862 = vmatprep.subr.bf16.mxu0 %v5875
    %6863 = vmatpush1.bf16.msra.mxu0 %v5874
    %6864 = vmatprep.subr.bf16.mxu0 %v5867
    %6865 = vmatpush1.bf16.msra.mxu0 %v5866
    %6866 = vmatprep.subr.bf16.mxu0 %v5859
    %6867 = vmatpush1.bf16.msra.mxu0 %v5858
    %6868 = vmatprep.subr.bf16.mxu0 %v5851
    %6869 = vmatpush1.bf16.msra.mxu0 %v5850
    %6870 = vmatprep.subr.bf16.mxu0 %v5843
    %6871 = vmatpush1.bf16.msra.mxu0 %v5842
    %6872 = vmatprep.subr.bf16.mxu0 %v5835
    %6873 = vmatpush1.bf16.msra.mxu0 %v5834
    %6874 = vmatprep.subr.bf16.mxu0 %v5955
    %6875 = vmatpush2.bf16.msra.mxu0 %v5954
    %6876 = vmatprep.subr.bf16.mxu0 %v5947
    %6877 = vmatpush2.bf16.msra.mxu0 %v5946
    %6878 = vmatprep.subr.bf16.mxu0 %v5939
    %6879 = vmatpush2.bf16.msra.mxu0 %v5938
    %6880 = vmatprep.subr.bf16.mxu0 %v5931
    %6881 = vmatpush2.bf16.msra.mxu0 %v5930
    %6882 = vmatprep.subr.bf16.mxu0 %v5923
    %6883 = vmatpush2.bf16.msra.mxu0 %v5922
    %6884 = vmatprep.subr.bf16.mxu0 %v5915
    %6885 = vmatpush2.bf16.msra.mxu0 %v5914
    %6886 = vmatprep.subr.bf16.mxu0 %v5907
    %6887 = vmatpush2.bf16.msra.mxu0 %v5906
    %6888 = vmatprep.subr.bf16.mxu0 %v5899
    %6889 = vmatpush2.bf16.msra.mxu0 %v5898
    %6890 = vmatprep.mubr.bf16.mxu0 %v3737
    %6891 = vmatmul.mubr.bf16.gmra.mxu0 %v3736
    %v6892 = vpop.f32.mrf.mxu0
    %v6893 = vadd.f32 %v4261, %v6892
    %v6894 = vpop.f32.mrf.mxu0
    %v6895 = vadd.f32 %v4265, %v6894
    %v6896 = vpop.f32.mrf.mxu0
    %v6897 = vadd.f32 %v4261, %v6896
    %v6898 = vpop.f32.mrf.mxu0
    %v6899 = vadd.f32 %v4265, %v6898
    %6900 = vdwg.mxu0
    %6901 = vmatprep.subr.bf16.mxu0 %v6019
    %6902 = vmatpush1.bf16.msra.mxu0 %v6018
    %6903 = vmatprep.subr.bf16.mxu0 %v6011
    %6904 = vmatpush1.bf16.msra.mxu0 %v6010
    %6905 = vmatprep.subr.bf16.mxu0 %v6003
    %6906 = vmatpush1.bf16.msra.mxu0 %v6002
    %6907 = vmatprep.subr.bf16.mxu0 %v5995
    %6908 = vmatpush1.bf16.msra.mxu0 %v5994
    %6909 = vmatprep.subr.bf16.mxu0 %v5987
    %6910 = vmatpush1.bf16.msra.mxu0 %v5986
    %6911 = vmatprep.subr.bf16.mxu0 %v5979
    %6912 = vmatpush1.bf16.msra.mxu0 %v5978
    %6913 = vmatprep.subr.bf16.mxu0 %v5971
    %6914 = vmatpush1.bf16.msra.mxu0 %v5970
    %6915 = vmatprep.subr.bf16.mxu0 %v5963
    %6916 = vmatpush1.bf16.msra.mxu0 %v5962
    %6917 = vmatprep.subr.bf16.mxu0 %v6083
    %6918 = vmatpush2.bf16.msra.mxu0 %v6082
    %6919 = vmatprep.subr.bf16.mxu0 %v6075
    %6920 = vmatpush2.bf16.msra.mxu0 %v6074
    %6921 = vmatprep.subr.bf16.mxu0 %v6067
    %6922 = vmatpush2.bf16.msra.mxu0 %v6066
    %6923 = vmatprep.subr.bf16.mxu0 %v6059
    %6924 = vmatpush2.bf16.msra.mxu0 %v6058
    %6925 = vmatprep.subr.bf16.mxu0 %v6051
    %6926 = vmatpush2.bf16.msra.mxu0 %v6050
    %6927 = vmatprep.subr.bf16.mxu0 %v6043
    %6928 = vmatpush2.bf16.msra.mxu0 %v6042
    %6929 = vmatprep.subr.bf16.mxu0 %v6035
    %6930 = vmatpush2.bf16.msra.mxu0 %v6034
    %6931 = vmatprep.subr.bf16.mxu0 %v6027
    %6932 = vmatpush2.bf16.msra.mxu0 %v6026
    %6933 = vmatprep.mubr.bf16.mxu0 %v3739
    %6934 = vmatmul.mubr.bf16.gmra.mxu0 %v3738
    %v6935 = vpop.f32.mrf.mxu0
    %v6936 = vadd.f32 %v6893, %v6935
    %v6937 = vpop.f32.mrf.mxu0
    %v6938 = vadd.f32 %v6895, %v6937
    %v6939 = vpop.f32.mrf.mxu0
    %v6940 = vadd.f32 %v6897, %v6939
    %v6941 = vpop.f32.mrf.mxu0
    %v6942 = vadd.f32 %v6899, %v6941
    %6943 = vdwg.mxu0
    %6944 = vmatprep.subr.bf16.mxu0 %v6147
    %6945 = vmatpush1.bf16.msra.mxu0 %v6146
    %6946 = vmatprep.subr.bf16.mxu0 %v6139
    %6947 = vmatpush1.bf16.msra.mxu0 %v6138
    %6948 = vmatprep.subr.bf16.mxu0 %v6131
    %6949 = vmatpush1.bf16.msra.mxu0 %v6130
    %6950 = vmatprep.subr.bf16.mxu0 %v6123
    %6951 = vmatpush1.bf16.msra.mxu0 %v6122
    %6952 = vmatprep.subr.bf16.mxu0 %v6115
    %6953 = vmatpush1.bf16.msra.mxu0 %v6114
    %6954 = vmatprep.subr.bf16.mxu0 %v6107
    %6955 = vmatpush1.bf16.msra.mxu0 %v6106
    %6956 = vmatprep.subr.bf16.mxu0 %v6099
    %6957 = vmatpush1.bf16.msra.mxu0 %v6098
    %6958 = vmatprep.subr.bf16.mxu0 %v6091
    %6959 = vmatpush1.bf16.msra.mxu0 %v6090
    %6960 = vmatprep.subr.bf16.mxu0 %v6211
    %6961 = vmatpush2.bf16.msra.mxu0 %v6210
    %6962 = vmatprep.subr.bf16.mxu0 %v6203
    %6963 = vmatpush2.bf16.msra.mxu0 %v6202
    %6964 = vmatprep.subr.bf16.mxu0 %v6195
    %6965 = vmatpush2.bf16.msra.mxu0 %v6194
    %6966 = vmatprep.subr.bf16.mxu0 %v6187
    %6967 = vmatpush2.bf16.msra.mxu0 %v6186
    %6968 = vmatprep.subr.bf16.mxu0 %v6179
    %6969 = vmatpush2.bf16.msra.mxu0 %v6178
    %6970 = vmatprep.subr.bf16.mxu0 %v6171
    %6971 = vmatpush2.bf16.msra.mxu0 %v6170
    %6972 = vmatprep.subr.bf16.mxu0 %v6163
    %6973 = vmatpush2.bf16.msra.mxu0 %v6162
    %6974 = vmatprep.subr.bf16.mxu0 %v6155
    %6975 = vmatpush2.bf16.msra.mxu0 %v6154
    %6976 = vmatprep.mubr.bf16.mxu0 %v3741
    %6977 = vmatmul.mubr.bf16.gmra.mxu0 %v3740
    %v6978 = vpop.f32.mrf.mxu0
    %v6979 = vadd.f32 %v6936, %v6978
    %v6980 = vpop.f32.mrf.mxu0
    %v6981 = vadd.f32 %v6938, %v6980
    %v6982 = vpop.f32.mrf.mxu0
    %v6983 = vadd.f32 %v6940, %v6982
    %v6984 = vpop.f32.mrf.mxu0
    %v6985 = vadd.f32 %v6942, %v6984
    %6986 = vdwg.mxu0
    %6987 = vmatprep.subr.bf16.mxu0 %v6275
    %6988 = vmatpush1.bf16.msra.mxu0 %v6274
    %6989 = vmatprep.subr.bf16.mxu0 %v6267
    %6990 = vmatpush1.bf16.msra.mxu0 %v6266
    %6991 = vmatprep.subr.bf16.mxu0 %v6259
    %6992 = vmatpush1.bf16.msra.mxu0 %v6258
    %6993 = vmatprep.subr.bf16.mxu0 %v6251
    %6994 = vmatpush1.bf16.msra.mxu0 %v6250
    %6995 = vmatprep.subr.bf16.mxu0 %v6243
    %6996 = vmatpush1.bf16.msra.mxu0 %v6242
    %6997 = vmatprep.subr.bf16.mxu0 %v6235
    %6998 = vmatpush1.bf16.msra.mxu0 %v6234
    %6999 = vmatprep.subr.bf16.mxu0 %v6227
    %7000 = vmatpush1.bf16.msra.mxu0 %v6226
    %7001 = vmatprep.subr.bf16.mxu0 %v6219
    %7002 = vmatpush1.bf16.msra.mxu0 %v6218
    %7003 = vmatprep.subr.bf16.mxu0 %v6339
    %7004 = vmatpush2.bf16.msra.mxu0 %v6338
    %7005 = vmatprep.subr.bf16.mxu0 %v6331
    %7006 = vmatpush2.bf16.msra.mxu0 %v6330
    %7007 = vmatprep.subr.bf16.mxu0 %v6323
    %7008 = vmatpush2.bf16.msra.mxu0 %v6322
    %7009 = vmatprep.subr.bf16.mxu0 %v6315
    %7010 = vmatpush2.bf16.msra.mxu0 %v6314
    %7011 = vmatprep.subr.bf16.mxu0 %v6307
    %7012 = vmatpush2.bf16.msra.mxu0 %v6306
    %7013 = vmatprep.subr.bf16.mxu0 %v6299
    %7014 = vmatpush2.bf16.msra.mxu0 %v6298
    %7015 = vmatprep.subr.bf16.mxu0 %v6291
    %7016 = vmatpush2.bf16.msra.mxu0 %v6290
    %7017 = vmatprep.subr.bf16.mxu0 %v6283
    %7018 = vmatpush2.bf16.msra.mxu0 %v6282
    %7019 = vmatprep.mubr.bf16.mxu0 %v3743
    %7020 = vmatmul.mubr.bf16.gmra.mxu0 %v3742
    %v7021 = vpop.f32.mrf.mxu0
    %v7022 = vadd.f32 %v6979, %v7021
    %v7023 = vpop.f32.mrf.mxu0
    %v7024 = vadd.f32 %v6981, %v7023
    %v7025 = vpop.f32.mrf.mxu0
    %v7026 = vadd.f32 %v6983, %v7025
    %v7027 = vpop.f32.mrf.mxu0
    %v7028 = vadd.f32 %v6985, %v7027
    %7029 = vdwg.mxu0
    %7030 = vmatprep.subr.bf16.mxu0 %v5893
    %7031 = vmatpush1.bf16.msra.mxu0 %v5892
    %7032 = vmatprep.subr.bf16.mxu0 %v5885
    %7033 = vmatpush1.bf16.msra.mxu0 %v5884
    %7034 = vmatprep.subr.bf16.mxu0 %v5877
    %7035 = vmatpush1.bf16.msra.mxu0 %v5876
    %7036 = vmatprep.subr.bf16.mxu0 %v5869
    %7037 = vmatpush1.bf16.msra.mxu0 %v5868
    %7038 = vmatprep.subr.bf16.mxu0 %v5861
    %7039 = vmatpush1.bf16.msra.mxu0 %v5860
    %7040 = vmatprep.subr.bf16.mxu0 %v5853
    %7041 = vmatpush1.bf16.msra.mxu0 %v5852
    %7042 = vmatprep.subr.bf16.mxu0 %v5845
    %7043 = vmatpush1.bf16.msra.mxu0 %v5844
    %7044 = vmatprep.subr.bf16.mxu0 %v5837
    %7045 = vmatpush1.bf16.msra.mxu0 %v5836
    %7046 = vmatprep.subr.bf16.mxu0 %v5957
    %7047 = vmatpush2.bf16.msra.mxu0 %v5956
    %7048 = vmatprep.subr.bf16.mxu0 %v5949
    %7049 = vmatpush2.bf16.msra.mxu0 %v5948
    %7050 = vmatprep.subr.bf16.mxu0 %v5941
    %7051 = vmatpush2.bf16.msra.mxu0 %v5940
    %7052 = vmatprep.subr.bf16.mxu0 %v5933
    %7053 = vmatpush2.bf16.msra.mxu0 %v5932
    %7054 = vmatprep.subr.bf16.mxu0 %v5925
    %7055 = vmatpush2.bf16.msra.mxu0 %v5924
    %7056 = vmatprep.subr.bf16.mxu0 %v5917
    %7057 = vmatpush2.bf16.msra.mxu0 %v5916
    %7058 = vmatprep.subr.bf16.mxu0 %v5909
    %7059 = vmatpush2.bf16.msra.mxu0 %v5908
    %7060 = vmatprep.subr.bf16.mxu0 %v5901
    %7061 = vmatpush2.bf16.msra.mxu0 %v5900
    %7062 = vmatprep.mubr.bf16.mxu0 %v3737
    %7063 = vmatmul.mubr.bf16.gmra.mxu0 %v3736
    %v7064 = vpop.f32.mrf.mxu0
    %v7065 = vadd.f32 %v4269, %v7064
    %v7066 = vpop.f32.mrf.mxu0
    %v7067 = vadd.f32 %v4273, %v7066
    %v7068 = vpop.f32.mrf.mxu0
    %v7069 = vadd.f32 %v4269, %v7068
    %v7070 = vpop.f32.mrf.mxu0
    %v7071 = vadd.f32 %v4273, %v7070
    %7072 = vdwg.mxu0
    %7073 = vmatprep.subr.bf16.mxu0 %v6021
    %7074 = vmatpush1.bf16.msra.mxu0 %v6020
    %7075 = vmatprep.subr.bf16.mxu0 %v6013
    %7076 = vmatpush1.bf16.msra.mxu0 %v6012
    %7077 = vmatprep.subr.bf16.mxu0 %v6005
    %7078 = vmatpush1.bf16.msra.mxu0 %v6004
    %7079 = vmatprep.subr.bf16.mxu0 %v5997
    %7080 = vmatpush1.bf16.msra.mxu0 %v5996
    %7081 = vmatprep.subr.bf16.mxu0 %v5989
    %7082 = vmatpush1.bf16.msra.mxu0 %v5988
    %7083 = vmatprep.subr.bf16.mxu0 %v5981
    %7084 = vmatpush1.bf16.msra.mxu0 %v5980
    %7085 = vmatprep.subr.bf16.mxu0 %v5973
    %7086 = vmatpush1.bf16.msra.mxu0 %v5972
    %7087 = vmatprep.subr.bf16.mxu0 %v5965
    %7088 = vmatpush1.bf16.msra.mxu0 %v5964
    %7089 = vmatprep.subr.bf16.mxu0 %v6085
    %7090 = vmatpush2.bf16.msra.mxu0 %v6084
    %7091 = vmatprep.subr.bf16.mxu0 %v6077
    %7092 = vmatpush2.bf16.msra.mxu0 %v6076
    %7093 = vmatprep.subr.bf16.mxu0 %v6069
    %7094 = vmatpush2.bf16.msra.mxu0 %v6068
    %7095 = vmatprep.subr.bf16.mxu0 %v6061
    %7096 = vmatpush2.bf16.msra.mxu0 %v6060
    %7097 = vmatprep.subr.bf16.mxu0 %v6053
    %7098 = vmatpush2.bf16.msra.mxu0 %v6052
    %7099 = vmatprep.subr.bf16.mxu0 %v6045
    %7100 = vmatpush2.bf16.msra.mxu0 %v6044
    %7101 = vmatprep.subr.bf16.mxu0 %v6037
    %7102 = vmatpush2.bf16.msra.mxu0 %v6036
    %7103 = vmatprep.subr.bf16.mxu0 %v6029
    %7104 = vmatpush2.bf16.msra.mxu0 %v6028
    %7105 = vmatprep.mubr.bf16.mxu0 %v3739
    %7106 = vmatmul.mubr.bf16.gmra.mxu0 %v3738
    %v7107 = vpop.f32.mrf.mxu0
    %v7108 = vadd.f32 %v7065, %v7107
    %v7109 = vpop.f32.mrf.mxu0
    %v7110 = vadd.f32 %v7067, %v7109
    %v7111 = vpop.f32.mrf.mxu0
    %v7112 = vadd.f32 %v7069, %v7111
    %v7113 = vpop.f32.mrf.mxu0
    %v7114 = vadd.f32 %v7071, %v7113
    %7115 = vdwg.mxu0
    %7116 = vmatprep.subr.bf16.mxu0 %v6149
    %7117 = vmatpush1.bf16.msra.mxu0 %v6148
    %7118 = vmatprep.subr.bf16.mxu0 %v6141
    %7119 = vmatpush1.bf16.msra.mxu0 %v6140
    %7120 = vmatprep.subr.bf16.mxu0 %v6133
    %7121 = vmatpush1.bf16.msra.mxu0 %v6132
    %7122 = vmatprep.subr.bf16.mxu0 %v6125
    %7123 = vmatpush1.bf16.msra.mxu0 %v6124
    %7124 = vmatprep.subr.bf16.mxu0 %v6117
    %7125 = vmatpush1.bf16.msra.mxu0 %v6116
    %7126 = vmatprep.subr.bf16.mxu0 %v6109
    %7127 = vmatpush1.bf16.msra.mxu0 %v6108
    %7128 = vmatprep.subr.bf16.mxu0 %v6101
    %7129 = vmatpush1.bf16.msra.mxu0 %v6100
    %7130 = vmatprep.subr.bf16.mxu0 %v6093
    %7131 = vmatpush1.bf16.msra.mxu0 %v6092
    %7132 = vmatprep.subr.bf16.mxu0 %v6213
    %7133 = vmatpush2.bf16.msra.mxu0 %v6212
    %7134 = vmatprep.subr.bf16.mxu0 %v6205
    %7135 = vmatpush2.bf16.msra.mxu0 %v6204
    %7136 = vmatprep.subr.bf16.mxu0 %v6197
    %7137 = vmatpush2.bf16.msra.mxu0 %v6196
    %7138 = vmatprep.subr.bf16.mxu0 %v6189
    %7139 = vmatpush2.bf16.msra.mxu0 %v6188
    %7140 = vmatprep.subr.bf16.mxu0 %v6181
    %7141 = vmatpush2.bf16.msra.mxu0 %v6180
    %7142 = vmatprep.subr.bf16.mxu0 %v6173
    %7143 = vmatpush2.bf16.msra.mxu0 %v6172
    %7144 = vmatprep.subr.bf16.mxu0 %v6165
    %7145 = vmatpush2.bf16.msra.mxu0 %v6164
    %7146 = vmatprep.subr.bf16.mxu0 %v6157
    %7147 = vmatpush2.bf16.msra.mxu0 %v6156
    %7148 = vmatprep.mubr.bf16.mxu0 %v3741
    %7149 = vmatmul.mubr.bf16.gmra.mxu0 %v3740
    %v7150 = vpop.f32.mrf.mxu0
    %v7151 = vadd.f32 %v7108, %v7150
    %v7152 = vpop.f32.mrf.mxu0
    %v7153 = vadd.f32 %v7110, %v7152
    %v7154 = vpop.f32.mrf.mxu0
    %v7155 = vadd.f32 %v7112, %v7154
    %v7156 = vpop.f32.mrf.mxu0
    %v7157 = vadd.f32 %v7114, %v7156
    %7158 = vdwg.mxu0
    %7159 = vmatprep.subr.bf16.mxu0 %v6277
    %7160 = vmatpush1.bf16.msra.mxu0 %v6276
    %7161 = vmatprep.subr.bf16.mxu0 %v6269
    %7162 = vmatpush1.bf16.msra.mxu0 %v6268
    %7163 = vmatprep.subr.bf16.mxu0 %v6261
    %7164 = vmatpush1.bf16.msra.mxu0 %v6260
    %7165 = vmatprep.subr.bf16.mxu0 %v6253
    %7166 = vmatpush1.bf16.msra.mxu0 %v6252
    %7167 = vmatprep.subr.bf16.mxu0 %v6245
    %7168 = vmatpush1.bf16.msra.mxu0 %v6244
    %7169 = vmatprep.subr.bf16.mxu0 %v6237
    %7170 = vmatpush1.bf16.msra.mxu0 %v6236
    %7171 = vmatprep.subr.bf16.mxu0 %v6229
    %7172 = vmatpush1.bf16.msra.mxu0 %v6228
    %7173 = vmatprep.subr.bf16.mxu0 %v6221
    %7174 = vmatpush1.bf16.msra.mxu0 %v6220
    %7175 = vmatprep.subr.bf16.mxu0 %v6341
    %7176 = vmatpush2.bf16.msra.mxu0 %v6340
    %7177 = vmatprep.subr.bf16.mxu0 %v6333
    %7178 = vmatpush2.bf16.msra.mxu0 %v6332
    %7179 = vmatprep.subr.bf16.mxu0 %v6325
    %7180 = vmatpush2.bf16.msra.mxu0 %v6324
    %7181 = vmatprep.subr.bf16.mxu0 %v6317
    %7182 = vmatpush2.bf16.msra.mxu0 %v6316
    %7183 = vmatprep.subr.bf16.mxu0 %v6309
    %7184 = vmatpush2.bf16.msra.mxu0 %v6308
    %7185 = vmatprep.subr.bf16.mxu0 %v6301
    %7186 = vmatpush2.bf16.msra.mxu0 %v6300
    %7187 = vmatprep.subr.bf16.mxu0 %v6293
    %7188 = vmatpush2.bf16.msra.mxu0 %v6292
    %7189 = vmatprep.subr.bf16.mxu0 %v6285
    %7190 = vmatpush2.bf16.msra.mxu0 %v6284
    %7191 = vmatprep.mubr.bf16.mxu0 %v3743
    %7192 = vmatmul.mubr.bf16.gmra.mxu0 %v3742
    %v7193 = vpop.f32.mrf.mxu0
    %v7194 = vadd.f32 %v7151, %v7193
    %v7195 = vpop.f32.mrf.mxu0
    %v7196 = vadd.f32 %v7153, %v7195
    %v7197 = vpop.f32.mrf.mxu0
    %v7198 = vadd.f32 %v7155, %v7197
    %v7199 = vpop.f32.mrf.mxu0
    %v7200 = vadd.f32 %v7157, %v7199
    %7201 = vdwg.mxu0
    %7202 = vmatprep.subr.bf16.mxu0 %v5895
    %7203 = vmatpush1.bf16.msra.mxu0 %v5894
    %7204 = vmatprep.subr.bf16.mxu0 %v5887
    %7205 = vmatpush1.bf16.msra.mxu0 %v5886
    %7206 = vmatprep.subr.bf16.mxu0 %v5879
    %7207 = vmatpush1.bf16.msra.mxu0 %v5878
    %7208 = vmatprep.subr.bf16.mxu0 %v5871
    %7209 = vmatpush1.bf16.msra.mxu0 %v5870
    %7210 = vmatprep.subr.bf16.mxu0 %v5863
    %7211 = vmatpush1.bf16.msra.mxu0 %v5862
    %7212 = vmatprep.subr.bf16.mxu0 %v5855
    %7213 = vmatpush1.bf16.msra.mxu0 %v5854
    %7214 = vmatprep.subr.bf16.mxu0 %v5847
    %7215 = vmatpush1.bf16.msra.mxu0 %v5846
    %7216 = vmatprep.subr.bf16.mxu0 %v5839
    %7217 = vmatpush1.bf16.msra.mxu0 %v5838
    %7218 = vmatprep.subr.bf16.mxu0 %v5959
    %7219 = vmatpush2.bf16.msra.mxu0 %v5958
    %7220 = vmatprep.subr.bf16.mxu0 %v5951
    %7221 = vmatpush2.bf16.msra.mxu0 %v5950
    %7222 = vmatprep.subr.bf16.mxu0 %v5943
    %7223 = vmatpush2.bf16.msra.mxu0 %v5942
    %7224 = vmatprep.subr.bf16.mxu0 %v5935
    %7225 = vmatpush2.bf16.msra.mxu0 %v5934
    %7226 = vmatprep.subr.bf16.mxu0 %v5927
    %7227 = vmatpush2.bf16.msra.mxu0 %v5926
    %7228 = vmatprep.subr.bf16.mxu0 %v5919
    %7229 = vmatpush2.bf16.msra.mxu0 %v5918
    %7230 = vmatprep.subr.bf16.mxu0 %v5911
    %7231 = vmatpush2.bf16.msra.mxu0 %v5910
    %7232 = vmatprep.subr.bf16.mxu0 %v5903
    %7233 = vmatpush2.bf16.msra.mxu0 %v5902
    %7234 = vmatprep.mubr.bf16.mxu0 %v3737
    %7235 = vmatmul.mubr.bf16.gmra.mxu0 %v3736
    %v7236 = vpop.f32.mrf.mxu0
    %v7237 = vadd.f32 %v4277, %v7236
    %v7238 = vpop.f32.mrf.mxu0
    %v7239 = vadd.f32 %v4281, %v7238
    %v7240 = vpop.f32.mrf.mxu0
    %v7241 = vadd.f32 %v4277, %v7240
    %v7242 = vpop.f32.mrf.mxu0
    %v7243 = vadd.f32 %v4281, %v7242
    %7244 = vdwg.mxu0
    %7245 = vmatprep.subr.bf16.mxu0 %v6023
    %7246 = vmatpush1.bf16.msra.mxu0 %v6022
    %7247 = vmatprep.subr.bf16.mxu0 %v6015
    %7248 = vmatpush1.bf16.msra.mxu0 %v6014
    %7249 = vmatprep.subr.bf16.mxu0 %v6007
    %7250 = vmatpush1.bf16.msra.mxu0 %v6006
    %7251 = vmatprep.subr.bf16.mxu0 %v5999
    %7252 = vmatpush1.bf16.msra.mxu0 %v5998
    %7253 = vmatprep.subr.bf16.mxu0 %v5991
    %7254 = vmatpush1.bf16.msra.mxu0 %v5990
    %7255 = vmatprep.subr.bf16.mxu0 %v5983
    %7256 = vmatpush1.bf16.msra.mxu0 %v5982
    %7257 = vmatprep.subr.bf16.mxu0 %v5975
    %7258 = vmatpush1.bf16.msra.mxu0 %v5974
    %7259 = vmatprep.subr.bf16.mxu0 %v5967
    %7260 = vmatpush1.bf16.msra.mxu0 %v5966
    %7261 = vmatprep.subr.bf16.mxu0 %v6087
    %7262 = vmatpush2.bf16.msra.mxu0 %v6086
    %7263 = vmatprep.subr.bf16.mxu0 %v6079
    %7264 = vmatpush2.bf16.msra.mxu0 %v6078
    %7265 = vmatprep.subr.bf16.mxu0 %v6071
    %7266 = vmatpush2.bf16.msra.mxu0 %v6070
    %7267 = vmatprep.subr.bf16.mxu0 %v6063
    %7268 = vmatpush2.bf16.msra.mxu0 %v6062
    %7269 = vmatprep.subr.bf16.mxu0 %v6055
    %7270 = vmatpush2.bf16.msra.mxu0 %v6054
    %7271 = vmatprep.subr.bf16.mxu0 %v6047
    %7272 = vmatpush2.bf16.msra.mxu0 %v6046
    %7273 = vmatprep.subr.bf16.mxu0 %v6039
    %7274 = vmatpush2.bf16.msra.mxu0 %v6038
    %7275 = vmatprep.subr.bf16.mxu0 %v6031
    %7276 = vmatpush2.bf16.msra.mxu0 %v6030
    %7277 = vmatprep.mubr.bf16.mxu0 %v3739
    %7278 = vmatmul.mubr.bf16.gmra.mxu0 %v3738
    %v7279 = vpop.f32.mrf.mxu0
    %v7280 = vadd.f32 %v7237, %v7279
    %v7281 = vpop.f32.mrf.mxu0
    %v7282 = vadd.f32 %v7239, %v7281
    %v7283 = vpop.f32.mrf.mxu0
    %v7284 = vadd.f32 %v7241, %v7283
    %v7285 = vpop.f32.mrf.mxu0
    %v7286 = vadd.f32 %v7243, %v7285
    %7287 = vdwg.mxu0
    %7288 = vmatprep.subr.bf16.mxu0 %v6151
    %7289 = vmatpush1.bf16.msra.mxu0 %v6150
    %7290 = vmatprep.subr.bf16.mxu0 %v6143
    %7291 = vmatpush1.bf16.msra.mxu0 %v6142
    %7292 = vmatprep.subr.bf16.mxu0 %v6135
    %7293 = vmatpush1.bf16.msra.mxu0 %v6134
    %7294 = vmatprep.subr.bf16.mxu0 %v6127
    %7295 = vmatpush1.bf16.msra.mxu0 %v6126
    %7296 = vmatprep.subr.bf16.mxu0 %v6119
    %7297 = vmatpush1.bf16.msra.mxu0 %v6118
    %7298 = vmatprep.subr.bf16.mxu0 %v6111
    %7299 = vmatpush1.bf16.msra.mxu0 %v6110
    %7300 = vmatprep.subr.bf16.mxu0 %v6103
    %7301 = vmatpush1.bf16.msra.mxu0 %v6102
    %7302 = vmatprep.subr.bf16.mxu0 %v6095
    %7303 = vmatpush1.bf16.msra.mxu0 %v6094
    %7304 = vmatprep.subr.bf16.mxu0 %v6215
    %7305 = vmatpush2.bf16.msra.mxu0 %v6214
    %7306 = vmatprep.subr.bf16.mxu0 %v6207
    %7307 = vmatpush2.bf16.msra.mxu0 %v6206
    %7308 = vmatprep.subr.bf16.mxu0 %v6199
    %7309 = vmatpush2.bf16.msra.mxu0 %v6198
    %7310 = vmatprep.subr.bf16.mxu0 %v6191
    %7311 = vmatpush2.bf16.msra.mxu0 %v6190
    %7312 = vmatprep.subr.bf16.mxu0 %v6183
    %7313 = vmatpush2.bf16.msra.mxu0 %v6182
    %7314 = vmatprep.subr.bf16.mxu0 %v6175
    %7315 = vmatpush2.bf16.msra.mxu0 %v6174
    %7316 = vmatprep.subr.bf16.mxu0 %v6167
    %7317 = vmatpush2.bf16.msra.mxu0 %v6166
    %7318 = vmatprep.subr.bf16.mxu0 %v6159
    %7319 = vmatpush2.bf16.msra.mxu0 %v6158
    %7320 = vmatprep.mubr.bf16.mxu0 %v3741
    %7321 = vmatmul.mubr.bf16.gmra.mxu0 %v3740
    %v7322 = vpop.f32.mrf.mxu0
    %v7323 = vadd.f32 %v7280, %v7322
    %v7324 = vpop.f32.mrf.mxu0
    %v7325 = vadd.f32 %v7282, %v7324
    %v7326 = vpop.f32.mrf.mxu0
    %v7327 = vadd.f32 %v7284, %v7326
    %v7328 = vpop.f32.mrf.mxu0
    %v7329 = vadd.f32 %v7286, %v7328
    %7330 = vdwg.mxu0
    %7331 = vmatprep.subr.bf16.mxu0 %v6279
    %7332 = vmatpush1.bf16.msra.mxu0 %v6278
    %7333 = vmatprep.subr.bf16.mxu0 %v6271
    %7334 = vmatpush1.bf16.msra.mxu0 %v6270
    %7335 = vmatprep.subr.bf16.mxu0 %v6263
    %7336 = vmatpush1.bf16.msra.mxu0 %v6262
    %7337 = vmatprep.subr.bf16.mxu0 %v6255
    %7338 = vmatpush1.bf16.msra.mxu0 %v6254
    %7339 = vmatprep.subr.bf16.mxu0 %v6247
    %7340 = vmatpush1.bf16.msra.mxu0 %v6246
    %7341 = vmatprep.subr.bf16.mxu0 %v6239
    %7342 = vmatpush1.bf16.msra.mxu0 %v6238
    %7343 = vmatprep.subr.bf16.mxu0 %v6231
    %7344 = vmatpush1.bf16.msra.mxu0 %v6230
    %7345 = vmatprep.subr.bf16.mxu0 %v6223
    %7346 = vmatpush1.bf16.msra.mxu0 %v6222
    %7347 = vmatprep.subr.bf16.mxu0 %v6343
    %7348 = vmatpush2.bf16.msra.mxu0 %v6342
    %7349 = vmatprep.subr.bf16.mxu0 %v6335
    %7350 = vmatpush2.bf16.msra.mxu0 %v6334
    %7351 = vmatprep.subr.bf16.mxu0 %v6327
    %7352 = vmatpush2.bf16.msra.mxu0 %v6326
    %7353 = vmatprep.subr.bf16.mxu0 %v6319
    %7354 = vmatpush2.bf16.msra.mxu0 %v6318
    %7355 = vmatprep.subr.bf16.mxu0 %v6311
    %7356 = vmatpush2.bf16.msra.mxu0 %v6310
    %7357 = vmatprep.subr.bf16.mxu0 %v6303
    %7358 = vmatpush2.bf16.msra.mxu0 %v6302
    %7359 = vmatprep.subr.bf16.mxu0 %v6295
    %7360 = vmatpush2.bf16.msra.mxu0 %v6294
    %7361 = vmatprep.subr.bf16.mxu0 %v6287
    %7362 = vmatpush2.bf16.msra.mxu0 %v6286
    %7363 = vmatprep.mubr.bf16.mxu0 %v3743
    %7364 = vmatmul.mubr.bf16.gmra.mxu0 %v3742
    %v7365 = vpop.f32.mrf.mxu0
    %v7366 = vadd.f32 %v7323, %v7365
    %v7367 = vpop.f32.mrf.mxu0
    %v7368 = vadd.f32 %v7325, %v7367
    %v7369 = vpop.f32.mrf.mxu0
    %v7370 = vadd.f32 %v7327, %v7369
    %v7371 = vpop.f32.mrf.mxu0
    %v7372 = vadd.f32 %v7329, %v7371
    %7373 = vdwg.mxu0
    %7374 = vmatprep.subr.bf16.mxu0 %v5897
    %7375 = vmatpush1.bf16.msra.mxu0 %v5896
    %7376 = vmatprep.subr.bf16.mxu0 %v5889
    %7377 = vmatpush1.bf16.msra.mxu0 %v5888
    %7378 = vmatprep.subr.bf16.mxu0 %v5881
    %7379 = vmatpush1.bf16.msra.mxu0 %v5880
    %7380 = vmatprep.subr.bf16.mxu0 %v5873
    %7381 = vmatpush1.bf16.msra.mxu0 %v5872
    %7382 = vmatprep.subr.bf16.mxu0 %v5865
    %7383 = vmatpush1.bf16.msra.mxu0 %v5864
    %7384 = vmatprep.subr.bf16.mxu0 %v5857
    %7385 = vmatpush1.bf16.msra.mxu0 %v5856
    %7386 = vmatprep.subr.bf16.mxu0 %v5849
    %7387 = vmatpush1.bf16.msra.mxu0 %v5848
    %7388 = vmatprep.subr.bf16.mxu0 %v5841
    %7389 = vmatpush1.bf16.msra.mxu0 %v5840
    %7390 = vmatprep.subr.bf16.mxu0 %v5961
    %7391 = vmatpush2.bf16.msra.mxu0 %v5960
    %7392 = vmatprep.subr.bf16.mxu0 %v5953
    %7393 = vmatpush2.bf16.msra.mxu0 %v5952
    %7394 = vmatprep.subr.bf16.mxu0 %v5945
    %7395 = vmatpush2.bf16.msra.mxu0 %v5944
    %7396 = vmatprep.subr.bf16.mxu0 %v5937
    %7397 = vmatpush2.bf16.msra.mxu0 %v5936
    %7398 = vmatprep.subr.bf16.mxu0 %v5929
    %7399 = vmatpush2.bf16.msra.mxu0 %v5928
    %7400 = vmatprep.subr.bf16.mxu0 %v5921
    %7401 = vmatpush2.bf16.msra.mxu0 %v5920
    %7402 = vmatprep.subr.bf16.mxu0 %v5913
    %7403 = vmatpush2.bf16.msra.mxu0 %v5912
    %7404 = vmatprep.subr.bf16.mxu0 %v5905
    %7405 = vmatpush2.bf16.msra.mxu0 %v5904
    %7406 = vmatprep.mubr.bf16.mxu0 %v3737
    %7407 = vmatmul.mubr.bf16.gmra.mxu0 %v3736
    %v7408 = vpop.f32.mrf.mxu0
    %v7409 = vadd.f32 %v4285, %v7408
    %v7410 = vpop.f32.mrf.mxu0
    %v7411 = vadd.f32 %v4289, %v7410
    %v7412 = vpop.f32.mrf.mxu0
    %v7413 = vadd.f32 %v4285, %v7412
    %v7414 = vpop.f32.mrf.mxu0
    %v7415 = vadd.f32 %v4289, %v7414
    %7416 = vdwg.mxu0
    %7417 = vmatprep.subr.bf16.mxu0 %v6025
    %7418 = vmatpush1.bf16.msra.mxu0 %v6024
    %7419 = vmatprep.subr.bf16.mxu0 %v6017
    %7420 = vmatpush1.bf16.msra.mxu0 %v6016
    %7421 = vmatprep.subr.bf16.mxu0 %v6009
    %7422 = vmatpush1.bf16.msra.mxu0 %v6008
    %7423 = vmatprep.subr.bf16.mxu0 %v6001
    %7424 = vmatpush1.bf16.msra.mxu0 %v6000
    %7425 = vmatprep.subr.bf16.mxu0 %v5993
    %7426 = vmatpush1.bf16.msra.mxu0 %v5992
    %7427 = vmatprep.subr.bf16.mxu0 %v5985
    %7428 = vmatpush1.bf16.msra.mxu0 %v5984
    %7429 = vmatprep.subr.bf16.mxu0 %v5977
    %7430 = vmatpush1.bf16.msra.mxu0 %v5976
    %7431 = vmatprep.subr.bf16.mxu0 %v5969
    %7432 = vmatpush1.bf16.msra.mxu0 %v5968
    %7433 = vmatprep.subr.bf16.mxu0 %v6089
    %7434 = vmatpush2.bf16.msra.mxu0 %v6088
    %7435 = vmatprep.subr.bf16.mxu0 %v6081
    %7436 = vmatpush2.bf16.msra.mxu0 %v6080
    %7437 = vmatprep.subr.bf16.mxu0 %v6073
    %7438 = vmatpush2.bf16.msra.mxu0 %v6072
    %7439 = vmatprep.subr.bf16.mxu0 %v6065
    %7440 = vmatpush2.bf16.msra.mxu0 %v6064
    %7441 = vmatprep.subr.bf16.mxu0 %v6057
    %7442 = vmatpush2.bf16.msra.mxu0 %v6056
    %7443 = vmatprep.subr.bf16.mxu0 %v6049
    %7444 = vmatpush2.bf16.msra.mxu0 %v6048
    %7445 = vmatprep.subr.bf16.mxu0 %v6041
    %7446 = vmatpush2.bf16.msra.mxu0 %v6040
    %7447 = vmatprep.subr.bf16.mxu0 %v6033
    %7448 = vmatpush2.bf16.msra.mxu0 %v6032
    %7449 = vmatprep.mubr.bf16.mxu0 %v3739
    %7450 = vmatmul.mubr.bf16.gmra.mxu0 %v3738
    %v7451 = vpop.f32.mrf.mxu0
    %v7452 = vadd.f32 %v7409, %v7451
    %v7453 = vpop.f32.mrf.mxu0
    %v7454 = vadd.f32 %v7411, %v7453
    %v7455 = vpop.f32.mrf.mxu0
    %v7456 = vadd.f32 %v7413, %v7455
    %v7457 = vpop.f32.mrf.mxu0
    %v7458 = vadd.f32 %v7415, %v7457
    %7459 = vdwg.mxu0
    %7460 = vmatprep.subr.bf16.mxu0 %v6153
    %7461 = vmatpush1.bf16.msra.mxu0 %v6152
    %7462 = vmatprep.subr.bf16.mxu0 %v6145
    %7463 = vmatpush1.bf16.msra.mxu0 %v6144
    %7464 = vmatprep.subr.bf16.mxu0 %v6137
    %7465 = vmatpush1.bf16.msra.mxu0 %v6136
    %7466 = vmatprep.subr.bf16.mxu0 %v6129
    %7467 = vmatpush1.bf16.msra.mxu0 %v6128
    %7468 = vmatprep.subr.bf16.mxu0 %v6121
    %7469 = vmatpush1.bf16.msra.mxu0 %v6120
    %7470 = vmatprep.subr.bf16.mxu0 %v6113
    %7471 = vmatpush1.bf16.msra.mxu0 %v6112
    %7472 = vmatprep.subr.bf16.mxu0 %v6105
    %7473 = vmatpush1.bf16.msra.mxu0 %v6104
    %7474 = vmatprep.subr.bf16.mxu0 %v6097
    %7475 = vmatpush1.bf16.msra.mxu0 %v6096
    %7476 = vmatprep.subr.bf16.mxu0 %v6217
    %7477 = vmatpush2.bf16.msra.mxu0 %v6216
    %7478 = vmatprep.subr.bf16.mxu0 %v6209
    %7479 = vmatpush2.bf16.msra.mxu0 %v6208
    %7480 = vmatprep.subr.bf16.mxu0 %v6201
    %7481 = vmatpush2.bf16.msra.mxu0 %v6200
    %7482 = vmatprep.subr.bf16.mxu0 %v6193
    %7483 = vmatpush2.bf16.msra.mxu0 %v6192
    %7484 = vmatprep.subr.bf16.mxu0 %v6185
    %7485 = vmatpush2.bf16.msra.mxu0 %v6184
    %7486 = vmatprep.subr.bf16.mxu0 %v6177
    %7487 = vmatpush2.bf16.msra.mxu0 %v6176
    %7488 = vmatprep.subr.bf16.mxu0 %v6169
    %7489 = vmatpush2.bf16.msra.mxu0 %v6168
    %7490 = vmatprep.subr.bf16.mxu0 %v6161
    %7491 = vmatpush2.bf16.msra.mxu0 %v6160
    %7492 = vmatprep.mubr.bf16.mxu0 %v3741
    %7493 = vmatmul.mubr.bf16.gmra.mxu0 %v3740
    %v7494 = vpop.f32.mrf.mxu0
    %v7495 = vadd.f32 %v7452, %v7494
    %v7496 = vpop.f32.mrf.mxu0
    %v7497 = vadd.f32 %v7454, %v7496
    %v7498 = vpop.f32.mrf.mxu0
    %v7499 = vadd.f32 %v7456, %v7498
    %v7500 = vpop.f32.mrf.mxu0
    %v7501 = vadd.f32 %v7458, %v7500
    %7502 = vdwg.mxu0
    %7503 = vmatprep.subr.bf16.mxu0 %v6281
    %7504 = vmatpush1.bf16.msra.mxu0 %v6280
    %7505 = vmatprep.subr.bf16.mxu0 %v6273
    %7506 = vmatpush1.bf16.msra.mxu0 %v6272
    %7507 = vmatprep.subr.bf16.mxu0 %v6265
    %7508 = vmatpush1.bf16.msra.mxu0 %v6264
    %7509 = vmatprep.subr.bf16.mxu0 %v6257
    %7510 = vmatpush1.bf16.msra.mxu0 %v6256
    %7511 = vmatprep.subr.bf16.mxu0 %v6249
    %7512 = vmatpush1.bf16.msra.mxu0 %v6248
    %7513 = vmatprep.subr.bf16.mxu0 %v6241
    %7514 = vmatpush1.bf16.msra.mxu0 %v6240
    %7515 = vmatprep.subr.bf16.mxu0 %v6233
    %7516 = vmatpush1.bf16.msra.mxu0 %v6232
    %7517 = vmatprep.subr.bf16.mxu0 %v6225
    %7518 = vmatpush1.bf16.msra.mxu0 %v6224
    %7519 = vmatprep.subr.bf16.mxu0 %v6345
    %7520 = vmatpush2.bf16.msra.mxu0 %v6344
    %7521 = vmatprep.subr.bf16.mxu0 %v6337
    %7522 = vmatpush2.bf16.msra.mxu0 %v6336
    %7523 = vmatprep.subr.bf16.mxu0 %v6329
    %7524 = vmatpush2.bf16.msra.mxu0 %v6328
    %7525 = vmatprep.subr.bf16.mxu0 %v6321
    %7526 = vmatpush2.bf16.msra.mxu0 %v6320
    %7527 = vmatprep.subr.bf16.mxu0 %v6313
    %7528 = vmatpush2.bf16.msra.mxu0 %v6312
    %7529 = vmatprep.subr.bf16.mxu0 %v6305
    %7530 = vmatpush2.bf16.msra.mxu0 %v6304
    %7531 = vmatprep.subr.bf16.mxu0 %v6297
    %7532 = vmatpush2.bf16.msra.mxu0 %v6296
    %7533 = vmatprep.subr.bf16.mxu0 %v6289
    %7534 = vmatpush2.bf16.msra.mxu0 %v6288
    %7535 = vmatprep.mubr.bf16.mxu0 %v3743
    %7536 = vmatmul.mubr.bf16.gmra.mxu0 %v3742
    %v7537 = vpop.f32.mrf.mxu0
    %v7538 = vadd.f32 %v7495, %v7537
    %v7539 = vpop.f32.mrf.mxu0
    %v7540 = vadd.f32 %v7497, %v7539
    %v7541 = vpop.f32.mrf.mxu0
    %v7542 = vadd.f32 %v7499, %v7541
    %v7543 = vpop.f32.mrf.mxu0
    %v7544 = vadd.f32 %v7501, %v7543
    %7545 = vdwg.mxu0
    %v7546 = vtanh.pop %v7022
    %v7547 = vtanh.pop %v7024
    %v7548 = vtanh.pop %v7194
    %v7549 = vtanh.pop %v7196
    %v7550 = vtanh.pop %v7366
    %v7551 = vtanh.pop %v7368
    %v7552 = vtanh.pop %v7538
    %v7553 = vtanh.pop %v7540
    %v7554 = vtanh.pop %v7026
    %v7555 = vtanh.pop %v7028
    %v7556 = vtanh.pop %v7198
    %v7557 = vtanh.pop %v7200
    %v7558 = vtanh.pop %v7370
    %v7559 = vtanh.pop %v7372
    %v7560 = vtanh.pop %v7542
    %v7561 = vtanh.pop %v7544
    %7562 = vst [vmem:[#allocation17] sm:$0xff] %v7546
    %7563 = vst [vmem:[#allocation17 + $0x8] sm:$0xff] %v7547
    %7564 = vst [vmem:[#allocation17 + $0x10] sm:$0xff] %v7548
    %7565 = vst [vmem:[#allocation17 + $0x18] sm:$0xff] %v7549
    %7566 = vst [vmem:[#allocation17 + $0x20] sm:$0xff] %v7550
    %7567 = vst [vmem:[#allocation17 + $0x28] sm:$0xff] %v7551
    %7568 = vst [vmem:[#allocation17 + $0x30] sm:$0xff] %v7552
    %7569 = vst [vmem:[#allocation17 + $0x38] sm:$0xff] %v7553
    %7570 = vst [vmem:[#allocation17 + $0x40] sm:$0xff] %v7554
    %7571 = vst [vmem:[#allocation17 + $0x48] sm:$0xff] %v7555
    %7572 = vst [vmem:[#allocation17 + $0x50] sm:$0xff] %v7556
    %7573 = vst [vmem:[#allocation17 + $0x58] sm:$0xff] %v7557
    %7574 = vst [vmem:[#allocation17 + $0x60] sm:$0xff] %v7558
    %7575 = vst [vmem:[#allocation17 + $0x68] sm:$0xff] %v7559
    %7576 = vst [vmem:[#allocation17 + $0x70] sm:$0xff] %v7560
    %7577 = vst [vmem:[#allocation17 + $0x78] sm:$0xff] %v7561
    // Predicated region
    $region74: #{tpu_custom_call.1} parent=1 // pred_check
      _
    $region75: #{tpu_custom_call.1} parent=1 // pred_check_branch
      %7579 = sbr.rel (0) target = $region77
    $region76: #{tpu_custom_call.1} parent=1 // pred_region
      %s7581 = ssub.s32 2048, 2048
      %7582 = vsyncadd [#allocation4], %s7581
      %s7583 = sshll.u32 [#allocation17], 4
      %s7584 = int_to_ptr.vmem [resolvable:$true] %s7583
      %7589 = dma.vmem_to_hbm [thread:$0]  %s7584, 2048, %s9, [#allocation4], 1024, 1024, 64
    $region77: #{tpu_custom_call.1} parent=1 // pred_fallthru
      _
    // Predicated region
    $region78: #{tpu_custom_call.1} parent=1 // pred_check
      _
    $region79: #{tpu_custom_call.1} parent=1 // pred_check_branch
      %7591 = sbr.rel (0) target = $region81
    $region80: #{tpu_custom_call.1} parent=1 // pred_region
      %7592 = dma.done [#allocation4], 2048
    $region81: #{tpu_custom_call.1} parent=1 // pred_fallthru
      _
    %7593 = vsyncpa [#allocation3], 1
    %7594 = vsyncpa [#allocation6], 1
    %7595 = vsyncpa [#allocation9], 1
    %7596 = vsyncpa [#allocation12], 1
    %7597 = vsyncpa [#allocation15], 1
    %7598 = vsyncpa [#allocation4], 1

</llo_original>
